<compile_context>
chip_gen: v6e
topology: v6e:2x2x1
jax: 0.10.0
libtpu: 0.0.40
codegen_flags: <defaults>
</compile_context>

<pallas_src>
import functools
from dataclasses import dataclass

import jax
import jax.numpy as jnp
from jax import lax
from jax.experimental import pallas as pl
from jax.experimental.pallas import tpu as pltpu

IN_DIM, HID, OUT_DIM = 32, 64, 8
F32 = jnp.float32
LOSS_LANES = 128          # lane-dense loss output row; supports up to 127 inner steps


def _vmem():
    return pl.BlockSpec(memory_space=pltpu.MemorySpace.VMEM)


def _smem():
    return pl.BlockSpec(memory_space=pltpu.MemorySpace.SMEM)


def _targets(y):
    # y[:, 0] -> regression target, y[:, 1] -> head index; one-hot built in-kernel.
    idx = y[:, 1:2].astype(jnp.int32)                                      # [B, 1]
    oh = (lax.broadcasted_iota(jnp.int32, (y.shape[0], OUT_DIM), 1) == idx).astype(F32)
    tgt = y[:, 0:1]                                                        # [B, 1]
    return oh, tgt


def _forward(x, w1, b1, w2, b2, w3, b3):
    # Canonical x @ W with [in, out] weights; f32 accumulation on the MXU, no transposes.
    z1 = jnp.dot(x, w1, preferred_element_type=F32) + b1
    h1 = jnp.maximum(z1, 0.0)
    z2 = jnp.dot(h1, w2, preferred_element_type=F32) + b2
    h2 = jnp.maximum(z2, 0.0)
    logits = jnp.dot(h2, w3, preferred_element_type=F32) + b3
    return z1, h1, z2, h2, logits


def _fused_maml_kernel(counts_ref, inv_counts_ref,
                       x_cat_ref, y_cat_ref,
                       w1_ref, b1_ref, w2_ref, b2_ref, w3_ref, b3_ref,
                       lr1_ref, lrb1_ref, lr2_ref, lrb2_ref, lr3_ref, lrb3_ref,
                       losses_ref, *, n_sup):
    T = x_cat_ref.shape[0]
    B = x_cat_ref.shape[1]           # M (query) + N (support) rows, query rows first
    n_query = B - n_sup

    # Hoisted loop-invariant iotas (JAX does not CSE broadcast_in_dim inside the loop).
    row = lax.broadcasted_iota(jnp.int32, (B, 1), 0)
    lane = lax.broadcasted_iota(jnp.int32, (1, LOSS_LANES), 1)
    grad_scale = jnp.float32(2.0 / n_sup)

    # Meta parameters = initial fast weights (the only loop-carried tensors besides losses).
    w1, b1 = w1_ref[...], b1_ref[...]
    w2, b2 = w2_ref[...], b2_ref[...]
    w3, b3 = w3_ref[...], b3_ref[...]

    c_samp = (((0,), (0,)), ((), ()))   # contract over the sample (sublane) axis -> dW [in,out]
    c_last = (((1,), (1,)), ((), ()))   # dz @ W^T with [in,out] weights

    def step(j, carry):
        fw1, fb1, fw2, fb2, fw3, fb3, losses = carry
        x = x_cat_ref[j]                                   # [B, IN]   (query ++ support)
        oh, tgt = _targets(y_cat_ref[j])

        # ONE fused forward serves both the slot-j query loss and the step-j support grad.
        z1, h1, z2, h2, logits = _forward(x, fw1, fb1, fw2, fb2, fw3, fb3)
        sel = jnp.sum(logits * oh, axis=-1, keepdims=True)                 # [B, 1]
        d = sel - tgt

        # Query loss for slot j: masked mean-MSE over the first counts[j] rows (all < M).
        dq = jnp.where(row < counts_ref[j], d, 0.0)
        lq = jnp.sum(dq * dq, axis=(0, 1), keepdims=True) * inv_counts_ref[j]
        losses = jnp.where(lane == j, lq, losses)

        # Support-loss manual backward: dlogits is zero on the query rows, so every
        # backward matmul over the fused batch only picks up the support contribution.
        dlogits = grad_scale * jnp.where(row >= n_query, d, 0.0) * oh      # [B, OUT]
        dw3 = lax.dot_general(h2, dlogits, c_samp, preferred_element_type=F32)   # [HID, OUT]
        db3 = jnp.sum(dlogits, axis=0, keepdims=True)
        dh2 = lax.dot_general(dlogits, fw3, c_last, preferred_element_type=F32)  # [B, HID]
        dz2 = jnp.where(z2 > 0.0, dh2, 0.0)
        dw2 = lax.dot_general(h1, dz2, c_samp, preferred_element_type=F32)       # [HID, HID]
        db2 = jnp.sum(dz2, axis=0, keepdims=True)
        dh1 = lax.dot_general(dz2, fw2, c_last, preferred_element_type=F32)      # [B, HID]
        dz1 = jnp.where(z1 > 0.0, dh1, 0.0)
        dw1 = lax.dot_general(x, dz1, c_samp, preferred_element_type=F32)        # [IN, HID]
        db1 = jnp.sum(dz1, axis=0, keepdims=True)

        # g[isnan(g)] = 0, then the (plain / plastic) inner update.  LRs are re-read from
        # VMEM here (not carried) to keep loop-carried vreg pressure low.
        def upd(w, g, lr_ref):
            g = jnp.where(g != g, 0.0, g)                  # NaN-zeroing, matches reference
            return w - g * lr_ref[...]

        fw1 = upd(fw1, dw1, lr1_ref); fb1 = upd(fb1, db1, lrb1_ref)
        fw2 = upd(fw2, dw2, lr2_ref); fb2 = upd(fb2, db2, lrb2_ref)
        fw3 = upd(fw3, dw3, lr3_ref); fb3 = upd(fb3, db3, lrb3_ref)
        return fw1, fb1, fw2, fb2, fw3, fb3, losses

    init = (w1, b1, w2, b2, w3, b3, jnp.zeros((1, LOSS_LANES), F32))
    fw1, fb1, fw2, fb2, fw3, fb3, losses = lax.fori_loop(0, T, step, init, unroll=True)

    # Final slot-T query loss with the last fast weights.  The query rows of every
    # x_cat[j] are identical (x_rand), so reuse slab 0 and mask to the first counts[T] rows.
    x0 = x_cat_ref[0]
    oh0, tgt0 = _targets(y_cat_ref[0])
    _, _, _, _, logits = _forward(x0, fw1, fb1, fw2, fb2, fw3, fb3)
    sel = jnp.sum(logits * oh0, axis=-1, keepdims=True)
    d = jnp.where(row < counts_ref[T], sel - tgt0, 0.0)
    lq = jnp.sum(d * d, axis=(0, 1), keepdims=True) * inv_counts_ref[T]
    losses_ref[...] = jnp.where(lane == T, lq, losses)


@functools.partial(jax.jit, static_argnames=("n_sup",))
def _pallas_maml_forward(counts, inv_counts, x_cat, y_cat, params, inner_lrs, *, n_sup):
    """One fused pallas_call: T inner steps + all T+1 query losses, weights kept on-chip."""
    kernel = functools.partial(_fused_maml_kernel, n_sup=n_sup)
    return pl.pallas_call(
        kernel,
        out_shape=jax.ShapeDtypeStruct((1, LOSS_LANES), F32),
        in_specs=[_smem(), _smem()] + [_vmem()] * 14,
        out_specs=_vmem(),
    )(counts, inv_counts, x_cat, y_cat, *params, *inner_lrs)


@dataclass
class Args:
    update_lr: float = 0.01
    meta_lr: float = 1e-3
    update_step: int = 4
    train_on_new: bool = False
    plastic_update: bool = False
    layer_level_plastic_update: bool = False
    coarse_plastic_update: bool = False
    meta_plasticity_lr: float = 1e-3
    randomize_plastic_weights: bool = False
    zero_plastic_weights: bool = False
    init_plasticity: float = 1.0


class MetaLearnerRegression:
    """JAX/Pallas port of the MAML-regression forward pass (returns losses_q)."""

    def __init__(self, args: Args):
        self.args = args
        self.update_lr = args.update_lr
        # Deterministic synthetic Learner parameters (Learner.Learner(config, ...)),
        # stored in [in, out] layout so the in-kernel forward needs no transposes.
        ks = jax.random.split(jax.random.PRNGKey(0), 3)
        w1 = jax.random.normal(ks[0], (IN_DIM, HID), F32) * (1.0 / jnp.sqrt(IN_DIM))
        w2 = jax.random.normal(ks[1], (HID, HID), F32) * (1.0 / jnp.sqrt(HID))
        w3 = jax.random.normal(ks[2], (HID, OUT_DIM), F32) * (1.0 / jnp.sqrt(HID))
        b1 = jnp.zeros((1, HID), F32)
        b2 = jnp.zeros((1, HID), F32)
        b3 = jnp.zeros((1, OUT_DIM), F32)
        self.vars = [w1, b1, w2, b2, w3, b3]
        self.learn = [True] * len(self.vars)                       # p.learn flags
        self.vars_plasticity = [jnp.full(v.shape, args.init_plasticity, F32)
                                for v in self.vars]
        self.layer_level_vars_plasticity = [jnp.float32(args.init_plasticity)
                                            for _ in self.vars]
        self.coarse_plasticity = jnp.float32(args.init_plasticity)
        # Per-parameter effective inner-loop step size (covers plain / plastic /
        # layer-level / coarse update and the p.learn flag uniformly): w' = w - g * lr.
        self.inner_lrs = self._effective_inner_lrs()

    def _effective_inner_lrs(self):
        a = self.args
        lrs = []
        for v, pp, lp, lrn in zip(self.vars, self.vars_plasticity,
                                  self.layer_level_vars_plasticity, self.learn):
            if not lrn:
                lrs.append(jnp.zeros(v.shape, F32))
            elif a.plastic_update:
                lrs.append(pp)
            elif a.layer_level_plastic_update:
                lrs.append(jnp.full(v.shape, lp, F32))
            elif a.coarse_plastic_update:
                lrs.append(jnp.full(v.shape, self.coarse_plasticity, F32))
            else:
                lrs.append(jnp.full(v.shape, self.update_lr, F32))
        return lrs

    def forward(self, x_traj, y_traj, x_rand, y_rand):
        # TODO(synk): randomize_plastic_weights / zero_plastic_weights mutate Learner
        # adaptation weights in-place; not modeled (flags default to False).
        T, N = x_traj.shape[0], x_traj.shape[1]
        M = x_rand.shape[1]
        assert T + 1 <= LOSS_LANES
        # Fuse the query batch with each step's support batch along the sublane axis
        # (query rows first) so one forward per step serves both uses of a weight set.
        x_cat = jnp.concatenate(
            [jnp.broadcast_to(x_rand[0][None], (T, M, x_rand.shape[2])), x_traj], axis=1)
        y_cat = jnp.concatenate(
            [jnp.broadcast_to(y_rand[0][None], (T, M, 2)), y_traj], axis=1)
        # Query row counts per loss slot: losses_q[0]/[1] use all M rows; losses_q[j]
        # (j>=2) uses int(j*M/T) rows (clamped to >=1).  Counts + their reciprocals are
        # SMEM scalars, masked/multiplied in-kernel, so nothing recompiles across steps.
        counts_py = [M, M] + [max(1, int(j * M / T)) for j in range(2, T + 1)]
        counts = jnp.array(counts_py, dtype=jnp.int32)
        inv_counts = jnp.array([1.0 / c for c in counts_py], dtype=F32)
        out = _pallas_maml_forward(counts, inv_counts, x_cat, y_cat,
                                   tuple(self.vars), tuple(self.inner_lrs), n_sup=N)
        # TODO(synk): the outer meta-update (loss_q.backward() second-order gradient,
        # Adam steps on vars / plasticity vars, MultiStepLR scheduler) is optimizer
        # state mutation, not part of the returned forward values; omitted here.
        return [out[0, j] for j in range(T + 1)]

    __call__ = forward


if __name__ == "__main__":
    T, N_TRAJ, M_RAND = 4, 8, 16
    k1, k2, k3, k4, k5, k6 = jax.random.split(jax.random.PRNGKey(0), 6)
    x_traj = jax.random.normal(k1, (T, N_TRAJ, IN_DIM), F32)
    y_traj = jnp.stack(
        [jax.random.normal(k2, (T, N_TRAJ), F32),
         jax.random.randint(k3, (T, N_TRAJ), 0, OUT_DIM).astype(F32)], axis=-1)
    x_rand = jax.random.normal(k4, (1, M_RAND, IN_DIM), F32)
    y_rand = jnp.stack(
        [jax.random.normal(k5, (1, M_RAND), F32),
         jax.random.randint(k6, (1, M_RAND), 0, OUT_DIM).astype(F32)], axis=-1)

    meta = MetaLearnerRegression(Args(update_step=T))
    losses_q = meta(x_traj, y_traj, x_rand, y_rand)
    losses_q = [jax.block_until_ready(l) for l in losses_q]
    assert len(losses_q) == T + 1
    assert all(bool(jnp.isfinite(l)) for l in losses_q)
    print("KERNEL_OK")
</pallas_src>

<mosaic_0001>
module attributes {stable_mosaic.version = 11 : i64} {
  func.func @_fused_maml_kernel(%arg0: memref<5xi32, #tpu.memory_space<smem>>, %arg1: memref<5xf32, #tpu.memory_space<smem>>, %arg2: memref<4x24x32xf32, #tpu.memory_space<vmem>>, %arg3: memref<4x24x2xf32, #tpu.memory_space<vmem>>, %arg4: memref<32x64xf32, #tpu.memory_space<vmem>>, %arg5: memref<1x64xf32, #tpu.memory_space<vmem>>, %arg6: memref<64x64xf32, #tpu.memory_space<vmem>>, %arg7: memref<1x64xf32, #tpu.memory_space<vmem>>, %arg8: memref<64x8xf32, #tpu.memory_space<vmem>>, %arg9: memref<1x8xf32, #tpu.memory_space<vmem>>, %arg10: memref<32x64xf32, #tpu.memory_space<vmem>>, %arg11: memref<1x64xf32, #tpu.memory_space<vmem>>, %arg12: memref<64x64xf32, #tpu.memory_space<vmem>>, %arg13: memref<1x64xf32, #tpu.memory_space<vmem>>, %arg14: memref<64x8xf32, #tpu.memory_space<vmem>>, %arg15: memref<1x8xf32, #tpu.memory_space<vmem>>, %arg16: memref<1x128xf32, #tpu.memory_space<vmem>>) attributes {dimension_semantics = [], scalar_prefetch = 0 : i64, scratch_operands = 0 : i64, tpu.core_type = #tpu.core_type<tc>} {
    %0 = tpu.iota {dimensions = array<i32: 0>} : vector<24x1xi32>
    %1 = tpu.iota {dimensions = array<i32: 1>} : vector<1x128xi32>
    %c0 = arith.constant 0 : index
    %c0_0 = arith.constant 0 : index
    %2 = vector.load %arg4[%c0, %c0_0] : memref<32x64xf32, #tpu.memory_space<vmem>>, vector<32x64xf32>
    %c0_1 = arith.constant 0 : index
    %c0_2 = arith.constant 0 : index
    %3 = vector.load %arg5[%c0_1, %c0_2] : memref<1x64xf32, #tpu.memory_space<vmem>>, vector<1x64xf32>
    %c0_3 = arith.constant 0 : index
    %c0_4 = arith.constant 0 : index
    %4 = vector.load %arg6[%c0_3, %c0_4] : memref<64x64xf32, #tpu.memory_space<vmem>>, vector<64x64xf32>
    %c0_5 = arith.constant 0 : index
    %c0_6 = arith.constant 0 : index
    %5 = vector.load %arg7[%c0_5, %c0_6] : memref<1x64xf32, #tpu.memory_space<vmem>>, vector<1x64xf32>
    %c0_7 = arith.constant 0 : index
    %c0_8 = arith.constant 0 : index
    %6 = vector.load %arg8[%c0_7, %c0_8] : memref<64x8xf32, #tpu.memory_space<vmem>>, vector<64x8xf32>
    %c0_9 = arith.constant 0 : index
    %c0_10 = arith.constant 0 : index
    %7 = vector.load %arg9[%c0_9, %c0_10] : memref<1x8xf32, #tpu.memory_space<vmem>>, vector<1x8xf32>
    %cst = arith.constant 0.000000e+00 : f32
    %8 = vector.broadcast %cst : f32 to vector<1x128xf32>
    %cst_11 = arith.constant 2.500000e-01 : f32
    %c0_i32 = arith.constant 0 : i32
    %9 = arith.index_cast %c0_i32 : i32 to index
    %c0_12 = arith.constant 0 : index
    %c0_13 = arith.constant 0 : index
    %10 = vector.load %arg2[%9, %c0_12, %c0_13] : memref<4x24x32xf32, #tpu.memory_space<vmem>>, vector<1x24x32xf32>
    %11 = vector.shape_cast %10 : vector<1x24x32xf32> to vector<24x32xf32>
    %12 = arith.index_cast %c0_i32 : i32 to index
    %c0_14 = arith.constant 0 : index
    %c0_15 = arith.constant 0 : index
    %13 = vector.load %arg3[%12, %c0_14, %c0_15] : memref<4x24x2xf32, #tpu.memory_space<vmem>>, vector<1x24x2xf32>
    %14 = vector.shape_cast %13 : vector<1x24x2xf32> to vector<24x2xf32>
    %15 = vector.extract_strided_slice %14 {offsets = [0, 1], sizes = [24, 1], strides = [1, 1]} : vector<24x2xf32> to vector<24x1xf32>
    %16 = arith.fptosi %15 : vector<24x1xf32> to vector<24x1xi32>
    %17 = tpu.iota {dimensions = array<i32: 1>} : vector<24x8xi32>
    %18 = vector.broadcast %16 : vector<24x1xi32> to vector<24x8xi32>
    %19 = arith.cmpi eq, %17, %18 : vector<24x8xi32>
    %20 = arith.extui %19 : vector<24x8xi1> to vector<24x8xi32>
    %21 = arith.sitofp %20 : vector<24x8xi32> to vector<24x8xf32>
    %22 = vector.extract_strided_slice %14 {offsets = [0, 0], sizes = [24, 1], strides = [1, 1]} : vector<24x2xf32> to vector<24x1xf32>
    %cst_16 = arith.constant dense<0.000000e+00> : vector<24x64xf32>
    %23 = tpu.matmul %11, %2, %cst_16 {dimension_numbers = #tpu.dot_dimension_numbers<[1], [0], [0], [1], [0, 0, 1, 1], [], []>} : vector<24x32xf32>, vector<32x64xf32>, vector<24x64xf32> -> vector<24x64xf32>
    %24 = vector.broadcast %3 : vector<1x64xf32> to vector<24x64xf32>
    %25 = arith.addf %23, %24 : vector<24x64xf32>
    %cst_17 = arith.constant 0.000000e+00 : f32
    %26 = vector.broadcast %cst_17 : f32 to vector<24x64xf32>
    %27 = arith.maximumf %25, %26 : vector<24x64xf32>
    %cst_18 = arith.constant dense<0.000000e+00> : vector<24x64xf32>
    %28 = tpu.matmul %27, %4, %cst_18 {dimension_numbers = #tpu.dot_dimension_numbers<[1], [0], [0], [1], [0, 0, 1, 1], [], []>} : vector<24x64xf32>, vector<64x64xf32>, vector<24x64xf32> -> vector<24x64xf32>
    %29 = vector.broadcast %5 : vector<1x64xf32> to vector<24x64xf32>
    %30 = arith.addf %28, %29 : vector<24x64xf32>
    %cst_19 = arith.constant 0.000000e+00 : f32
    %31 = vector.broadcast %cst_19 : f32 to vector<24x64xf32>
    %32 = arith.maximumf %30, %31 : vector<24x64xf32>
    %cst_20 = arith.constant dense<0.000000e+00> : vector<24x8xf32>
    %33 = tpu.matmul %32, %6, %cst_20 {dimension_numbers = #tpu.dot_dimension_numbers<[1], [0], [0], [1], [0, 0, 1, 1], [], []>} : vector<24x64xf32>, vector<64x8xf32>, vector<24x8xf32> -> vector<24x8xf32>
    %34 = vector.broadcast %7 : vector<1x8xf32> to vector<24x8xf32>
    %35 = arith.addf %33, %34 : vector<24x8xf32>
    %36 = arith.mulf %35, %21 : vector<24x8xf32>
    %cst_21 = arith.constant dense<0.000000e+00> : vector<24xf32>
    %37 = vector.multi_reduction <add>, %36, %cst_21 [1] : vector<24x8xf32> to vector<24xf32>
    %38 = vector.shape_cast %37 : vector<24xf32> to vector<24x1xf32>
    %39 = arith.subf %38, %22 : vector<24x1xf32>
    %40 = arith.index_cast %c0_i32 : i32 to index
    %41 = memref.load %arg0[%40] : memref<5xi32, #tpu.memory_space<smem>>
    %42 = vector.broadcast %41 : i32 to vector<24x1xi32>
    %43 = arith.cmpi slt, %0, %42 : vector<24x1xi32>
    %cst_22 = arith.constant 0.000000e+00 : f32
    %44 = vector.broadcast %cst_22 : f32 to vector<24x1xf32>
    %45 = arith.select %43, %39, %44 : vector<24x1xi1>, vector<24x1xf32>
    %46 = arith.mulf %45, %45 : vector<24x1xf32>
    %47 = vector.shape_cast %46 : vector<24x1xf32> to vector<1x24x1xf32>
    %cst_23 = arith.constant dense<0.000000e+00> : vector<1xf32>
    %48 = vector.multi_reduction <add>, %47, %cst_23 [1, 2] : vector<1x24x1xf32> to vector<1xf32>
    %49 = vector.shape_cast %48 : vector<1xf32> to vector<1x1x1xf32>
    %50 = vector.extract %49[0, 0, 0] : f32 from vector<1x1x1xf32>
    %51 = vector.broadcast %50 : f32 to vector<1x1xf32>
    %52 = arith.index_cast %c0_i32 : i32 to index
    %53 = memref.load %arg1[%52] : memref<5xf32, #tpu.memory_space<smem>>
    %54 = vector.broadcast %53 : f32 to vector<1x1xf32>
    %55 = arith.mulf %51, %54 : vector<1x1xf32>
    %56 = vector.broadcast %c0_i32 : i32 to vector<1x128xi32>
    %57 = arith.cmpi eq, %1, %56 : vector<1x128xi32>
    %58 = vector.shape_cast %55 : vector<1x1xf32> to vector<1x1xf32>
    %59 = vector.broadcast %58 : vector<1x1xf32> to vector<1x128xf32>
    %60 = arith.select %57, %59, %8 : vector<1x128xi1>, vector<1x128xf32>
    %c16_i32 = arith.constant 16 : i32
    %61 = vector.broadcast %c16_i32 : i32 to vector<24x1xi32>
    %62 = arith.cmpi sge, %0, %61 : vector<24x1xi32>
    %cst_24 = arith.constant 0.000000e+00 : f32
    %63 = vector.broadcast %cst_24 : f32 to vector<24x1xf32>
    %64 = arith.select %62, %39, %63 : vector<24x1xi1>, vector<24x1xf32>
    %65 = vector.broadcast %cst_11 : f32 to vector<24x1xf32>
    %66 = arith.mulf %65, %64 : vector<24x1xf32>
    %67 = vector.broadcast %66 : vector<24x1xf32> to vector<24x8xf32>
    %68 = arith.mulf %67, %21 : vector<24x8xf32>
    %cst_25 = arith.constant dense<0.000000e+00> : vector<64x8xf32>
    %69 = tpu.matmul %32, %68, %cst_25 {dimension_numbers = #tpu.dot_dimension_numbers<[0], [0], [1], [1], [0, 1, 1, 1], [], []>} : vector<24x64xf32>, vector<24x8xf32>, vector<64x8xf32> -> vector<64x8xf32>
    %cst_26 = arith.constant dense<0.000000e+00> : vector<8xf32>
    %70 = vector.multi_reduction <add>, %68, %cst_26 [0] : vector<24x8xf32> to vector<8xf32>
    %71 = vector.shape_cast %70 : vector<8xf32> to vector<1x8xf32>
    %cst_27 = arith.constant dense<0.000000e+00> : vector<24x64xf32>
    %72 = tpu.matmul %68, %6, %cst_27 {dimension_numbers = #tpu.dot_dimension_numbers<[1], [1], [0], [0], [0, 0, 1, 0], [], []>} : vector<24x8xf32>, vector<64x8xf32>, vector<24x64xf32> -> vector<24x64xf32>
    %cst_28 = arith.constant 0.000000e+00 : f32
    %73 = vector.broadcast %cst_28 : f32 to vector<24x64xf32>
    %74 = arith.cmpf ogt, %30, %73 : vector<24x64xf32>
    %cst_29 = arith.constant 0.000000e+00 : f32
    %75 = vector.broadcast %cst_29 : f32 to vector<24x64xf32>
    %76 = arith.select %74, %72, %75 : vector<24x64xi1>, vector<24x64xf32>
    %cst_30 = arith.constant dense<0.000000e+00> : vector<64x64xf32>
    %77 = tpu.matmul %27, %76, %cst_30 {dimension_numbers = #tpu.dot_dimension_numbers<[0], [0], [1], [1], [0, 1, 1, 1], [], []>} : vector<24x64xf32>, vector<24x64xf32>, vector<64x64xf32> -> vector<64x64xf32>
    %cst_31 = arith.constant dense<0.000000e+00> : vector<64xf32>
    %78 = vector.multi_reduction <add>, %76, %cst_31 [0] : vector<24x64xf32> to vector<64xf32>
    %79 = vector.shape_cast %78 : vector<64xf32> to vector<1x64xf32>
    %cst_32 = arith.constant dense<0.000000e+00> : vector<24x64xf32>
    %80 = tpu.matmul %76, %4, %cst_32 {dimension_numbers = #tpu.dot_dimension_numbers<[1], [1], [0], [0], [0, 0, 1, 0], [], []>} : vector<24x64xf32>, vector<64x64xf32>, vector<24x64xf32> -> vector<24x64xf32>
    %cst_33 = arith.constant 0.000000e+00 : f32
    %81 = vector.broadcast %cst_33 : f32 to vector<24x64xf32>
    %82 = arith.cmpf ogt, %25, %81 : vector<24x64xf32>
    %cst_34 = arith.constant 0.000000e+00 : f32
    %83 = vector.broadcast %cst_34 : f32 to vector<24x64xf32>
    %84 = arith.select %82, %80, %83 : vector<24x64xi1>, vector<24x64xf32>
    %cst_35 = arith.constant dense<0.000000e+00> : vector<32x64xf32>
    %85 = tpu.matmul %11, %84, %cst_35 {dimension_numbers = #tpu.dot_dimension_numbers<[0], [0], [1], [1], [0, 1, 1, 1], [], []>} : vector<24x32xf32>, vector<24x64xf32>, vector<32x64xf32> -> vector<32x64xf32>
    %cst_36 = arith.constant dense<0.000000e+00> : vector<64xf32>
    %86 = vector.multi_reduction <add>, %84, %cst_36 [0] : vector<24x64xf32> to vector<64xf32>
    %87 = vector.shape_cast %86 : vector<64xf32> to vector<1x64xf32>
    %88 = arith.cmpf one, %85, %85 : vector<32x64xf32>
    %cst_37 = arith.constant 0.000000e+00 : f32
    %89 = vector.broadcast %cst_37 : f32 to vector<32x64xf32>
    %90 = arith.select %88, %89, %85 : vector<32x64xi1>, vector<32x64xf32>
    %c0_38 = arith.constant 0 : index
    %c0_39 = arith.constant 0 : index
    %91 = vector.load %arg10[%c0_38, %c0_39] : memref<32x64xf32, #tpu.memory_space<vmem>>, vector<32x64xf32>
    %92 = arith.mulf %90, %91 : vector<32x64xf32>
    %93 = arith.subf %2, %92 : vector<32x64xf32>
    %94 = arith.cmpf one, %87, %87 : vector<1x64xf32>
    %cst_40 = arith.constant 0.000000e+00 : f32
    %95 = vector.broadcast %cst_40 : f32 to vector<1x64xf32>
    %96 = arith.select %94, %95, %87 : vector<1x64xi1>, vector<1x64xf32>
    %c0_41 = arith.constant 0 : index
    %c0_42 = arith.constant 0 : index
    %97 = vector.load %arg11[%c0_41, %c0_42] : memref<1x64xf32, #tpu.memory_space<vmem>>, vector<1x64xf32>
    %98 = arith.mulf %96, %97 : vector<1x64xf32>
    %99 = arith.subf %3, %98 : vector<1x64xf32>
    %100 = arith.cmpf one, %77, %77 : vector<64x64xf32>
    %cst_43 = arith.constant 0.000000e+00 : f32
    %101 = vector.broadcast %cst_43 : f32 to vector<64x64xf32>
    %102 = arith.select %100, %101, %77 : vector<64x64xi1>, vector<64x64xf32>
    %c0_44 = arith.constant 0 : index
    %c0_45 = arith.constant 0 : index
    %103 = vector.load %arg12[%c0_44, %c0_45] : memref<64x64xf32, #tpu.memory_space<vmem>>, vector<64x64xf32>
    %104 = arith.mulf %102, %103 : vector<64x64xf32>
    %105 = arith.subf %4, %104 : vector<64x64xf32>
    %106 = arith.cmpf one, %79, %79 : vector<1x64xf32>
    %cst_46 = arith.constant 0.000000e+00 : f32
    %107 = vector.broadcast %cst_46 : f32 to vector<1x64xf32>
    %108 = arith.select %106, %107, %79 : vector<1x64xi1>, vector<1x64xf32>
    %c0_47 = arith.constant 0 : index
    %c0_48 = arith.constant 0 : index
    %109 = vector.load %arg13[%c0_47, %c0_48] : memref<1x64xf32, #tpu.memory_space<vmem>>, vector<1x64xf32>
    %110 = arith.mulf %108, %109 : vector<1x64xf32>
    %111 = arith.subf %5, %110 : vector<1x64xf32>
    %112 = arith.cmpf one, %69, %69 : vector<64x8xf32>
    %cst_49 = arith.constant 0.000000e+00 : f32
    %113 = vector.broadcast %cst_49 : f32 to vector<64x8xf32>
    %114 = arith.select %112, %113, %69 : vector<64x8xi1>, vector<64x8xf32>
    %c0_50 = arith.constant 0 : index
    %c0_51 = arith.constant 0 : index
    %115 = vector.load %arg14[%c0_50, %c0_51] : memref<64x8xf32, #tpu.memory_space<vmem>>, vector<64x8xf32>
    %116 = arith.mulf %114, %115 : vector<64x8xf32>
    %117 = arith.subf %6, %116 : vector<64x8xf32>
    %118 = arith.cmpf one, %71, %71 : vector<1x8xf32>
    %cst_52 = arith.constant 0.000000e+00 : f32
    %119 = vector.broadcast %cst_52 : f32 to vector<1x8xf32>
    %120 = arith.select %118, %119, %71 : vector<1x8xi1>, vector<1x8xf32>
    %c0_53 = arith.constant 0 : index
    %c0_54 = arith.constant 0 : index
    %121 = vector.load %arg15[%c0_53, %c0_54] : memref<1x8xf32, #tpu.memory_space<vmem>>, vector<1x8xf32>
    %122 = arith.mulf %120, %121 : vector<1x8xf32>
    %123 = arith.subf %7, %122 : vector<1x8xf32>
    %c1_i32 = arith.constant 1 : i32
    %124 = arith.index_cast %c1_i32 : i32 to index
    %c0_55 = arith.constant 0 : index
    %c0_56 = arith.constant 0 : index
    %125 = vector.load %arg2[%124, %c0_55, %c0_56] : memref<4x24x32xf32, #tpu.memory_space<vmem>>, vector<1x24x32xf32>
    %126 = vector.shape_cast %125 : vector<1x24x32xf32> to vector<24x32xf32>
    %127 = arith.index_cast %c1_i32 : i32 to index
    %c0_57 = arith.constant 0 : index
    %c0_58 = arith.constant 0 : index
    %128 = vector.load %arg3[%127, %c0_57, %c0_58] : memref<4x24x2xf32, #tpu.memory_space<vmem>>, vector<1x24x2xf32>
    %129 = vector.shape_cast %128 : vector<1x24x2xf32> to vector<24x2xf32>
    %130 = vector.extract_strided_slice %129 {offsets = [0, 1], sizes = [24, 1], strides = [1, 1]} : vector<24x2xf32> to vector<24x1xf32>
    %131 = arith.fptosi %130 : vector<24x1xf32> to vector<24x1xi32>
    %132 = tpu.iota {dimensions = array<i32: 1>} : vector<24x8xi32>
    %133 = vector.broadcast %131 : vector<24x1xi32> to vector<24x8xi32>
    %134 = arith.cmpi eq, %132, %133 : vector<24x8xi32>
    %135 = arith.extui %134 : vector<24x8xi1> to vector<24x8xi32>
    %136 = arith.sitofp %135 : vector<24x8xi32> to vector<24x8xf32>
    %137 = vector.extract_strided_slice %129 {offsets = [0, 0], sizes = [24, 1], strides = [1, 1]} : vector<24x2xf32> to vector<24x1xf32>
    %cst_59 = arith.constant dense<0.000000e+00> : vector<24x64xf32>
    %138 = tpu.matmul %126, %93, %cst_59 {dimension_numbers = #tpu.dot_dimension_numbers<[1], [0], [0], [1], [0, 0, 1, 1], [], []>} : vector<24x32xf32>, vector<32x64xf32>, vector<24x64xf32> -> vector<24x64xf32>
    %139 = vector.broadcast %99 : vector<1x64xf32> to vector<24x64xf32>
    %140 = arith.addf %138, %139 : vector<24x64xf32>
    %cst_60 = arith.constant 0.000000e+00 : f32
    %141 = vector.broadcast %cst_60 : f32 to vector<24x64xf32>
    %142 = arith.maximumf %140, %141 : vector<24x64xf32>
    %cst_61 = arith.constant dense<0.000000e+00> : vector<24x64xf32>
    %143 = tpu.matmul %142, %105, %cst_61 {dimension_numbers = #tpu.dot_dimension_numbers<[1], [0], [0], [1], [0, 0, 1, 1], [], []>} : vector<24x64xf32>, vector<64x64xf32>, vector<24x64xf32> -> vector<24x64xf32>
    %144 = vector.broadcast %111 : vector<1x64xf32> to vector<24x64xf32>
    %145 = arith.addf %143, %144 : vector<24x64xf32>
    %cst_62 = arith.constant 0.000000e+00 : f32
    %146 = vector.broadcast %cst_62 : f32 to vector<24x64xf32>
    %147 = arith.maximumf %145, %146 : vector<24x64xf32>
    %cst_63 = arith.constant dense<0.000000e+00> : vector<24x8xf32>
    %148 = tpu.matmul %147, %117, %cst_63 {dimension_numbers = #tpu.dot_dimension_numbers<[1], [0], [0], [1], [0, 0, 1, 1], [], []>} : vector<24x64xf32>, vector<64x8xf32>, vector<24x8xf32> -> vector<24x8xf32>
    %149 = vector.broadcast %123 : vector<1x8xf32> to vector<24x8xf32>
    %150 = arith.addf %148, %149 : vector<24x8xf32>
    %151 = arith.mulf %150, %136 : vector<24x8xf32>
    %cst_64 = arith.constant dense<0.000000e+00> : vector<24xf32>
    %152 = vector.multi_reduction <add>, %151, %cst_64 [1] : vector<24x8xf32> to vector<24xf32>
    %153 = vector.shape_cast %152 : vector<24xf32> to vector<24x1xf32>
    %154 = arith.subf %153, %137 : vector<24x1xf32>
    %155 = arith.index_cast %c1_i32 : i32 to index
    %156 = memref.load %arg0[%155] : memref<5xi32, #tpu.memory_space<smem>>
    %157 = vector.broadcast %156 : i32 to vector<24x1xi32>
    %158 = arith.cmpi slt, %0, %157 : vector<24x1xi32>
    %cst_65 = arith.constant 0.000000e+00 : f32
    %159 = vector.broadcast %cst_65 : f32 to vector<24x1xf32>
    %160 = arith.select %158, %154, %159 : vector<24x1xi1>, vector<24x1xf32>
    %161 = arith.mulf %160, %160 : vector<24x1xf32>
    %162 = vector.shape_cast %161 : vector<24x1xf32> to vector<1x24x1xf32>
    %cst_66 = arith.constant dense<0.000000e+00> : vector<1xf32>
    %163 = vector.multi_reduction <add>, %162, %cst_66 [1, 2] : vector<1x24x1xf32> to vector<1xf32>
    %164 = vector.shape_cast %163 : vector<1xf32> to vector<1x1x1xf32>
    %165 = vector.extract %164[0, 0, 0] : f32 from vector<1x1x1xf32>
    %166 = vector.broadcast %165 : f32 to vector<1x1xf32>
    %167 = arith.index_cast %c1_i32 : i32 to index
    %168 = memref.load %arg1[%167] : memref<5xf32, #tpu.memory_space<smem>>
    %169 = vector.broadcast %168 : f32 to vector<1x1xf32>
    %170 = arith.mulf %166, %169 : vector<1x1xf32>
    %171 = vector.broadcast %c1_i32 : i32 to vector<1x128xi32>
    %172 = arith.cmpi eq, %1, %171 : vector<1x128xi32>
    %173 = vector.shape_cast %170 : vector<1x1xf32> to vector<1x1xf32>
    %174 = vector.broadcast %173 : vector<1x1xf32> to vector<1x128xf32>
    %175 = arith.select %172, %174, %60 : vector<1x128xi1>, vector<1x128xf32>
    %c16_i32_67 = arith.constant 16 : i32
    %176 = vector.broadcast %c16_i32_67 : i32 to vector<24x1xi32>
    %177 = arith.cmpi sge, %0, %176 : vector<24x1xi32>
    %cst_68 = arith.constant 0.000000e+00 : f32
    %178 = vector.broadcast %cst_68 : f32 to vector<24x1xf32>
    %179 = arith.select %177, %154, %178 : vector<24x1xi1>, vector<24x1xf32>
    %180 = vector.broadcast %cst_11 : f32 to vector<24x1xf32>
    %181 = arith.mulf %180, %179 : vector<24x1xf32>
    %182 = vector.broadcast %181 : vector<24x1xf32> to vector<24x8xf32>
    %183 = arith.mulf %182, %136 : vector<24x8xf32>
    %cst_69 = arith.constant dense<0.000000e+00> : vector<64x8xf32>
    %184 = tpu.matmul %147, %183, %cst_69 {dimension_numbers = #tpu.dot_dimension_numbers<[0], [0], [1], [1], [0, 1, 1, 1], [], []>} : vector<24x64xf32>, vector<24x8xf32>, vector<64x8xf32> -> vector<64x8xf32>
    %cst_70 = arith.constant dense<0.000000e+00> : vector<8xf32>
    %185 = vector.multi_reduction <add>, %183, %cst_70 [0] : vector<24x8xf32> to vector<8xf32>
    %186 = vector.shape_cast %185 : vector<8xf32> to vector<1x8xf32>
    %cst_71 = arith.constant dense<0.000000e+00> : vector<24x64xf32>
    %187 = tpu.matmul %183, %117, %cst_71 {dimension_numbers = #tpu.dot_dimension_numbers<[1], [1], [0], [0], [0, 0, 1, 0], [], []>} : vector<24x8xf32>, vector<64x8xf32>, vector<24x64xf32> -> vector<24x64xf32>
    %cst_72 = arith.constant 0.000000e+00 : f32
    %188 = vector.broadcast %cst_72 : f32 to vector<24x64xf32>
    %189 = arith.cmpf ogt, %145, %188 : vector<24x64xf32>
    %cst_73 = arith.constant 0.000000e+00 : f32
    %190 = vector.broadcast %cst_73 : f32 to vector<24x64xf32>
    %191 = arith.select %189, %187, %190 : vector<24x64xi1>, vector<24x64xf32>
    %cst_74 = arith.constant dense<0.000000e+00> : vector<64x64xf32>
    %192 = tpu.matmul %142, %191, %cst_74 {dimension_numbers = #tpu.dot_dimension_numbers<[0], [0], [1], [1], [0, 1, 1, 1], [], []>} : vector<24x64xf32>, vector<24x64xf32>, vector<64x64xf32> -> vector<64x64xf32>
    %cst_75 = arith.constant dense<0.000000e+00> : vector<64xf32>
    %193 = vector.multi_reduction <add>, %191, %cst_75 [0] : vector<24x64xf32> to vector<64xf32>
    %194 = vector.shape_cast %193 : vector<64xf32> to vector<1x64xf32>
    %cst_76 = arith.constant dense<0.000000e+00> : vector<24x64xf32>
    %195 = tpu.matmul %191, %105, %cst_76 {dimension_numbers = #tpu.dot_dimension_numbers<[1], [1], [0], [0], [0, 0, 1, 0], [], []>} : vector<24x64xf32>, vector<64x64xf32>, vector<24x64xf32> -> vector<24x64xf32>
    %cst_77 = arith.constant 0.000000e+00 : f32
    %196 = vector.broadcast %cst_77 : f32 to vector<24x64xf32>
    %197 = arith.cmpf ogt, %140, %196 : vector<24x64xf32>
    %cst_78 = arith.constant 0.000000e+00 : f32
    %198 = vector.broadcast %cst_78 : f32 to vector<24x64xf32>
    %199 = arith.select %197, %195, %198 : vector<24x64xi1>, vector<24x64xf32>
    %cst_79 = arith.constant dense<0.000000e+00> : vector<32x64xf32>
    %200 = tpu.matmul %126, %199, %cst_79 {dimension_numbers = #tpu.dot_dimension_numbers<[0], [0], [1], [1], [0, 1, 1, 1], [], []>} : vector<24x32xf32>, vector<24x64xf32>, vector<32x64xf32> -> vector<32x64xf32>
    %cst_80 = arith.constant dense<0.000000e+00> : vector<64xf32>
    %201 = vector.multi_reduction <add>, %199, %cst_80 [0] : vector<24x64xf32> to vector<64xf32>
    %202 = vector.shape_cast %201 : vector<64xf32> to vector<1x64xf32>
    %203 = arith.cmpf one, %200, %200 : vector<32x64xf32>
    %cst_81 = arith.constant 0.000000e+00 : f32
    %204 = vector.broadcast %cst_81 : f32 to vector<32x64xf32>
    %205 = arith.select %203, %204, %200 : vector<32x64xi1>, vector<32x64xf32>
    %c0_82 = arith.constant 0 : index
    %c0_83 = arith.constant 0 : index
    %206 = vector.load %arg10[%c0_82, %c0_83] : memref<32x64xf32, #tpu.memory_space<vmem>>, vector<32x64xf32>
    %207 = arith.mulf %205, %206 : vector<32x64xf32>
    %208 = arith.subf %93, %207 : vector<32x64xf32>
    %209 = arith.cmpf one, %202, %202 : vector<1x64xf32>
    %cst_84 = arith.constant 0.000000e+00 : f32
    %210 = vector.broadcast %cst_84 : f32 to vector<1x64xf32>
    %211 = arith.select %209, %210, %202 : vector<1x64xi1>, vector<1x64xf32>
    %c0_85 = arith.constant 0 : index
    %c0_86 = arith.constant 0 : index
    %212 = vector.load %arg11[%c0_85, %c0_86] : memref<1x64xf32, #tpu.memory_space<vmem>>, vector<1x64xf32>
    %213 = arith.mulf %211, %212 : vector<1x64xf32>
    %214 = arith.subf %99, %213 : vector<1x64xf32>
    %215 = arith.cmpf one, %192, %192 : vector<64x64xf32>
    %cst_87 = arith.constant 0.000000e+00 : f32
    %216 = vector.broadcast %cst_87 : f32 to vector<64x64xf32>
    %217 = arith.select %215, %216, %192 : vector<64x64xi1>, vector<64x64xf32>
    %c0_88 = arith.constant 0 : index
    %c0_89 = arith.constant 0 : index
    %218 = vector.load %arg12[%c0_88, %c0_89] : memref<64x64xf32, #tpu.memory_space<vmem>>, vector<64x64xf32>
    %219 = arith.mulf %217, %218 : vector<64x64xf32>
    %220 = arith.subf %105, %219 : vector<64x64xf32>
    %221 = arith.cmpf one, %194, %194 : vector<1x64xf32>
    %cst_90 = arith.constant 0.000000e+00 : f32
    %222 = vector.broadcast %cst_90 : f32 to vector<1x64xf32>
    %223 = arith.select %221, %222, %194 : vector<1x64xi1>, vector<1x64xf32>
    %c0_91 = arith.constant 0 : index
    %c0_92 = arith.constant 0 : index
    %224 = vector.load %arg13[%c0_91, %c0_92] : memref<1x64xf32, #tpu.memory_space<vmem>>, vector<1x64xf32>
    %225 = arith.mulf %223, %224 : vector<1x64xf32>
    %226 = arith.subf %111, %225 : vector<1x64xf32>
    %227 = arith.cmpf one, %184, %184 : vector<64x8xf32>
    %cst_93 = arith.constant 0.000000e+00 : f32
    %228 = vector.broadcast %cst_93 : f32 to vector<64x8xf32>
    %229 = arith.select %227, %228, %184 : vector<64x8xi1>, vector<64x8xf32>
    %c0_94 = arith.constant 0 : index
    %c0_95 = arith.constant 0 : index
    %230 = vector.load %arg14[%c0_94, %c0_95] : memref<64x8xf32, #tpu.memory_space<vmem>>, vector<64x8xf32>
    %231 = arith.mulf %229, %230 : vector<64x8xf32>
    %232 = arith.subf %117, %231 : vector<64x8xf32>
    %233 = arith.cmpf one, %186, %186 : vector<1x8xf32>
    %cst_96 = arith.constant 0.000000e+00 : f32
    %234 = vector.broadcast %cst_96 : f32 to vector<1x8xf32>
    %235 = arith.select %233, %234, %186 : vector<1x8xi1>, vector<1x8xf32>
    %c0_97 = arith.constant 0 : index
    %c0_98 = arith.constant 0 : index
    %236 = vector.load %arg15[%c0_97, %c0_98] : memref<1x8xf32, #tpu.memory_space<vmem>>, vector<1x8xf32>
    %237 = arith.mulf %235, %236 : vector<1x8xf32>
    %238 = arith.subf %123, %237 : vector<1x8xf32>
    %c2_i32 = arith.constant 2 : i32
    %239 = arith.index_cast %c2_i32 : i32 to index
    %c0_99 = arith.constant 0 : index
    %c0_100 = arith.constant 0 : index
    %240 = vector.load %arg2[%239, %c0_99, %c0_100] : memref<4x24x32xf32, #tpu.memory_space<vmem>>, vector<1x24x32xf32>
    %241 = vector.shape_cast %240 : vector<1x24x32xf32> to vector<24x32xf32>
    %242 = arith.index_cast %c2_i32 : i32 to index
    %c0_101 = arith.constant 0 : index
    %c0_102 = arith.constant 0 : index
    %243 = vector.load %arg3[%242, %c0_101, %c0_102] : memref<4x24x2xf32, #tpu.memory_space<vmem>>, vector<1x24x2xf32>
    %244 = vector.shape_cast %243 : vector<1x24x2xf32> to vector<24x2xf32>
    %245 = vector.extract_strided_slice %244 {offsets = [0, 1], sizes = [24, 1], strides = [1, 1]} : vector<24x2xf32> to vector<24x1xf32>
    %246 = arith.fptosi %245 : vector<24x1xf32> to vector<24x1xi32>
    %247 = tpu.iota {dimensions = array<i32: 1>} : vector<24x8xi32>
    %248 = vector.broadcast %246 : vector<24x1xi32> to vector<24x8xi32>
    %249 = arith.cmpi eq, %247, %248 : vector<24x8xi32>
    %250 = arith.extui %249 : vector<24x8xi1> to vector<24x8xi32>
    %251 = arith.sitofp %250 : vector<24x8xi32> to vector<24x8xf32>
    %252 = vector.extract_strided_slice %244 {offsets = [0, 0], sizes = [24, 1], strides = [1, 1]} : vector<24x2xf32> to vector<24x1xf32>
    %cst_103 = arith.constant dense<0.000000e+00> : vector<24x64xf32>
    %253 = tpu.matmul %241, %208, %cst_103 {dimension_numbers = #tpu.dot_dimension_numbers<[1], [0], [0], [1], [0, 0, 1, 1], [], []>} : vector<24x32xf32>, vector<32x64xf32>, vector<24x64xf32> -> vector<24x64xf32>
    %254 = vector.broadcast %214 : vector<1x64xf32> to vector<24x64xf32>
    %255 = arith.addf %253, %254 : vector<24x64xf32>
    %cst_104 = arith.constant 0.000000e+00 : f32
    %256 = vector.broadcast %cst_104 : f32 to vector<24x64xf32>
    %257 = arith.maximumf %255, %256 : vector<24x64xf32>
    %cst_105 = arith.constant dense<0.000000e+00> : vector<24x64xf32>
    %258 = tpu.matmul %257, %220, %cst_105 {dimension_numbers = #tpu.dot_dimension_numbers<[1], [0], [0], [1], [0, 0, 1, 1], [], []>} : vector<24x64xf32>, vector<64x64xf32>, vector<24x64xf32> -> vector<24x64xf32>
    %259 = vector.broadcast %226 : vector<1x64xf32> to vector<24x64xf32>
    %260 = arith.addf %258, %259 : vector<24x64xf32>
    %cst_106 = arith.constant 0.000000e+00 : f32
    %261 = vector.broadcast %cst_106 : f32 to vector<24x64xf32>
    %262 = arith.maximumf %260, %261 : vector<24x64xf32>
    %cst_107 = arith.constant dense<0.000000e+00> : vector<24x8xf32>
    %263 = tpu.matmul %262, %232, %cst_107 {dimension_numbers = #tpu.dot_dimension_numbers<[1], [0], [0], [1], [0, 0, 1, 1], [], []>} : vector<24x64xf32>, vector<64x8xf32>, vector<24x8xf32> -> vector<24x8xf32>
    %264 = vector.broadcast %238 : vector<1x8xf32> to vector<24x8xf32>
    %265 = arith.addf %263, %264 : vector<24x8xf32>
    %266 = arith.mulf %265, %251 : vector<24x8xf32>
    %cst_108 = arith.constant dense<0.000000e+00> : vector<24xf32>
    %267 = vector.multi_reduction <add>, %266, %cst_108 [1] : vector<24x8xf32> to vector<24xf32>
    %268 = vector.shape_cast %267 : vector<24xf32> to vector<24x1xf32>
    %269 = arith.subf %268, %252 : vector<24x1xf32>
    %270 = arith.index_cast %c2_i32 : i32 to index
    %271 = memref.load %arg0[%270] : memref<5xi32, #tpu.memory_space<smem>>
    %272 = vector.broadcast %271 : i32 to vector<24x1xi32>
    %273 = arith.cmpi slt, %0, %272 : vector<24x1xi32>
    %cst_109 = arith.constant 0.000000e+00 : f32
    %274 = vector.broadcast %cst_109 : f32 to vector<24x1xf32>
    %275 = arith.select %273, %269, %274 : vector<24x1xi1>, vector<24x1xf32>
    %276 = arith.mulf %275, %275 : vector<24x1xf32>
    %277 = vector.shape_cast %276 : vector<24x1xf32> to vector<1x24x1xf32>
    %cst_110 = arith.constant dense<0.000000e+00> : vector<1xf32>
    %278 = vector.multi_reduction <add>, %277, %cst_110 [1, 2] : vector<1x24x1xf32> to vector<1xf32>
    %279 = vector.shape_cast %278 : vector<1xf32> to vector<1x1x1xf32>
    %280 = vector.extract %279[0, 0, 0] : f32 from vector<1x1x1xf32>
    %281 = vector.broadcast %280 : f32 to vector<1x1xf32>
    %282 = arith.index_cast %c2_i32 : i32 to index
    %283 = memref.load %arg1[%282] : memref<5xf32, #tpu.memory_space<smem>>
    %284 = vector.broadcast %283 : f32 to vector<1x1xf32>
    %285 = arith.mulf %281, %284 : vector<1x1xf32>
    %286 = vector.broadcast %c2_i32 : i32 to vector<1x128xi32>
    %287 = arith.cmpi eq, %1, %286 : vector<1x128xi32>
    %288 = vector.shape_cast %285 : vector<1x1xf32> to vector<1x1xf32>
    %289 = vector.broadcast %288 : vector<1x1xf32> to vector<1x128xf32>
    %290 = arith.select %287, %289, %175 : vector<1x128xi1>, vector<1x128xf32>
    %c16_i32_111 = arith.constant 16 : i32
    %291 = vector.broadcast %c16_i32_111 : i32 to vector<24x1xi32>
    %292 = arith.cmpi sge, %0, %291 : vector<24x1xi32>
    %cst_112 = arith.constant 0.000000e+00 : f32
    %293 = vector.broadcast %cst_112 : f32 to vector<24x1xf32>
    %294 = arith.select %292, %269, %293 : vector<24x1xi1>, vector<24x1xf32>
    %295 = vector.broadcast %cst_11 : f32 to vector<24x1xf32>
    %296 = arith.mulf %295, %294 : vector<24x1xf32>
    %297 = vector.broadcast %296 : vector<24x1xf32> to vector<24x8xf32>
    %298 = arith.mulf %297, %251 : vector<24x8xf32>
    %cst_113 = arith.constant dense<0.000000e+00> : vector<64x8xf32>
    %299 = tpu.matmul %262, %298, %cst_113 {dimension_numbers = #tpu.dot_dimension_numbers<[0], [0], [1], [1], [0, 1, 1, 1], [], []>} : vector<24x64xf32>, vector<24x8xf32>, vector<64x8xf32> -> vector<64x8xf32>
    %cst_114 = arith.constant dense<0.000000e+00> : vector<8xf32>
    %300 = vector.multi_reduction <add>, %298, %cst_114 [0] : vector<24x8xf32> to vector<8xf32>
    %301 = vector.shape_cast %300 : vector<8xf32> to vector<1x8xf32>
    %cst_115 = arith.constant dense<0.000000e+00> : vector<24x64xf32>
    %302 = tpu.matmul %298, %232, %cst_115 {dimension_numbers = #tpu.dot_dimension_numbers<[1], [1], [0], [0], [0, 0, 1, 0], [], []>} : vector<24x8xf32>, vector<64x8xf32>, vector<24x64xf32> -> vector<24x64xf32>
    %cst_116 = arith.constant 0.000000e+00 : f32
    %303 = vector.broadcast %cst_116 : f32 to vector<24x64xf32>
    %304 = arith.cmpf ogt, %260, %303 : vector<24x64xf32>
    %cst_117 = arith.constant 0.000000e+00 : f32
    %305 = vector.broadcast %cst_117 : f32 to vector<24x64xf32>
    %306 = arith.select %304, %302, %305 : vector<24x64xi1>, vector<24x64xf32>
    %cst_118 = arith.constant dense<0.000000e+00> : vector<64x64xf32>
    %307 = tpu.matmul %257, %306, %cst_118 {dimension_numbers = #tpu.dot_dimension_numbers<[0], [0], [1], [1], [0, 1, 1, 1], [], []>} : vector<24x64xf32>, vector<24x64xf32>, vector<64x64xf32> -> vector<64x64xf32>
    %cst_119 = arith.constant dense<0.000000e+00> : vector<64xf32>
    %308 = vector.multi_reduction <add>, %306, %cst_119 [0] : vector<24x64xf32> to vector<64xf32>
    %309 = vector.shape_cast %308 : vector<64xf32> to vector<1x64xf32>
    %cst_120 = arith.constant dense<0.000000e+00> : vector<24x64xf32>
    %310 = tpu.matmul %306, %220, %cst_120 {dimension_numbers = #tpu.dot_dimension_numbers<[1], [1], [0], [0], [0, 0, 1, 0], [], []>} : vector<24x64xf32>, vector<64x64xf32>, vector<24x64xf32> -> vector<24x64xf32>
    %cst_121 = arith.constant 0.000000e+00 : f32
    %311 = vector.broadcast %cst_121 : f32 to vector<24x64xf32>
    %312 = arith.cmpf ogt, %255, %311 : vector<24x64xf32>
    %cst_122 = arith.constant 0.000000e+00 : f32
    %313 = vector.broadcast %cst_122 : f32 to vector<24x64xf32>
    %314 = arith.select %312, %310, %313 : vector<24x64xi1>, vector<24x64xf32>
    %cst_123 = arith.constant dense<0.000000e+00> : vector<32x64xf32>
    %315 = tpu.matmul %241, %314, %cst_123 {dimension_numbers = #tpu.dot_dimension_numbers<[0], [0], [1], [1], [0, 1, 1, 1], [], []>} : vector<24x32xf32>, vector<24x64xf32>, vector<32x64xf32> -> vector<32x64xf32>
    %cst_124 = arith.constant dense<0.000000e+00> : vector<64xf32>
    %316 = vector.multi_reduction <add>, %314, %cst_124 [0] : vector<24x64xf32> to vector<64xf32>
    %317 = vector.shape_cast %316 : vector<64xf32> to vector<1x64xf32>
    %318 = arith.cmpf one, %315, %315 : vector<32x64xf32>
    %cst_125 = arith.constant 0.000000e+00 : f32
    %319 = vector.broadcast %cst_125 : f32 to vector<32x64xf32>
    %320 = arith.select %318, %319, %315 : vector<32x64xi1>, vector<32x64xf32>
    %c0_126 = arith.constant 0 : index
    %c0_127 = arith.constant 0 : index
    %321 = vector.load %arg10[%c0_126, %c0_127] : memref<32x64xf32, #tpu.memory_space<vmem>>, vector<32x64xf32>
    %322 = arith.mulf %320, %321 : vector<32x64xf32>
    %323 = arith.subf %208, %322 : vector<32x64xf32>
    %324 = arith.cmpf one, %317, %317 : vector<1x64xf32>
    %cst_128 = arith.constant 0.000000e+00 : f32
    %325 = vector.broadcast %cst_128 : f32 to vector<1x64xf32>
    %326 = arith.select %324, %325, %317 : vector<1x64xi1>, vector<1x64xf32>
    %c0_129 = arith.constant 0 : index
    %c0_130 = arith.constant 0 : index
    %327 = vector.load %arg11[%c0_129, %c0_130] : memref<1x64xf32, #tpu.memory_space<vmem>>, vector<1x64xf32>
    %328 = arith.mulf %326, %327 : vector<1x64xf32>
    %329 = arith.subf %214, %328 : vector<1x64xf32>
    %330 = arith.cmpf one, %307, %307 : vector<64x64xf32>
    %cst_131 = arith.constant 0.000000e+00 : f32
    %331 = vector.broadcast %cst_131 : f32 to vector<64x64xf32>
    %332 = arith.select %330, %331, %307 : vector<64x64xi1>, vector<64x64xf32>
    %c0_132 = arith.constant 0 : index
    %c0_133 = arith.constant 0 : index
    %333 = vector.load %arg12[%c0_132, %c0_133] : memref<64x64xf32, #tpu.memory_space<vmem>>, vector<64x64xf32>
    %334 = arith.mulf %332, %333 : vector<64x64xf32>
    %335 = arith.subf %220, %334 : vector<64x64xf32>
    %336 = arith.cmpf one, %309, %309 : vector<1x64xf32>
    %cst_134 = arith.constant 0.000000e+00 : f32
    %337 = vector.broadcast %cst_134 : f32 to vector<1x64xf32>
    %338 = arith.select %336, %337, %309 : vector<1x64xi1>, vector<1x64xf32>
    %c0_135 = arith.constant 0 : index
    %c0_136 = arith.constant 0 : index
    %339 = vector.load %arg13[%c0_135, %c0_136] : memref<1x64xf32, #tpu.memory_space<vmem>>, vector<1x64xf32>
    %340 = arith.mulf %338, %339 : vector<1x64xf32>
    %341 = arith.subf %226, %340 : vector<1x64xf32>
    %342 = arith.cmpf one, %299, %299 : vector<64x8xf32>
    %cst_137 = arith.constant 0.000000e+00 : f32
    %343 = vector.broadcast %cst_137 : f32 to vector<64x8xf32>
    %344 = arith.select %342, %343, %299 : vector<64x8xi1>, vector<64x8xf32>
    %c0_138 = arith.constant 0 : index
    %c0_139 = arith.constant 0 : index
    %345 = vector.load %arg14[%c0_138, %c0_139] : memref<64x8xf32, #tpu.memory_space<vmem>>, vector<64x8xf32>
    %346 = arith.mulf %344, %345 : vector<64x8xf32>
    %347 = arith.subf %232, %346 : vector<64x8xf32>
    %348 = arith.cmpf one, %301, %301 : vector<1x8xf32>
    %cst_140 = arith.constant 0.000000e+00 : f32
    %349 = vector.broadcast %cst_140 : f32 to vector<1x8xf32>
    %350 = arith.select %348, %349, %301 : vector<1x8xi1>, vector<1x8xf32>
    %c0_141 = arith.constant 0 : index
    %c0_142 = arith.constant 0 : index
    %351 = vector.load %arg15[%c0_141, %c0_142] : memref<1x8xf32, #tpu.memory_space<vmem>>, vector<1x8xf32>
    %352 = arith.mulf %350, %351 : vector<1x8xf32>
    %353 = arith.subf %238, %352 : vector<1x8xf32>
    %c3_i32 = arith.constant 3 : i32
    %354 = arith.index_cast %c3_i32 : i32 to index
    %c0_143 = arith.constant 0 : index
    %c0_144 = arith.constant 0 : index
    %355 = vector.load %arg2[%354, %c0_143, %c0_144] : memref<4x24x32xf32, #tpu.memory_space<vmem>>, vector<1x24x32xf32>
    %356 = vector.shape_cast %355 : vector<1x24x32xf32> to vector<24x32xf32>
    %357 = arith.index_cast %c3_i32 : i32 to index
    %c0_145 = arith.constant 0 : index
    %c0_146 = arith.constant 0 : index
    %358 = vector.load %arg3[%357, %c0_145, %c0_146] : memref<4x24x2xf32, #tpu.memory_space<vmem>>, vector<1x24x2xf32>
    %359 = vector.shape_cast %358 : vector<1x24x2xf32> to vector<24x2xf32>
    %360 = vector.extract_strided_slice %359 {offsets = [0, 1], sizes = [24, 1], strides = [1, 1]} : vector<24x2xf32> to vector<24x1xf32>
    %361 = arith.fptosi %360 : vector<24x1xf32> to vector<24x1xi32>
    %362 = tpu.iota {dimensions = array<i32: 1>} : vector<24x8xi32>
    %363 = vector.broadcast %361 : vector<24x1xi32> to vector<24x8xi32>
    %364 = arith.cmpi eq, %362, %363 : vector<24x8xi32>
    %365 = arith.extui %364 : vector<24x8xi1> to vector<24x8xi32>
    %366 = arith.sitofp %365 : vector<24x8xi32> to vector<24x8xf32>
    %367 = vector.extract_strided_slice %359 {offsets = [0, 0], sizes = [24, 1], strides = [1, 1]} : vector<24x2xf32> to vector<24x1xf32>
    %cst_147 = arith.constant dense<0.000000e+00> : vector<24x64xf32>
    %368 = tpu.matmul %356, %323, %cst_147 {dimension_numbers = #tpu.dot_dimension_numbers<[1], [0], [0], [1], [0, 0, 1, 1], [], []>} : vector<24x32xf32>, vector<32x64xf32>, vector<24x64xf32> -> vector<24x64xf32>
    %369 = vector.broadcast %329 : vector<1x64xf32> to vector<24x64xf32>
    %370 = arith.addf %368, %369 : vector<24x64xf32>
    %cst_148 = arith.constant 0.000000e+00 : f32
    %371 = vector.broadcast %cst_148 : f32 to vector<24x64xf32>
    %372 = arith.maximumf %370, %371 : vector<24x64xf32>
    %cst_149 = arith.constant dense<0.000000e+00> : vector<24x64xf32>
    %373 = tpu.matmul %372, %335, %cst_149 {dimension_numbers = #tpu.dot_dimension_numbers<[1], [0], [0], [1], [0, 0, 1, 1], [], []>} : vector<24x64xf32>, vector<64x64xf32>, vector<24x64xf32> -> vector<24x64xf32>
    %374 = vector.broadcast %341 : vector<1x64xf32> to vector<24x64xf32>
    %375 = arith.addf %373, %374 : vector<24x64xf32>
    %cst_150 = arith.constant 0.000000e+00 : f32
    %376 = vector.broadcast %cst_150 : f32 to vector<24x64xf32>
    %377 = arith.maximumf %375, %376 : vector<24x64xf32>
    %cst_151 = arith.constant dense<0.000000e+00> : vector<24x8xf32>
    %378 = tpu.matmul %377, %347, %cst_151 {dimension_numbers = #tpu.dot_dimension_numbers<[1], [0], [0], [1], [0, 0, 1, 1], [], []>} : vector<24x64xf32>, vector<64x8xf32>, vector<24x8xf32> -> vector<24x8xf32>
    %379 = vector.broadcast %353 : vector<1x8xf32> to vector<24x8xf32>
    %380 = arith.addf %378, %379 : vector<24x8xf32>
    %381 = arith.mulf %380, %366 : vector<24x8xf32>
    %cst_152 = arith.constant dense<0.000000e+00> : vector<24xf32>
    %382 = vector.multi_reduction <add>, %381, %cst_152 [1] : vector<24x8xf32> to vector<24xf32>
    %383 = vector.shape_cast %382 : vector<24xf32> to vector<24x1xf32>
    %384 = arith.subf %383, %367 : vector<24x1xf32>
    %385 = arith.index_cast %c3_i32 : i32 to index
    %386 = memref.load %arg0[%385] : memref<5xi32, #tpu.memory_space<smem>>
    %387 = vector.broadcast %386 : i32 to vector<24x1xi32>
    %388 = arith.cmpi slt, %0, %387 : vector<24x1xi32>
    %cst_153 = arith.constant 0.000000e+00 : f32
    %389 = vector.broadcast %cst_153 : f32 to vector<24x1xf32>
    %390 = arith.select %388, %384, %389 : vector<24x1xi1>, vector<24x1xf32>
    %391 = arith.mulf %390, %390 : vector<24x1xf32>
    %392 = vector.shape_cast %391 : vector<24x1xf32> to vector<1x24x1xf32>
    %cst_154 = arith.constant dense<0.000000e+00> : vector<1xf32>
    %393 = vector.multi_reduction <add>, %392, %cst_154 [1, 2] : vector<1x24x1xf32> to vector<1xf32>
    %394 = vector.shape_cast %393 : vector<1xf32> to vector<1x1x1xf32>
    %395 = vector.extract %394[0, 0, 0] : f32 from vector<1x1x1xf32>
    %396 = vector.broadcast %395 : f32 to vector<1x1xf32>
    %397 = arith.index_cast %c3_i32 : i32 to index
    %398 = memref.load %arg1[%397] : memref<5xf32, #tpu.memory_space<smem>>
    %399 = vector.broadcast %398 : f32 to vector<1x1xf32>
    %400 = arith.mulf %396, %399 : vector<1x1xf32>
    %401 = vector.broadcast %c3_i32 : i32 to vector<1x128xi32>
    %402 = arith.cmpi eq, %1, %401 : vector<1x128xi32>
    %403 = vector.shape_cast %400 : vector<1x1xf32> to vector<1x1xf32>
    %404 = vector.broadcast %403 : vector<1x1xf32> to vector<1x128xf32>
    %405 = arith.select %402, %404, %290 : vector<1x128xi1>, vector<1x128xf32>
    %c16_i32_155 = arith.constant 16 : i32
    %406 = vector.broadcast %c16_i32_155 : i32 to vector<24x1xi32>
    %407 = arith.cmpi sge, %0, %406 : vector<24x1xi32>
    %cst_156 = arith.constant 0.000000e+00 : f32
    %408 = vector.broadcast %cst_156 : f32 to vector<24x1xf32>
    %409 = arith.select %407, %384, %408 : vector<24x1xi1>, vector<24x1xf32>
    %410 = vector.broadcast %cst_11 : f32 to vector<24x1xf32>
    %411 = arith.mulf %410, %409 : vector<24x1xf32>
    %412 = vector.broadcast %411 : vector<24x1xf32> to vector<24x8xf32>
    %413 = arith.mulf %412, %366 : vector<24x8xf32>
    %cst_157 = arith.constant dense<0.000000e+00> : vector<64x8xf32>
    %414 = tpu.matmul %377, %413, %cst_157 {dimension_numbers = #tpu.dot_dimension_numbers<[0], [0], [1], [1], [0, 1, 1, 1], [], []>} : vector<24x64xf32>, vector<24x8xf32>, vector<64x8xf32> -> vector<64x8xf32>
    %cst_158 = arith.constant dense<0.000000e+00> : vector<8xf32>
    %415 = vector.multi_reduction <add>, %413, %cst_158 [0] : vector<24x8xf32> to vector<8xf32>
    %416 = vector.shape_cast %415 : vector<8xf32> to vector<1x8xf32>
    %cst_159 = arith.constant dense<0.000000e+00> : vector<24x64xf32>
    %417 = tpu.matmul %413, %347, %cst_159 {dimension_numbers = #tpu.dot_dimension_numbers<[1], [1], [0], [0], [0, 0, 1, 0], [], []>} : vector<24x8xf32>, vector<64x8xf32>, vector<24x64xf32> -> vector<24x64xf32>
    %cst_160 = arith.constant 0.000000e+00 : f32
    %418 = vector.broadcast %cst_160 : f32 to vector<24x64xf32>
    %419 = arith.cmpf ogt, %375, %418 : vector<24x64xf32>
    %cst_161 = arith.constant 0.000000e+00 : f32
    %420 = vector.broadcast %cst_161 : f32 to vector<24x64xf32>
    %421 = arith.select %419, %417, %420 : vector<24x64xi1>, vector<24x64xf32>
    %cst_162 = arith.constant dense<0.000000e+00> : vector<64x64xf32>
    %422 = tpu.matmul %372, %421, %cst_162 {dimension_numbers = #tpu.dot_dimension_numbers<[0], [0], [1], [1], [0, 1, 1, 1], [], []>} : vector<24x64xf32>, vector<24x64xf32>, vector<64x64xf32> -> vector<64x64xf32>
    %cst_163 = arith.constant dense<0.000000e+00> : vector<64xf32>
    %423 = vector.multi_reduction <add>, %421, %cst_163 [0] : vector<24x64xf32> to vector<64xf32>
    %424 = vector.shape_cast %423 : vector<64xf32> to vector<1x64xf32>
    %cst_164 = arith.constant dense<0.000000e+00> : vector<24x64xf32>
    %425 = tpu.matmul %421, %335, %cst_164 {dimension_numbers = #tpu.dot_dimension_numbers<[1], [1], [0], [0], [0, 0, 1, 0], [], []>} : vector<24x64xf32>, vector<64x64xf32>, vector<24x64xf32> -> vector<24x64xf32>
    %cst_165 = arith.constant 0.000000e+00 : f32
    %426 = vector.broadcast %cst_165 : f32 to vector<24x64xf32>
    %427 = arith.cmpf ogt, %370, %426 : vector<24x64xf32>
    %cst_166 = arith.constant 0.000000e+00 : f32
    %428 = vector.broadcast %cst_166 : f32 to vector<24x64xf32>
    %429 = arith.select %427, %425, %428 : vector<24x64xi1>, vector<24x64xf32>
    %cst_167 = arith.constant dense<0.000000e+00> : vector<32x64xf32>
    %430 = tpu.matmul %356, %429, %cst_167 {dimension_numbers = #tpu.dot_dimension_numbers<[0], [0], [1], [1], [0, 1, 1, 1], [], []>} : vector<24x32xf32>, vector<24x64xf32>, vector<32x64xf32> -> vector<32x64xf32>
    %cst_168 = arith.constant dense<0.000000e+00> : vector<64xf32>
    %431 = vector.multi_reduction <add>, %429, %cst_168 [0] : vector<24x64xf32> to vector<64xf32>
    %432 = vector.shape_cast %431 : vector<64xf32> to vector<1x64xf32>
    %433 = arith.cmpf one, %430, %430 : vector<32x64xf32>
    %cst_169 = arith.constant 0.000000e+00 : f32
    %434 = vector.broadcast %cst_169 : f32 to vector<32x64xf32>
    %435 = arith.select %433, %434, %430 : vector<32x64xi1>, vector<32x64xf32>
    %c0_170 = arith.constant 0 : index
    %c0_171 = arith.constant 0 : index
    %436 = vector.load %arg10[%c0_170, %c0_171] : memref<32x64xf32, #tpu.memory_space<vmem>>, vector<32x64xf32>
    %437 = arith.mulf %435, %436 : vector<32x64xf32>
    %438 = arith.subf %323, %437 : vector<32x64xf32>
    %439 = arith.cmpf one, %432, %432 : vector<1x64xf32>
    %cst_172 = arith.constant 0.000000e+00 : f32
    %440 = vector.broadcast %cst_172 : f32 to vector<1x64xf32>
    %441 = arith.select %439, %440, %432 : vector<1x64xi1>, vector<1x64xf32>
    %c0_173 = arith.constant 0 : index
    %c0_174 = arith.constant 0 : index
    %442 = vector.load %arg11[%c0_173, %c0_174] : memref<1x64xf32, #tpu.memory_space<vmem>>, vector<1x64xf32>
    %443 = arith.mulf %441, %442 : vector<1x64xf32>
    %444 = arith.subf %329, %443 : vector<1x64xf32>
    %445 = arith.cmpf one, %422, %422 : vector<64x64xf32>
    %cst_175 = arith.constant 0.000000e+00 : f32
    %446 = vector.broadcast %cst_175 : f32 to vector<64x64xf32>
    %447 = arith.select %445, %446, %422 : vector<64x64xi1>, vector<64x64xf32>
    %c0_176 = arith.constant 0 : index
    %c0_177 = arith.constant 0 : index
    %448 = vector.load %arg12[%c0_176, %c0_177] : memref<64x64xf32, #tpu.memory_space<vmem>>, vector<64x64xf32>
    %449 = arith.mulf %447, %448 : vector<64x64xf32>
    %450 = arith.subf %335, %449 : vector<64x64xf32>
    %451 = arith.cmpf one, %424, %424 : vector<1x64xf32>
    %cst_178 = arith.constant 0.000000e+00 : f32
    %452 = vector.broadcast %cst_178 : f32 to vector<1x64xf32>
    %453 = arith.select %451, %452, %424 : vector<1x64xi1>, vector<1x64xf32>
    %c0_179 = arith.constant 0 : index
    %c0_180 = arith.constant 0 : index
    %454 = vector.load %arg13[%c0_179, %c0_180] : memref<1x64xf32, #tpu.memory_space<vmem>>, vector<1x64xf32>
    %455 = arith.mulf %453, %454 : vector<1x64xf32>
    %456 = arith.subf %341, %455 : vector<1x64xf32>
    %457 = arith.cmpf one, %414, %414 : vector<64x8xf32>
    %cst_181 = arith.constant 0.000000e+00 : f32
    %458 = vector.broadcast %cst_181 : f32 to vector<64x8xf32>
    %459 = arith.select %457, %458, %414 : vector<64x8xi1>, vector<64x8xf32>
    %c0_182 = arith.constant 0 : index
    %c0_183 = arith.constant 0 : index
    %460 = vector.load %arg14[%c0_182, %c0_183] : memref<64x8xf32, #tpu.memory_space<vmem>>, vector<64x8xf32>
    %461 = arith.mulf %459, %460 : vector<64x8xf32>
    %462 = arith.subf %347, %461 : vector<64x8xf32>
    %463 = arith.cmpf one, %416, %416 : vector<1x8xf32>
    %cst_184 = arith.constant 0.000000e+00 : f32
    %464 = vector.broadcast %cst_184 : f32 to vector<1x8xf32>
    %465 = arith.select %463, %464, %416 : vector<1x8xi1>, vector<1x8xf32>
    %c0_185 = arith.constant 0 : index
    %c0_186 = arith.constant 0 : index
    %466 = vector.load %arg15[%c0_185, %c0_186] : memref<1x8xf32, #tpu.memory_space<vmem>>, vector<1x8xf32>
    %467 = arith.mulf %465, %466 : vector<1x8xf32>
    %468 = arith.subf %353, %467 : vector<1x8xf32>
    %c4_i32 = arith.constant 4 : i32
    %c0_187 = arith.constant 0 : index
    %c0_188 = arith.constant 0 : index
    %c0_189 = arith.constant 0 : index
    %469 = vector.load %arg2[%c0_187, %c0_188, %c0_189] : memref<4x24x32xf32, #tpu.memory_space<vmem>>, vector<1x24x32xf32>
    %470 = vector.shape_cast %469 : vector<1x24x32xf32> to vector<24x32xf32>
    %c0_190 = arith.constant 0 : index
    %c0_191 = arith.constant 0 : index
    %c0_192 = arith.constant 0 : index
    %471 = vector.load %arg3[%c0_190, %c0_191, %c0_192] : memref<4x24x2xf32, #tpu.memory_space<vmem>>, vector<1x24x2xf32>
    %472 = vector.shape_cast %471 : vector<1x24x2xf32> to vector<24x2xf32>
    %473 = vector.extract_strided_slice %472 {offsets = [0, 1], sizes = [24, 1], strides = [1, 1]} : vector<24x2xf32> to vector<24x1xf32>
    %474 = arith.fptosi %473 : vector<24x1xf32> to vector<24x1xi32>
    %475 = tpu.iota {dimensions = array<i32: 1>} : vector<24x8xi32>
    %476 = vector.broadcast %474 : vector<24x1xi32> to vector<24x8xi32>
    %477 = arith.cmpi eq, %475, %476 : vector<24x8xi32>
    %478 = arith.extui %477 : vector<24x8xi1> to vector<24x8xi32>
    %479 = arith.sitofp %478 : vector<24x8xi32> to vector<24x8xf32>
    %480 = vector.extract_strided_slice %472 {offsets = [0, 0], sizes = [24, 1], strides = [1, 1]} : vector<24x2xf32> to vector<24x1xf32>
    %cst_193 = arith.constant dense<0.000000e+00> : vector<24x64xf32>
    %481 = tpu.matmul %470, %438, %cst_193 {dimension_numbers = #tpu.dot_dimension_numbers<[1], [0], [0], [1], [0, 0, 1, 1], [], []>} : vector<24x32xf32>, vector<32x64xf32>, vector<24x64xf32> -> vector<24x64xf32>
    %482 = vector.broadcast %444 : vector<1x64xf32> to vector<24x64xf32>
    %483 = arith.addf %481, %482 : vector<24x64xf32>
    %cst_194 = arith.constant 0.000000e+00 : f32
    %484 = vector.broadcast %cst_194 : f32 to vector<24x64xf32>
    %485 = arith.maximumf %483, %484 : vector<24x64xf32>
    %cst_195 = arith.constant dense<0.000000e+00> : vector<24x64xf32>
    %486 = tpu.matmul %485, %450, %cst_195 {dimension_numbers = #tpu.dot_dimension_numbers<[1], [0], [0], [1], [0, 0, 1, 1], [], []>} : vector<24x64xf32>, vector<64x64xf32>, vector<24x64xf32> -> vector<24x64xf32>
    %487 = vector.broadcast %456 : vector<1x64xf32> to vector<24x64xf32>
    %488 = arith.addf %486, %487 : vector<24x64xf32>
    %cst_196 = arith.constant 0.000000e+00 : f32
    %489 = vector.broadcast %cst_196 : f32 to vector<24x64xf32>
    %490 = arith.maximumf %488, %489 : vector<24x64xf32>
    %cst_197 = arith.constant dense<0.000000e+00> : vector<24x8xf32>
    %491 = tpu.matmul %490, %462, %cst_197 {dimension_numbers = #tpu.dot_dimension_numbers<[1], [0], [0], [1], [0, 0, 1, 1], [], []>} : vector<24x64xf32>, vector<64x8xf32>, vector<24x8xf32> -> vector<24x8xf32>
    %492 = vector.broadcast %468 : vector<1x8xf32> to vector<24x8xf32>
    %493 = arith.addf %491, %492 : vector<24x8xf32>
    %494 = arith.mulf %493, %479 : vector<24x8xf32>
    %cst_198 = arith.constant dense<0.000000e+00> : vector<24xf32>
    %495 = vector.multi_reduction <add>, %494, %cst_198 [1] : vector<24x8xf32> to vector<24xf32>
    %496 = vector.shape_cast %495 : vector<24xf32> to vector<24x1xf32>
    %c4 = arith.constant 4 : index
    %497 = memref.load %arg0[%c4] : memref<5xi32, #tpu.memory_space<smem>>
    %498 = vector.broadcast %497 : i32 to vector<24x1xi32>
    %499 = arith.cmpi slt, %0, %498 : vector<24x1xi32>
    %500 = arith.subf %496, %480 : vector<24x1xf32>
    %cst_199 = arith.constant 0.000000e+00 : f32
    %501 = vector.broadcast %cst_199 : f32 to vector<24x1xf32>
    %502 = arith.select %499, %500, %501 : vector<24x1xi1>, vector<24x1xf32>
    %503 = arith.mulf %502, %502 : vector<24x1xf32>
    %504 = vector.shape_cast %503 : vector<24x1xf32> to vector<1x24x1xf32>
    %cst_200 = arith.constant dense<0.000000e+00> : vector<1xf32>
    %505 = vector.multi_reduction <add>, %504, %cst_200 [1, 2] : vector<1x24x1xf32> to vector<1xf32>
    %506 = vector.shape_cast %505 : vector<1xf32> to vector<1x1x1xf32>
    %507 = vector.extract %506[0, 0, 0] : f32 from vector<1x1x1xf32>
    %508 = vector.broadcast %507 : f32 to vector<1x1xf32>
    %c4_201 = arith.constant 4 : index
    %509 = memref.load %arg1[%c4_201] : memref<5xf32, #tpu.memory_space<smem>>
    %510 = vector.broadcast %509 : f32 to vector<1x1xf32>
    %511 = arith.mulf %508, %510 : vector<1x1xf32>
    %c4_i32_202 = arith.constant 4 : i32
    %512 = vector.broadcast %c4_i32_202 : i32 to vector<1x128xi32>
    %513 = arith.cmpi eq, %1, %512 : vector<1x128xi32>
    %514 = vector.shape_cast %511 : vector<1x1xf32> to vector<1x1xf32>
    %515 = vector.broadcast %514 : vector<1x1xf32> to vector<1x128xf32>
    %516 = arith.select %513, %515, %405 : vector<1x128xi1>, vector<1x128xf32>
    %c0_203 = arith.constant 0 : index
    %c0_204 = arith.constant 0 : index
    %517 = vector.load %arg16[%c0_203, %c0_204] : memref<1x128xf32, #tpu.memory_space<vmem>>, vector<1x128xf32>
    tpu.vector_store %arg16[%c0_203, %c0_204], %516 {strides = array<i32>} : memref<1x128xf32, #tpu.memory_space<vmem>>, vector<1x128xf32>,
    return
  }
}

</mosaic_0001>

<llo_original>
// kernel: _pallas_maml_forward.1
$region0: #{_pallas_maml_forward.1}
  #allocation0 [shape = 'u32[]', space=smem, size = 0x4, offset = 0x4, fixed_abs, tag = 'smem constant byte address 0x4 - core index']
  #allocation1 [shape = 'u32[144,128]{1,0:T(1,128)}', space=vmem, size = 0x12000, scoped, tag = 'internal scratch']
  %s0 = inlined_call_operand.hbm [shape: s32[5], index: 0, kind: input, shape index: {}]
  %s1 = inlined_call_operand.hbm [shape: f32[5], index: 1, kind: input, shape index: {}]
  %s2 = inlined_call_operand.vmem [shape: f32[4,24,32], index: 2, kind: input, shape index: {}]
  %s3 = inlined_call_operand.vmem [shape: f32[4,24,2], index: 3, kind: input, shape index: {}]
  %s4 = inlined_call_operand.hbm [shape: f32[32,64], index: 4, kind: input, shape index: {}]
  %s5 = inlined_call_operand.hbm [shape: f32[1,64], index: 5, kind: input, shape index: {}]
  %s6 = inlined_call_operand.vmem [shape: f32[64,64], index: 6, kind: input, shape index: {}]
  %s7 = inlined_call_operand.hbm [shape: f32[1,64], index: 7, kind: input, shape index: {}]
  %s8 = inlined_call_operand.vmem [shape: f32[64,8], index: 8, kind: input, shape index: {}]
  %s9 = inlined_call_operand.hbm [shape: f32[1,8], index: 9, kind: input, shape index: {}]
  %s10 = inlined_call_operand.vmem [shape: f32[32,64], index: 10, kind: input, shape index: {}]
  %s11 = inlined_call_operand.vmem [shape: f32[1,64], index: 11, kind: input, shape index: {}]
  %s12 = inlined_call_operand.vmem [shape: f32[64,64], index: 12, kind: input, shape index: {}]
  %s13 = inlined_call_operand.vmem [shape: f32[1,64], index: 13, kind: input, shape index: {}]
  %s14 = inlined_call_operand.vmem [shape: f32[64,8], index: 14, kind: input, shape index: {}]
  %s15 = inlined_call_operand.vmem [shape: f32[1,8], index: 15, kind: input, shape index: {}]
  %s16 = inlined_call_operand.hbm [shape: f32[1,128], index: 16, kind: output, shape index: {}]
  %s17 = sld [smem:[#allocation0]]
  $region98: #{_pallas_maml_forward.1} parent=0
    _
  %s19 = ssub.s32 1, %s17
  %s20 = scalar_select 0, %s19, %s17
  $region1: #{_pallas_maml_forward.1} parent=0
    #allocation2 [shape = 'u8[512]{0}', space=smem, size = 0x200, scoped, tag = 'input window, operand 0, single buffered']
    #allocation3 [shape = 's32[1]{0}', space=sflag, size = 0x4, scoped, tag = 'scoped memory for _pallas_maml_forward.1']
    #allocation4 [shape = 's32[1]{0}', space=sflag, size = 0x4, scoped, tag = 'scoped memory for _pallas_maml_forward.1']
    #allocation5 [shape = 's32[1]{0}', space=sflag, size = 0x4, scoped, tag = 'scoped memory for _pallas_maml_forward.1']
    #allocation6 [shape = 'u8[512]{0}', space=smem, size = 0x200, scoped, tag = 'input window, operand 1, single buffered']
    #allocation7 [shape = 's32[1]{0}', space=sflag, size = 0x4, scoped, tag = 'scoped memory for _pallas_maml_forward.1']
    #allocation8 [shape = 'u8[16384]{0}', space=vmem, size = 0x4000, scoped, tag = 'input window, operand 4, single buffered']
    #allocation9 [shape = 'u8[512]{0}', space=vmem, size = 0x400, scoped, tag = 'input window, operand 5, single buffered']
    #allocation10 [shape = 's32[1]{0}', space=sflag, size = 0x4, scoped, tag = 'scoped memory for _pallas_maml_forward.1']
    #allocation11 [shape = 'u8[512]{0}', space=vmem, size = 0x400, scoped, tag = 'input window, operand 7, single buffered']
    #allocation12 [shape = 'u8[512]{0}', space=vmem, size = 0x400, scoped, tag = 'input window, operand 9, single buffered']
    #allocation13 [shape = 's32[1]{0}', space=sflag, size = 0x4, scoped, tag = 'scoped memory for _pallas_maml_forward.1']
    #allocation14 [shape = 'u8[512]{0}', space=vmem, size = 0x400, scoped, tag = 'output window, operand 0, single buffered']
    %21 = vsyncpa [#allocation5], 0
    %22 = vsyncpa [#allocation7], 0
    %23 = vsyncpa [#allocation3], 0
    %24 = vsyncpa [#allocation10], 0
    %25 = vsyncpa [#allocation13], 0
    %26 = vsyncpa [#allocation4], 0
    // Predicated region
    $region2: #{_pallas_maml_forward.1} parent=1 // pred_check
      _
    $region3: #{_pallas_maml_forward.1} parent=1 // pred_check_branch
      %28 = sbr.rel (0) target = $region5
    $region4: #{_pallas_maml_forward.1} parent=1 // pred_region
      %s30 = ssub.s32 16, 16
      %31 = vsyncadd [#allocation5], %s30
      %34 = dma.hbm_to_smem %s0, 16, [#allocation2], [#allocation5]
    $region5: #{_pallas_maml_forward.1} parent=1 // pred_fallthru
      _
    // Predicated region
    $region6: #{_pallas_maml_forward.1} parent=1 // pred_check
      _
    $region7: #{_pallas_maml_forward.1} parent=1 // pred_check_branch
      %36 = sbr.rel (0) target = $region9
    $region8: #{_pallas_maml_forward.1} parent=1 // pred_region
      %s38 = ssub.s32 16, 16
      %39 = vsyncadd [#allocation7], %s38
      %42 = dma.hbm_to_smem %s1, 16, [#allocation6], [#allocation7]
    $region9: #{_pallas_maml_forward.1} parent=1 // pred_fallthru
      _
    // Predicated region
    $region10: #{_pallas_maml_forward.1} parent=1 // pred_check
      _
    $region11: #{_pallas_maml_forward.1} parent=1 // pred_check_branch
      %44 = sbr.rel (0) target = $region13
    $region12: #{_pallas_maml_forward.1} parent=1 // pred_region
      _
    $region13: #{_pallas_maml_forward.1} parent=1 // pred_fallthru
      _
    // Predicated region
    $region14: #{_pallas_maml_forward.1} parent=1 // pred_check
      _
    $region15: #{_pallas_maml_forward.1} parent=1 // pred_check_branch
      %46 = sbr.rel (0) target = $region17
    $region16: #{_pallas_maml_forward.1} parent=1 // pred_region
      _
    $region17: #{_pallas_maml_forward.1} parent=1 // pred_fallthru
      _
    // Predicated region
    $region18: #{_pallas_maml_forward.1} parent=1 // pred_check
      _
    $region19: #{_pallas_maml_forward.1} parent=1 // pred_check_branch
      %48 = sbr.rel (0) target = $region21
    $region20: #{_pallas_maml_forward.1} parent=1 // pred_region
      %s50 = ssub.s32 512, 512
      %51 = vsyncadd [#allocation3], %s50
      %s52 = sshll.u32 [#allocation8], 4
      %s53 = int_to_ptr.vmem [resolvable:$true] %s52
      %58 = dma.hbm_to_vmem [thread:$0]  %s4, 512, %s53, [#allocation3], 128, 128, 8
    $region21: #{_pallas_maml_forward.1} parent=1 // pred_fallthru
      _
    // Predicated region
    $region22: #{_pallas_maml_forward.1} parent=1 // pred_check
      _
    $region23: #{_pallas_maml_forward.1} parent=1 // pred_check_branch
      %60 = sbr.rel (0) target = $region25
    $region24: #{_pallas_maml_forward.1} parent=1 // pred_region
      %s62 = ssub.s32 16, 16
      %63 = vsyncadd [#allocation10], %s62
      %s65 = sshll.u32 [#allocation9], 4
      %s66 = int_to_ptr.vmem [resolvable:$true] %s65
      %68 = dma.hbm_to_vmem [thread:$0]  %s5, 16, %s66, [#allocation10]
    $region25: #{_pallas_maml_forward.1} parent=1 // pred_fallthru
      _
    // Predicated region
    $region26: #{_pallas_maml_forward.1} parent=1 // pred_check
      _
    $region27: #{_pallas_maml_forward.1} parent=1 // pred_check_branch
      %70 = sbr.rel (0) target = $region29
    $region28: #{_pallas_maml_forward.1} parent=1 // pred_region
      _
    $region29: #{_pallas_maml_forward.1} parent=1 // pred_fallthru
      _
    // Predicated region
    $region30: #{_pallas_maml_forward.1} parent=1 // pred_check
      _
    $region31: #{_pallas_maml_forward.1} parent=1 // pred_check_branch
      %72 = sbr.rel (0) target = $region33
    $region32: #{_pallas_maml_forward.1} parent=1 // pred_region
      %s74 = ssub.s32 16, 16
      %75 = vsyncadd [#allocation10], %s74
      %s77 = sshll.u32 [#allocation11], 4
      %s78 = int_to_ptr.vmem [resolvable:$true] %s77
      %80 = dma.hbm_to_vmem [thread:$0]  %s7, 16, %s78, [#allocation10]
    $region33: #{_pallas_maml_forward.1} parent=1 // pred_fallthru
      _
    // Predicated region
    $region34: #{_pallas_maml_forward.1} parent=1 // pred_check
      _
    $region35: #{_pallas_maml_forward.1} parent=1 // pred_check_branch
      %82 = sbr.rel (0) target = $region37
    $region36: #{_pallas_maml_forward.1} parent=1 // pred_region
      _
    $region37: #{_pallas_maml_forward.1} parent=1 // pred_fallthru
      _
    // Predicated region
    $region38: #{_pallas_maml_forward.1} parent=1 // pred_check
      _
    $region39: #{_pallas_maml_forward.1} parent=1 // pred_check_branch
      %84 = sbr.rel (0) target = $region41
    $region40: #{_pallas_maml_forward.1} parent=1 // pred_region
      %s86 = ssub.s32 16, 16
      %87 = vsyncadd [#allocation13], %s86
      %s89 = sshll.u32 [#allocation12], 4
      %s90 = int_to_ptr.vmem [resolvable:$true] %s89
      %92 = dma.hbm_to_vmem [thread:$0]  %s9, 16, %s90, [#allocation13]
    $region41: #{_pallas_maml_forward.1} parent=1 // pred_fallthru
      _
    // Predicated region
    $region42: #{_pallas_maml_forward.1} parent=1 // pred_check
      _
    $region43: #{_pallas_maml_forward.1} parent=1 // pred_check_branch
      %94 = sbr.rel (0) target = $region45
    $region44: #{_pallas_maml_forward.1} parent=1 // pred_region
      _
    $region45: #{_pallas_maml_forward.1} parent=1 // pred_fallthru
      _
    // Predicated region
    $region46: #{_pallas_maml_forward.1} parent=1 // pred_check
      _
    $region47: #{_pallas_maml_forward.1} parent=1 // pred_check_branch
      %96 = sbr.rel (0) target = $region49
    $region48: #{_pallas_maml_forward.1} parent=1 // pred_region
      _
    $region49: #{_pallas_maml_forward.1} parent=1 // pred_fallthru
      _
    // Predicated region
    $region50: #{_pallas_maml_forward.1} parent=1 // pred_check
      _
    $region51: #{_pallas_maml_forward.1} parent=1 // pred_check_branch
      %98 = sbr.rel (0) target = $region53
    $region52: #{_pallas_maml_forward.1} parent=1 // pred_region
      _
    $region53: #{_pallas_maml_forward.1} parent=1 // pred_fallthru
      _
    // Predicated region
    $region54: #{_pallas_maml_forward.1} parent=1 // pred_check
      _
    $region55: #{_pallas_maml_forward.1} parent=1 // pred_check_branch
      %100 = sbr.rel (0) target = $region57
    $region56: #{_pallas_maml_forward.1} parent=1 // pred_region
      _
    $region57: #{_pallas_maml_forward.1} parent=1 // pred_fallthru
      _
    // Predicated region
    $region58: #{_pallas_maml_forward.1} parent=1 // pred_check
      _
    $region59: #{_pallas_maml_forward.1} parent=1 // pred_check_branch
      %102 = sbr.rel (0) target = $region61
    $region60: #{_pallas_maml_forward.1} parent=1 // pred_region
      _
    $region61: #{_pallas_maml_forward.1} parent=1 // pred_fallthru
      _
    // Predicated region
    $region62: #{_pallas_maml_forward.1} parent=1 // pred_check
      _
    $region63: #{_pallas_maml_forward.1} parent=1 // pred_check_branch
      %104 = sbr.rel (0) target = $region65
    $region64: #{_pallas_maml_forward.1} parent=1 // pred_region
      _
    $region65: #{_pallas_maml_forward.1} parent=1 // pred_fallthru
      _
    // Predicated region
    $region66: #{_pallas_maml_forward.1} parent=1 // pred_check
      _
    $region67: #{_pallas_maml_forward.1} parent=1 // pred_check_branch
      %106 = sbr.rel (0) target = $region69
    $region68: #{_pallas_maml_forward.1} parent=1 // pred_region
      %107 = dma.done [#allocation5], 16
    $region69: #{_pallas_maml_forward.1} parent=1 // pred_fallthru
      _
    // Predicated region
    $region70: #{_pallas_maml_forward.1} parent=1 // pred_check
      _
    $region71: #{_pallas_maml_forward.1} parent=1 // pred_check_branch
      %109 = sbr.rel (0) target = $region73
    $region72: #{_pallas_maml_forward.1} parent=1 // pred_region
      %110 = dma.done [#allocation7], 16
    $region73: #{_pallas_maml_forward.1} parent=1 // pred_fallthru
      _
    // Predicated region
    $region74: #{_pallas_maml_forward.1} parent=1 // pred_check
      _
    $region75: #{_pallas_maml_forward.1} parent=1 // pred_check_branch
      %112 = sbr.rel (0) target = $region77
    $region76: #{_pallas_maml_forward.1} parent=1 // pred_region
      %113 = dma.done [#allocation3], 512
    $region77: #{_pallas_maml_forward.1} parent=1 // pred_fallthru
      _
    // Predicated region
    $region78: #{_pallas_maml_forward.1} parent=1 // pred_check
      _
    $region79: #{_pallas_maml_forward.1} parent=1 // pred_check_branch
      %115 = sbr.rel (0) target = $region81
    $region80: #{_pallas_maml_forward.1} parent=1 // pred_region
      %116 = dma.done [#allocation10], 16
    $region81: #{_pallas_maml_forward.1} parent=1 // pred_fallthru
      _
    // Predicated region
    $region82: #{_pallas_maml_forward.1} parent=1 // pred_check
      _
    $region83: #{_pallas_maml_forward.1} parent=1 // pred_check_branch
      %118 = sbr.rel (0) target = $region85
    $region84: #{_pallas_maml_forward.1} parent=1 // pred_region
      %119 = dma.done [#allocation10], 16
    $region85: #{_pallas_maml_forward.1} parent=1 // pred_fallthru
      _
    // Predicated region
    $region86: #{_pallas_maml_forward.1} parent=1 // pred_check
      _
    $region87: #{_pallas_maml_forward.1} parent=1 // pred_check_branch
      %121 = sbr.rel (0) target = $region89
    $region88: #{_pallas_maml_forward.1} parent=1 // pred_region
      %122 = dma.done [#allocation13], 16
    $region89: #{_pallas_maml_forward.1} parent=1 // pred_fallthru
      _
    %123 = sfence
    %v124 = vlaneseq
    %v125 = vshrl.u32 %v124, 7
    %v126 = vadd.s32 %v125, 8
    %v127 = vadd.s32 %v125, 16
    %v128 = vlaneseq
    %v129 = vand.u32 %v128, 127
    %v130 = vld [vmem:[#allocation8] sm:$0xff]
    %v131 = vld [vmem:[#allocation8 + $0x8] sm:$0xff]
    %v132 = vld [vmem:[#allocation8 + $0x10] sm:$0xff]
    %v133 = vld [vmem:[#allocation8 + $0x18] sm:$0xff]
    %v134 = vld [vmem:[#allocation9] sm:$0x1]
    %v135 = vld [vmem:[%s6] sm:$0xff]
    %v136 = vld [vmem:[%s6 + $0x8] sm:$0xff]
    %v137 = vld [vmem:[%s6 + $0x10] sm:$0xff]
    %v138 = vld [vmem:[%s6 + $0x18] sm:$0xff]
    %v139 = vld [vmem:[%s6 + $0x20] sm:$0xff]
    %v140 = vld [vmem:[%s6 + $0x28] sm:$0xff]
    %v141 = vld [vmem:[%s6 + $0x30] sm:$0xff]
    %v142 = vld [vmem:[%s6 + $0x38] sm:$0xff]
    %v143 = vld [vmem:[#allocation11] sm:$0x1]
    %v144 = vld [vmem:[%s8] sm:$0xff]
    %v145 = vld [vmem:[%s8 + $0x8] sm:$0xff]
    %v146 = vld [vmem:[%s8 + $0x10] sm:$0xff]
    %v147 = vld [vmem:[%s8 + $0x18] sm:$0xff]
    %v148 = vld [vmem:[%s8 + $0x20] sm:$0xff]
    %v149 = vld [vmem:[%s8 + $0x28] sm:$0xff]
    %v150 = vld [vmem:[%s8 + $0x30] sm:$0xff]
    %v151 = vld [vmem:[%s8 + $0x38] sm:$0xff]
    %v152 = vld [vmem:[#allocation12] sm:$0x1]
    %v153 = vld [vmem:[%s2] sm:$0xff]
    %v154 = vld [vmem:[%s2 + $0x8] sm:$0xff]
    %v155 = vld [vmem:[%s2 + $0x10] sm:$0xff]
    %v156 = vld [vmem:[%s3] sm:$0xff]
    %v157 = vld [vmem:[%s3 + $0x8] sm:$0xff]
    %v158 = vld [vmem:[%s3 + $0x10] sm:$0xff]
    %v159 = vcvt.f32.s32.to.zero.pseudo %v156
    %v160 = vcvt.f32.s32.to.zero.pseudo %v157
    %v161 = vcvt.f32.s32.to.zero.pseudo %v158
    %162 = vset.pattern.permute.xlu0 1
    %163 = vperm.xlu0 %162, %v159
    %v164 = vpop.permute.xlu0 %163
    %165 = vset.pattern.permute.xlu0 1
    %166 = vperm.xlu0 %165, %v160
    %v167 = vpop.permute.xlu0 %166
    %168 = vset.pattern.permute.xlu0 1
    %169 = vperm.xlu0 %168, %v161
    %v170 = vpop.permute.xlu0 %169
    %vm171 = vcmp.eq.s32.totalorder %v129, %v164
    %vm172 = vcmp.eq.s32.totalorder %v129, %v167
    %vm173 = vcmp.eq.s32.totalorder %v129, %v170
    %v174 = vsel %vm171, 1, 0
    %v175 = vsel %vm172, 1, 0
    %v176 = vsel %vm173, 1, 0
    %v177 = vcvt.s32.f32 %v174
    %v178 = vcvt.s32.f32 %v175
    %v179 = vcvt.s32.f32 %v176
    %v181 = vlaneseq
    %v182 = vshrl.u32 %v181, 7
    %v183 = vsub.s32 0, %v182
    %v184 = vrot.slane %v134, %v183
    %vm186 = vcmask 261120
    %v188 = vsel %vm186, %v153, 0
    %v191 = vsel %vm186, %v154, 0
    %v194 = vsel %vm186, %v155, 0
    %196 = vmatprep.subr.mxu0 0.0
    %197 = vmatpush1.msra.mxu0 0.0
    %198 = vmatprep.subr.mxu0 0.0
    %199 = vmatpush1.msra.mxu0 0.0
    %200 = vmatprep.subr.mxu0 0.0
    %201 = vmatpush1.msra.mxu0 0.0
    %202 = vmatprep.subr.mxu0 0.0
    %203 = vmatpush1.msra.mxu0 0.0
    %204 = vmatprep.subr.mxu0 0.0
    %205 = vmatpush1.msra.mxu0 0.0
    %206 = vmatprep.subr.mxu0 0.0
    %207 = vmatpush1.msra.mxu0 0.0
    %208 = vmatprep.subr.mxu0 0.0
    %209 = vmatpush1.msra.mxu0 0.0
    %210 = vmatprep.subr.mxu0 0.0
    %211 = vmatpush1.msra.mxu0 0.0
    %212 = vmatprep.subr.mxu0 0.0
    %213 = vmatpush1.msra.mxu0 0.0
    %214 = vmatprep.subr.mxu0 0.0
    %215 = vmatpush1.msra.mxu0 0.0
    %216 = vmatprep.subr.mxu0 0.0
    %217 = vmatpush1.msra.mxu0 0.0
    %218 = vmatprep.subr.mxu0 0.0
    %219 = vmatpush1.msra.mxu0 0.0
    %220 = vmatprep.subr.mxu0 0.0
    %221 = vmatpush1.msra.mxu0 %v133
    %222 = vmatprep.subr.mxu0 0.0
    %223 = vmatpush1.msra.mxu0 %v132
    %224 = vmatprep.subr.mxu0 0.0
    %225 = vmatpush1.msra.mxu0 %v131
    %226 = vmatprep.subr.mxu0 0.0
    %227 = vmatpush1.msra.mxu0 %v130
    %228 = vmatprep.subr.mxu0 0.0
    %229 = vmatpush2.msra.mxu0 0.0
    %230 = vmatprep.subr.mxu0 0.0
    %231 = vmatpush2.msra.mxu0 0.0
    %232 = vmatprep.subr.mxu0 0.0
    %233 = vmatpush2.msra.mxu0 0.0
    %234 = vmatprep.subr.mxu0 0.0
    %235 = vmatpush2.msra.mxu0 0.0
    %236 = vmatprep.subr.mxu0 0.0
    %237 = vmatpush2.msra.mxu0 0.0
    %238 = vmatprep.subr.mxu0 0.0
    %239 = vmatpush2.msra.mxu0 0.0
    %240 = vmatprep.subr.mxu0 0.0
    %241 = vmatpush2.msra.mxu0 0.0
    %242 = vmatprep.subr.mxu0 0.0
    %243 = vmatpush2.msra.mxu0 0.0
    %244 = vmatprep.subr.mxu0 0.0
    %245 = vmatpush2.msra.mxu0 0.0
    %246 = vmatprep.subr.mxu0 0.0
    %247 = vmatpush2.msra.mxu0 0.0
    %248 = vmatprep.subr.mxu0 0.0
    %249 = vmatpush2.msra.mxu0 0.0
    %250 = vmatprep.subr.mxu0 0.0
    %251 = vmatpush2.msra.mxu0 0.0
    %252 = vmatprep.subr.mxu0 0.0
    %253 = vmatpush2.msra.mxu0 0.0
    %254 = vmatprep.subr.mxu0 0.0
    %255 = vmatpush2.msra.mxu0 0.0
    %256 = vmatprep.subr.mxu0 0.0
    %257 = vmatpush2.msra.mxu0 0.0
    %258 = vmatprep.subr.mxu0 0.0
    %259 = vmatpush2.msra.mxu0 0.0
    %260 = vmatprep.mubr.f32.mxu0 0.0
    %261 = vmatmul.mubr.f32.gmra.mxu0 %v188
    %v262 = vpop.f32.mrf.mxu0
    %v263 = vadd.f32 %v184, %v262
    %v264 = vpop.f32.mrf.mxu0
    %265 = vmatprep.mubr.f32.mxu0 0.0
    %266 = vmatmul.mubr.f32.gmra.mxu0 %v191
    %v267 = vpop.f32.mrf.mxu0
    %v268 = vadd.f32 %v184, %v267
    %v269 = vpop.f32.mrf.mxu0
    %270 = vmatprep.mubr.f32.mxu0 0.0
    %271 = vmatmul.mubr.f32.gmra.mxu0 %v194
    %v272 = vpop.f32.mrf.mxu0
    %v273 = vadd.f32 %v184, %v272
    %v274 = vpop.f32.mrf.mxu0
    %275 = vdwg.mxu0
    %v276 = vmax.f32 %v263, 0.0
    %v277 = vmax.f32 %v268, 0.0
    %v278 = vmax.f32 %v273, 0.0
    %v280 = vlaneseq
    %v281 = vshrl.u32 %v280, 7
    %v282 = vsub.s32 0, %v281
    %v283 = vrot.slane %v143, %v282
    %vm285 = vcmask 523264
    %v287 = vsel %vm285, %v276, 0
    %v290 = vsel %vm285, %v277, 0
    %v293 = vsel %vm285, %v278, 0
    %295 = vmatprep.subr.mxu0 0.0
    %296 = vmatpush1.msra.mxu0 0.0
    %297 = vmatprep.subr.mxu0 0.0
    %298 = vmatpush1.msra.mxu0 0.0
    %299 = vmatprep.subr.mxu0 0.0
    %300 = vmatpush1.msra.mxu0 0.0
    %301 = vmatprep.subr.mxu0 0.0
    %302 = vmatpush1.msra.mxu0 0.0
    %303 = vmatprep.subr.mxu0 0.0
    %304 = vmatpush1.msra.mxu0 0.0
    %305 = vmatprep.subr.mxu0 0.0
    %306 = vmatpush1.msra.mxu0 0.0
    %307 = vmatprep.subr.mxu0 0.0
    %308 = vmatpush1.msra.mxu0 0.0
    %309 = vmatprep.subr.mxu0 0.0
    %310 = vmatpush1.msra.mxu0 0.0
    %311 = vmatprep.subr.mxu0 0.0
    %312 = vmatpush1.msra.mxu0 %v142
    %313 = vmatprep.subr.mxu0 0.0
    %314 = vmatpush1.msra.mxu0 %v141
    %315 = vmatprep.subr.mxu0 0.0
    %316 = vmatpush1.msra.mxu0 %v140
    %317 = vmatprep.subr.mxu0 0.0
    %318 = vmatpush1.msra.mxu0 %v139
    %319 = vmatprep.subr.mxu0 0.0
    %320 = vmatpush1.msra.mxu0 %v138
    %321 = vmatprep.subr.mxu0 0.0
    %322 = vmatpush1.msra.mxu0 %v137
    %323 = vmatprep.subr.mxu0 0.0
    %324 = vmatpush1.msra.mxu0 %v136
    %325 = vmatprep.subr.mxu0 0.0
    %326 = vmatpush1.msra.mxu0 %v135
    %327 = vmatprep.subr.mxu0 0.0
    %328 = vmatpush2.msra.mxu0 0.0
    %329 = vmatprep.subr.mxu0 0.0
    %330 = vmatpush2.msra.mxu0 0.0
    %331 = vmatprep.subr.mxu0 0.0
    %332 = vmatpush2.msra.mxu0 0.0
    %333 = vmatprep.subr.mxu0 0.0
    %334 = vmatpush2.msra.mxu0 0.0
    %335 = vmatprep.subr.mxu0 0.0
    %336 = vmatpush2.msra.mxu0 0.0
    %337 = vmatprep.subr.mxu0 0.0
    %338 = vmatpush2.msra.mxu0 0.0
    %339 = vmatprep.subr.mxu0 0.0
    %340 = vmatpush2.msra.mxu0 0.0
    %341 = vmatprep.subr.mxu0 0.0
    %342 = vmatpush2.msra.mxu0 0.0
    %343 = vmatprep.subr.mxu0 0.0
    %344 = vmatpush2.msra.mxu0 0.0
    %345 = vmatprep.subr.mxu0 0.0
    %346 = vmatpush2.msra.mxu0 0.0
    %347 = vmatprep.subr.mxu0 0.0
    %348 = vmatpush2.msra.mxu0 0.0
    %349 = vmatprep.subr.mxu0 0.0
    %350 = vmatpush2.msra.mxu0 0.0
    %351 = vmatprep.subr.mxu0 0.0
    %352 = vmatpush2.msra.mxu0 0.0
    %353 = vmatprep.subr.mxu0 0.0
    %354 = vmatpush2.msra.mxu0 0.0
    %355 = vmatprep.subr.mxu0 0.0
    %356 = vmatpush2.msra.mxu0 0.0
    %357 = vmatprep.subr.mxu0 0.0
    %358 = vmatpush2.msra.mxu0 0.0
    %359 = vmatprep.mubr.f32.mxu0 0.0
    %360 = vmatmul.mubr.f32.gmra.mxu0 %v287
    %v361 = vpop.f32.mrf.mxu0
    %v362 = vadd.f32 %v283, %v361
    %v363 = vpop.f32.mrf.mxu0
    %364 = vmatprep.mubr.f32.mxu0 0.0
    %365 = vmatmul.mubr.f32.gmra.mxu0 %v290
    %v366 = vpop.f32.mrf.mxu0
    %v367 = vadd.f32 %v283, %v366
    %v368 = vpop.f32.mrf.mxu0
    %369 = vmatprep.mubr.f32.mxu0 0.0
    %370 = vmatmul.mubr.f32.gmra.mxu0 %v293
    %v371 = vpop.f32.mrf.mxu0
    %v372 = vadd.f32 %v283, %v371
    %v373 = vpop.f32.mrf.mxu0
    %374 = vdwg.mxu0
    %v375 = vmax.f32 %v362, 0.0
    %v376 = vmax.f32 %v367, 0.0
    %v377 = vmax.f32 %v372, 0.0
    %v379 = vlaneseq
    %v380 = vshrl.u32 %v379, 7
    %v381 = vsub.s32 0, %v380
    %v382 = vrot.slane %v152, %v381
    %v385 = vsel %vm285, %v375, 0
    %v388 = vsel %vm285, %v376, 0
    %v391 = vsel %vm285, %v377, 0
    %393 = vmatprep.subr.mxu0 0.0
    %394 = vmatpush1.msra.mxu0 0.0
    %395 = vmatprep.subr.mxu0 0.0
    %396 = vmatpush1.msra.mxu0 0.0
    %397 = vmatprep.subr.mxu0 0.0
    %398 = vmatpush1.msra.mxu0 0.0
    %399 = vmatprep.subr.mxu0 0.0
    %400 = vmatpush1.msra.mxu0 0.0
    %401 = vmatprep.subr.mxu0 0.0
    %402 = vmatpush1.msra.mxu0 0.0
    %403 = vmatprep.subr.mxu0 0.0
    %404 = vmatpush1.msra.mxu0 0.0
    %405 = vmatprep.subr.mxu0 0.0
    %406 = vmatpush1.msra.mxu0 0.0
    %407 = vmatprep.subr.mxu0 0.0
    %408 = vmatpush1.msra.mxu0 0.0
    %409 = vmatprep.subr.mxu0 0.0
    %410 = vmatpush1.msra.mxu0 %v151
    %411 = vmatprep.subr.mxu0 0.0
    %412 = vmatpush1.msra.mxu0 %v150
    %413 = vmatprep.subr.mxu0 0.0
    %414 = vmatpush1.msra.mxu0 %v149
    %415 = vmatprep.subr.mxu0 0.0
    %416 = vmatpush1.msra.mxu0 %v148
    %417 = vmatprep.subr.mxu0 0.0
    %418 = vmatpush1.msra.mxu0 %v147
    %419 = vmatprep.subr.mxu0 0.0
    %420 = vmatpush1.msra.mxu0 %v146
    %421 = vmatprep.subr.mxu0 0.0
    %422 = vmatpush1.msra.mxu0 %v145
    %423 = vmatprep.subr.mxu0 0.0
    %424 = vmatpush1.msra.mxu0 %v144
    %425 = vmatprep.subr.mxu0 0.0
    %426 = vmatpush2.msra.mxu0 0.0
    %427 = vmatprep.subr.mxu0 0.0
    %428 = vmatpush2.msra.mxu0 0.0
    %429 = vmatprep.subr.mxu0 0.0
    %430 = vmatpush2.msra.mxu0 0.0
    %431 = vmatprep.subr.mxu0 0.0
    %432 = vmatpush2.msra.mxu0 0.0
    %433 = vmatprep.subr.mxu0 0.0
    %434 = vmatpush2.msra.mxu0 0.0
    %435 = vmatprep.subr.mxu0 0.0
    %436 = vmatpush2.msra.mxu0 0.0
    %437 = vmatprep.subr.mxu0 0.0
    %438 = vmatpush2.msra.mxu0 0.0
    %439 = vmatprep.subr.mxu0 0.0
    %440 = vmatpush2.msra.mxu0 0.0
    %441 = vmatprep.subr.mxu0 0.0
    %442 = vmatpush2.msra.mxu0 0.0
    %443 = vmatprep.subr.mxu0 0.0
    %444 = vmatpush2.msra.mxu0 0.0
    %445 = vmatprep.subr.mxu0 0.0
    %446 = vmatpush2.msra.mxu0 0.0
    %447 = vmatprep.subr.mxu0 0.0
    %448 = vmatpush2.msra.mxu0 0.0
    %449 = vmatprep.subr.mxu0 0.0
    %450 = vmatpush2.msra.mxu0 0.0
    %451 = vmatprep.subr.mxu0 0.0
    %452 = vmatpush2.msra.mxu0 0.0
    %453 = vmatprep.subr.mxu0 0.0
    %454 = vmatpush2.msra.mxu0 0.0
    %455 = vmatprep.subr.mxu0 0.0
    %456 = vmatpush2.msra.mxu0 0.0
    %457 = vmatprep.mubr.f32.mxu0 0.0
    %458 = vmatmul.mubr.f32.gmra.mxu0 %v385
    %v459 = vpop.f32.mrf.mxu0
    %v460 = vadd.f32 %v382, %v459
    %v461 = vpop.f32.mrf.mxu0
    %462 = vmatprep.mubr.f32.mxu0 0.0
    %463 = vmatmul.mubr.f32.gmra.mxu0 %v388
    %v464 = vpop.f32.mrf.mxu0
    %v465 = vadd.f32 %v382, %v464
    %v466 = vpop.f32.mrf.mxu0
    %467 = vmatprep.mubr.f32.mxu0 0.0
    %468 = vmatmul.mubr.f32.gmra.mxu0 %v391
    %v469 = vpop.f32.mrf.mxu0
    %v470 = vadd.f32 %v382, %v469
    %v471 = vpop.f32.mrf.mxu0
    %472 = vdwg.mxu0
    %v473 = vmul.f32 %v460, %v177
    %v474 = vmul.f32 %v465, %v178
    %v475 = vmul.f32 %v470, %v179
    %vm476 = vcmask 64512
    %v477 = vsel %vm476, %v473, 0.0
    %478 = vadd.xlane.f32.xlu0 %v477
    %v479 = vpop.xlane.xlu0 %478
    %v480 = vsel %vm476, %v474, 0.0
    %481 = vadd.xlane.f32.xlu0 %v480
    %v482 = vpop.xlane.xlu0 %481
    %v483 = vsel %vm476, %v475, 0.0
    %484 = vadd.xlane.f32.xlu0 %v483
    %v485 = vpop.xlane.xlu0 %484
    %v486 = vsub.f32 %v479, %v156
    %v487 = vsub.f32 %v482, %v157
    %v488 = vsub.f32 %v485, %v158
    %s489 = sld [smem:[#allocation2]]
    %v490 = vstv %s489
    %vm491 = vcmp.lt.s32.totalorder %v125, %v490
    %vm492 = vcmp.lt.s32.totalorder %v126, %v490
    %vm493 = vcmp.lt.s32.totalorder %v127, %v490
    %v494 = vsel %vm491, %v486, 0.0
    %v495 = vsel %vm492, %v487, 0.0
    %v496 = vsel %vm493, %v488, 0.0
    %v497 = vmul.f32 %v494, %v494
    %v498 = vmul.f32 %v495, %v495
    %v499 = vmul.f32 %v496, %v496
    %vm500 = vcmask 7168
    %v501 = vsel %vm500, %v497, 0.0
    %v502 = vsel %vm500, %v498, 0.0
    %v503 = vadd.f32 %v501, %v502
    %v504 = vsel %vm500, %v499, 0.0
    %v505 = vadd.f32 %v503, %v504
    %506 = vadd.xlane.f32.xlu0 %v505
    %v507 = vpop.xlane.xlu0 %506
    %v508 = vrot.slane %v507, 4
    %v509 = vadd.f32 %v507, %v508
    %v510 = vrot.slane %v509, 2
    %v511 = vadd.f32 %v509, %v510
    %v512 = vrot.slane %v511, 1
    %v513 = vadd.f32 %v511, %v512
    %s514 = vtos %v513
    %v515 = vstv %s514
    %s516 = sld [smem:[#allocation6]]
    %v517 = vstv %s516
    %v518 = vmul.f32 %v515, %v517
    %vm519 = vcmp.eq.s32.totalorder %v129, 0
    %v520 = vsel %vm519, %v518, 0.0
    %vm521 = vcmp.ge.s32.totalorder %v125, 16
    %vm522 = vcmp.ge.s32.totalorder %v126, 16
    %vm523 = vcmp.ge.s32.totalorder %v127, 16
    %v524 = vsel %vm521, %v486, 0.0
    %v525 = vsel %vm522, %v487, 0.0
    %v526 = vsel %vm523, %v488, 0.0
    %v527 = vmul.f32 %v524, 0.25
    %v528 = vmul.f32 %v525, 0.25
    %v529 = vmul.f32 %v526, 0.25
    %531 = vset.pattern.permute.xlu0 0
    %532 = vperm.xlu0 %531, %v527
    %v533 = vpop.permute.xlu0 %532
    %536 = vset.pattern.permute.xlu0 0
    %537 = vperm.xlu0 %536, %v528
    %v538 = vpop.permute.xlu0 %537
    %541 = vset.pattern.permute.xlu0 0
    %542 = vperm.xlu0 %541, %v529
    %v543 = vpop.permute.xlu0 %542
    %v545 = vmul.f32 %v533, %v177
    %v546 = vmul.f32 %v538, %v178
    %v547 = vmul.f32 %v543, %v179
    %548 = vxpose.xlu0.b32.start [1/16] %v375, 128
    %549 = vxpose.xlu0.b32.cont [2/16] %v376, 128
    %550 = vxpose.xlu0.b32.cont [3/16] %v377, 128
    %551 = vxpose.xlu0.b32.cont [4/16] 0.0, 128
    %552 = vxpose.xlu0.b32.cont [5/16] 0.0, 128
    %553 = vxpose.xlu0.b32.cont [6/16] 0.0, 128
    %554 = vxpose.xlu0.b32.cont [7/16] 0.0, 128
    %555 = vxpose.xlu0.b32.cont [8/16] 0.0, 128
    %556 = vxpose.xlu0.b32.cont [9/16] 0.0, 128
    %557 = vxpose.xlu0.b32.cont [10/16] 0.0, 128
    %558 = vxpose.xlu0.b32.cont [11/16] 0.0, 128
    %559 = vxpose.xlu0.b32.cont [12/16] 0.0, 128
    %560 = vxpose.xlu0.b32.cont [13/16] 0.0, 128
    %561 = vxpose.xlu0.b32.cont [14/16] 0.0, 128
    %562 = vxpose.xlu0.b32.cont [15/16] 0.0, 128
    %563 = vxpose.xlu0.b32.end [16/16] 0.0, 128
    %v564 = vpop.trf.xlu0
    %v565 = vpop.trf.xlu0
    %v566 = vpop.trf.xlu0
    %v567 = vpop.trf.xlu0
    %v568 = vpop.trf.xlu0
    %v569 = vpop.trf.xlu0
    %v570 = vpop.trf.xlu0
    %v571 = vpop.trf.xlu0
    %v572 = vpop.trf.xlu0
    %v573 = vpop.trf.xlu0
    %v574 = vpop.trf.xlu0
    %v575 = vpop.trf.xlu0
    %v576 = vpop.trf.xlu0
    %v577 = vpop.trf.xlu0
    %v578 = vpop.trf.xlu0
    %v579 = vpop.trf.xlu0
    %vm580 = vcmask 195584
    %v582 = vsel %vm580, %v564, 0
    %v585 = vsel %vm580, %v565, 0
    %v588 = vsel %vm580, %v566, 0
    %v591 = vsel %vm580, %v567, 0
    %v594 = vsel %vm580, %v568, 0
    %v597 = vsel %vm580, %v569, 0
    %v600 = vsel %vm580, %v570, 0
    %v603 = vsel %vm580, %v571, 0
    %605 = vmatprep.subr.mxu0 0.0
    %606 = vmatpush1.msra.mxu0 0.0
    %607 = vmatprep.subr.mxu0 0.0
    %608 = vmatpush1.msra.mxu0 0.0
    %609 = vmatprep.subr.mxu0 0.0
    %610 = vmatpush1.msra.mxu0 0.0
    %611 = vmatprep.subr.mxu0 0.0
    %612 = vmatpush1.msra.mxu0 0.0
    %613 = vmatprep.subr.mxu0 0.0
    %614 = vmatpush1.msra.mxu0 0.0
    %615 = vmatprep.subr.mxu0 0.0
    %616 = vmatpush1.msra.mxu0 0.0
    %617 = vmatprep.subr.mxu0 0.0
    %618 = vmatpush1.msra.mxu0 0.0
    %619 = vmatprep.subr.mxu0 0.0
    %620 = vmatpush1.msra.mxu0 0.0
    %621 = vmatprep.subr.mxu0 0.0
    %622 = vmatpush1.msra.mxu0 0.0
    %623 = vmatprep.subr.mxu0 0.0
    %624 = vmatpush1.msra.mxu0 0.0
    %625 = vmatprep.subr.mxu0 0.0
    %626 = vmatpush1.msra.mxu0 0.0
    %627 = vmatprep.subr.mxu0 0.0
    %628 = vmatpush1.msra.mxu0 0.0
    %629 = vmatprep.subr.mxu0 0.0
    %630 = vmatpush1.msra.mxu0 0.0
    %631 = vmatprep.subr.mxu0 0.0
    %632 = vmatpush1.msra.mxu0 %v547
    %633 = vmatprep.subr.mxu0 0.0
    %634 = vmatpush1.msra.mxu0 %v546
    %635 = vmatprep.subr.mxu0 0.0
    %636 = vmatpush1.msra.mxu0 %v545
    %637 = vmatprep.subr.mxu0 0.0
    %638 = vmatpush2.msra.mxu0 0.0
    %639 = vmatprep.subr.mxu0 0.0
    %640 = vmatpush2.msra.mxu0 0.0
    %641 = vmatprep.subr.mxu0 0.0
    %642 = vmatpush2.msra.mxu0 0.0
    %643 = vmatprep.subr.mxu0 0.0
    %644 = vmatpush2.msra.mxu0 0.0
    %645 = vmatprep.subr.mxu0 0.0
    %646 = vmatpush2.msra.mxu0 0.0
    %647 = vmatprep.subr.mxu0 0.0
    %648 = vmatpush2.msra.mxu0 0.0
    %649 = vmatprep.subr.mxu0 0.0
    %650 = vmatpush2.msra.mxu0 0.0
    %651 = vmatprep.subr.mxu0 0.0
    %652 = vmatpush2.msra.mxu0 0.0
    %653 = vmatprep.subr.mxu0 0.0
    %654 = vmatpush2.msra.mxu0 0.0
    %655 = vmatprep.subr.mxu0 0.0
    %656 = vmatpush2.msra.mxu0 0.0
    %657 = vmatprep.subr.mxu0 0.0
    %658 = vmatpush2.msra.mxu0 0.0
    %659 = vmatprep.subr.mxu0 0.0
    %660 = vmatpush2.msra.mxu0 0.0
    %661 = vmatprep.subr.mxu0 0.0
    %662 = vmatpush2.msra.mxu0 0.0
    %663 = vmatprep.subr.mxu0 0.0
    %664 = vmatpush2.msra.mxu0 0.0
    %665 = vmatprep.subr.mxu0 0.0
    %666 = vmatpush2.msra.mxu0 0.0
    %667 = vmatprep.subr.mxu0 0.0
    %668 = vmatpush2.msra.mxu0 0.0
    %669 = vmatprep.mubr.f32.mxu0 0.0
    %670 = vmatmul.mubr.f32.gmra.mxu0 %v582
    %v671 = vpop.f32.mrf.mxu0
    %v672 = vadd.f32 0.0, %v671
    %v673 = vpop.f32.mrf.mxu0
    %674 = vmatprep.mubr.f32.mxu0 0.0
    %675 = vmatmul.mubr.f32.gmra.mxu0 %v585
    %v676 = vpop.f32.mrf.mxu0
    %v677 = vadd.f32 0.0, %v676
    %v678 = vpop.f32.mrf.mxu0
    %679 = vmatprep.mubr.f32.mxu0 0.0
    %680 = vmatmul.mubr.f32.gmra.mxu0 %v588
    %v681 = vpop.f32.mrf.mxu0
    %v682 = vadd.f32 0.0, %v681
    %v683 = vpop.f32.mrf.mxu0
    %684 = vmatprep.mubr.f32.mxu0 0.0
    %685 = vmatmul.mubr.f32.gmra.mxu0 %v591
    %v686 = vpop.f32.mrf.mxu0
    %v687 = vadd.f32 0.0, %v686
    %v688 = vpop.f32.mrf.mxu0
    %689 = vmatprep.mubr.f32.mxu0 0.0
    %690 = vmatmul.mubr.f32.gmra.mxu0 %v594
    %v691 = vpop.f32.mrf.mxu0
    %v692 = vadd.f32 0.0, %v691
    %v693 = vpop.f32.mrf.mxu0
    %694 = vmatprep.mubr.f32.mxu0 0.0
    %695 = vmatmul.mubr.f32.gmra.mxu0 %v597
    %v696 = vpop.f32.mrf.mxu0
    %v697 = vadd.f32 0.0, %v696
    %v698 = vpop.f32.mrf.mxu0
    %699 = vmatprep.mubr.f32.mxu0 0.0
    %700 = vmatmul.mubr.f32.gmra.mxu0 %v600
    %v701 = vpop.f32.mrf.mxu0
    %v702 = vadd.f32 0.0, %v701
    %v703 = vpop.f32.mrf.mxu0
    %704 = vmatprep.mubr.f32.mxu0 0.0
    %705 = vmatmul.mubr.f32.gmra.mxu0 %v603
    %v706 = vpop.f32.mrf.mxu0
    %v707 = vadd.f32 0.0, %v706
    %v708 = vpop.f32.mrf.mxu0
    %709 = vdwg.mxu0
    %v710 = vsel %vm476, %v545, 0.0
    %v711 = vsel %vm476, %v546, 0.0
    %v712 = vadd.f32 %v710, %v711
    %v713 = vsel %vm476, %v547, 0.0
    %v714 = vadd.f32 %v712, %v713
    %v715 = vrot.slane %v714, 4
    %v716 = vadd.f32 %v714, %v715
    %v717 = vrot.slane %v716, 2
    %v718 = vadd.f32 %v716, %v717
    %v719 = vrot.slane %v718, 1
    %v720 = vadd.f32 %v718, %v719
    %v722 = vsel %vm476, %v545, 0
    %v725 = vsel %vm476, %v546, 0
    %v728 = vsel %vm476, %v547, 0
    %v731 = vsel %vm476, %v144, 0
    %v734 = vsel %vm476, %v145, 0
    %v737 = vsel %vm476, %v146, 0
    %v740 = vsel %vm476, %v147, 0
    %v743 = vsel %vm476, %v148, 0
    %v746 = vsel %vm476, %v149, 0
    %v749 = vsel %vm476, %v150, 0
    %v752 = vsel %vm476, %v151, 0
    %754 = vmatprep.subr.mxu0 0.0
    %755 = vmatpush1.xpose.msra.mxu0 0.0
    %756 = vmatprep.subr.mxu0 0.0
    %757 = vmatpush1.xpose.msra.mxu0 0.0
    %758 = vmatprep.subr.mxu0 0.0
    %759 = vmatpush1.xpose.msra.mxu0 0.0
    %760 = vmatprep.subr.mxu0 0.0
    %761 = vmatpush1.xpose.msra.mxu0 0.0
    %762 = vmatprep.subr.mxu0 0.0
    %763 = vmatpush1.xpose.msra.mxu0 0.0
    %764 = vmatprep.subr.mxu0 0.0
    %765 = vmatpush1.xpose.msra.mxu0 0.0
    %766 = vmatprep.subr.mxu0 0.0
    %767 = vmatpush1.xpose.msra.mxu0 0.0
    %768 = vmatprep.subr.mxu0 0.0
    %769 = vmatpush1.xpose.msra.mxu0 0.0
    %770 = vmatprep.subr.mxu0 0.0
    %771 = vmatpush1.xpose.msra.mxu0 %v752
    %772 = vmatprep.subr.mxu0 0.0
    %773 = vmatpush1.xpose.msra.mxu0 %v749
    %774 = vmatprep.subr.mxu0 0.0
    %775 = vmatpush1.xpose.msra.mxu0 %v746
    %776 = vmatprep.subr.mxu0 0.0
    %777 = vmatpush1.xpose.msra.mxu0 %v743
    %778 = vmatprep.subr.mxu0 0.0
    %779 = vmatpush1.xpose.msra.mxu0 %v740
    %780 = vmatprep.subr.mxu0 0.0
    %781 = vmatpush1.xpose.msra.mxu0 %v737
    %782 = vmatprep.subr.mxu0 0.0
    %783 = vmatpush1.xpose.msra.mxu0 %v734
    %784 = vmatprep.subr.mxu0 0.0
    %785 = vmatpush1.xpose.msra.mxu0 %v731
    %786 = vmatprep.subr.mxu0 0.0
    %787 = vmatpush2.xpose.msra.mxu0 0.0
    %788 = vmatprep.subr.mxu0 0.0
    %789 = vmatpush2.xpose.msra.mxu0 0.0
    %790 = vmatprep.subr.mxu0 0.0
    %791 = vmatpush2.xpose.msra.mxu0 0.0
    %792 = vmatprep.subr.mxu0 0.0
    %793 = vmatpush2.xpose.msra.mxu0 0.0
    %794 = vmatprep.subr.mxu0 0.0
    %795 = vmatpush2.xpose.msra.mxu0 0.0
    %796 = vmatprep.subr.mxu0 0.0
    %797 = vmatpush2.xpose.msra.mxu0 0.0
    %798 = vmatprep.subr.mxu0 0.0
    %799 = vmatpush2.xpose.msra.mxu0 0.0
    %800 = vmatprep.subr.mxu0 0.0
    %801 = vmatpush2.xpose.msra.mxu0 0.0
    %802 = vmatprep.subr.mxu0 0.0
    %803 = vmatpush2.xpose.msra.mxu0 0.0
    %804 = vmatprep.subr.mxu0 0.0
    %805 = vmatpush2.xpose.msra.mxu0 0.0
    %806 = vmatprep.subr.mxu0 0.0
    %807 = vmatpush2.xpose.msra.mxu0 0.0
    %808 = vmatprep.subr.mxu0 0.0
    %809 = vmatpush2.xpose.msra.mxu0 0.0
    %810 = vmatprep.subr.mxu0 0.0
    %811 = vmatpush2.xpose.msra.mxu0 0.0
    %812 = vmatprep.subr.mxu0 0.0
    %813 = vmatpush2.xpose.msra.mxu0 0.0
    %814 = vmatprep.subr.mxu0 0.0
    %815 = vmatpush2.xpose.msra.mxu0 0.0
    %816 = vmatprep.subr.mxu0 0.0
    %817 = vmatpush2.xpose.msra.mxu0 0.0
    %818 = vmatprep.mubr.f32.mxu0 0.0
    %819 = vmatmul.mubr.f32.gmra.mxu0 %v722
    %v820 = vpop.f32.mrf.mxu0
    %v821 = vadd.f32 0.0, %v820
    %v822 = vpop.f32.mrf.mxu0
    %823 = vmatprep.mubr.f32.mxu0 0.0
    %824 = vmatmul.mubr.f32.gmra.mxu0 %v725
    %v825 = vpop.f32.mrf.mxu0
    %v826 = vadd.f32 0.0, %v825
    %v827 = vpop.f32.mrf.mxu0
    %828 = vmatprep.mubr.f32.mxu0 0.0
    %829 = vmatmul.mubr.f32.gmra.mxu0 %v728
    %v830 = vpop.f32.mrf.mxu0
    %v831 = vadd.f32 0.0, %v830
    %v832 = vpop.f32.mrf.mxu0
    %833 = vdwg.mxu0
    %vm834 = vcmp.gt.f32.partialorder %v362, 0.0
    %vm835 = vcmp.gt.f32.partialorder %v367, 0.0
    %vm836 = vcmp.gt.f32.partialorder %v372, 0.0
    %v837 = vsel %vm834, %v821, 0.0
    %v838 = vsel %vm835, %v826, 0.0
    %v839 = vsel %vm836, %v831, 0.0
    %840 = vxpose.xlu0.b32.start [1/16] %v276, 128
    %841 = vxpose.xlu0.b32.cont [2/16] %v277, 128
    %842 = vxpose.xlu0.b32.cont [3/16] %v278, 128
    %843 = vxpose.xlu0.b32.cont [4/16] 0.0, 128
    %844 = vxpose.xlu0.b32.cont [5/16] 0.0, 128
    %845 = vxpose.xlu0.b32.cont [6/16] 0.0, 128
    %846 = vxpose.xlu0.b32.cont [7/16] 0.0, 128
    %847 = vxpose.xlu0.b32.cont [8/16] 0.0, 128
    %848 = vxpose.xlu0.b32.cont [9/16] 0.0, 128
    %849 = vxpose.xlu0.b32.cont [10/16] 0.0, 128
    %850 = vxpose.xlu0.b32.cont [11/16] 0.0, 128
    %851 = vxpose.xlu0.b32.cont [12/16] 0.0, 128
    %852 = vxpose.xlu0.b32.cont [13/16] 0.0, 128
    %853 = vxpose.xlu0.b32.cont [14/16] 0.0, 128
    %854 = vxpose.xlu0.b32.cont [15/16] 0.0, 128
    %855 = vxpose.xlu0.b32.end [16/16] 0.0, 128
    %v856 = vpop.trf.xlu0
    %v857 = vpop.trf.xlu0
    %v858 = vpop.trf.xlu0
    %v859 = vpop.trf.xlu0
    %v860 = vpop.trf.xlu0
    %v861 = vpop.trf.xlu0
    %v862 = vpop.trf.xlu0
    %v863 = vpop.trf.xlu0
    %v864 = vpop.trf.xlu0
    %v865 = vpop.trf.xlu0
    %v866 = vpop.trf.xlu0
    %v867 = vpop.trf.xlu0
    %v868 = vpop.trf.xlu0
    %v869 = vpop.trf.xlu0
    %v870 = vpop.trf.xlu0
    %v871 = vpop.trf.xlu0
    %v873 = vsel %vm580, %v856, 0
    %v876 = vsel %vm580, %v857, 0
    %v879 = vsel %vm580, %v858, 0
    %v882 = vsel %vm580, %v859, 0
    %v885 = vsel %vm580, %v860, 0
    %v888 = vsel %vm580, %v861, 0
    %v891 = vsel %vm580, %v862, 0
    %v894 = vsel %vm580, %v863, 0
    %896 = vmatprep.subr.mxu0 0.0
    %897 = vmatpush1.msra.mxu0 0.0
    %898 = vmatprep.subr.mxu0 0.0
    %899 = vmatpush1.msra.mxu0 0.0
    %900 = vmatprep.subr.mxu0 0.0
    %901 = vmatpush1.msra.mxu0 0.0
    %902 = vmatprep.subr.mxu0 0.0
    %903 = vmatpush1.msra.mxu0 0.0
    %904 = vmatprep.subr.mxu0 0.0
    %905 = vmatpush1.msra.mxu0 0.0
    %906 = vmatprep.subr.mxu0 0.0
    %907 = vmatpush1.msra.mxu0 0.0
    %908 = vmatprep.subr.mxu0 0.0
    %909 = vmatpush1.msra.mxu0 0.0
    %910 = vmatprep.subr.mxu0 0.0
    %911 = vmatpush1.msra.mxu0 0.0
    %912 = vmatprep.subr.mxu0 0.0
    %913 = vmatpush1.msra.mxu0 0.0
    %914 = vmatprep.subr.mxu0 0.0
    %915 = vmatpush1.msra.mxu0 0.0
    %916 = vmatprep.subr.mxu0 0.0
    %917 = vmatpush1.msra.mxu0 0.0
    %918 = vmatprep.subr.mxu0 0.0
    %919 = vmatpush1.msra.mxu0 0.0
    %920 = vmatprep.subr.mxu0 0.0
    %921 = vmatpush1.msra.mxu0 0.0
    %922 = vmatprep.subr.mxu0 0.0
    %923 = vmatpush1.msra.mxu0 %v839
    %924 = vmatprep.subr.mxu0 0.0
    %925 = vmatpush1.msra.mxu0 %v838
    %926 = vmatprep.subr.mxu0 0.0
    %927 = vmatpush1.msra.mxu0 %v837
    %928 = vmatprep.subr.mxu0 0.0
    %929 = vmatpush2.msra.mxu0 0.0
    %930 = vmatprep.subr.mxu0 0.0
    %931 = vmatpush2.msra.mxu0 0.0
    %932 = vmatprep.subr.mxu0 0.0
    %933 = vmatpush2.msra.mxu0 0.0
    %934 = vmatprep.subr.mxu0 0.0
    %935 = vmatpush2.msra.mxu0 0.0
    %936 = vmatprep.subr.mxu0 0.0
    %937 = vmatpush2.msra.mxu0 0.0
    %938 = vmatprep.subr.mxu0 0.0
    %939 = vmatpush2.msra.mxu0 0.0
    %940 = vmatprep.subr.mxu0 0.0
    %941 = vmatpush2.msra.mxu0 0.0
    %942 = vmatprep.subr.mxu0 0.0
    %943 = vmatpush2.msra.mxu0 0.0
    %944 = vmatprep.subr.mxu0 0.0
    %945 = vmatpush2.msra.mxu0 0.0
    %946 = vmatprep.subr.mxu0 0.0
    %947 = vmatpush2.msra.mxu0 0.0
    %948 = vmatprep.subr.mxu0 0.0
    %949 = vmatpush2.msra.mxu0 0.0
    %950 = vmatprep.subr.mxu0 0.0
    %951 = vmatpush2.msra.mxu0 0.0
    %952 = vmatprep.subr.mxu0 0.0
    %953 = vmatpush2.msra.mxu0 0.0
    %954 = vmatprep.subr.mxu0 0.0
    %955 = vmatpush2.msra.mxu0 0.0
    %956 = vmatprep.subr.mxu0 0.0
    %957 = vmatpush2.msra.mxu0 0.0
    %958 = vmatprep.subr.mxu0 0.0
    %959 = vmatpush2.msra.mxu0 0.0
    %960 = vmatprep.mubr.f32.mxu0 0.0
    %961 = vmatmul.mubr.f32.gmra.mxu0 %v873
    %v962 = vpop.f32.mrf.mxu0
    %v963 = vadd.f32 0.0, %v962
    %v964 = vpop.f32.mrf.mxu0
    %965 = vmatprep.mubr.f32.mxu0 0.0
    %966 = vmatmul.mubr.f32.gmra.mxu0 %v876
    %v967 = vpop.f32.mrf.mxu0
    %v968 = vadd.f32 0.0, %v967
    %v969 = vpop.f32.mrf.mxu0
    %970 = vmatprep.mubr.f32.mxu0 0.0
    %971 = vmatmul.mubr.f32.gmra.mxu0 %v879
    %v972 = vpop.f32.mrf.mxu0
    %v973 = vadd.f32 0.0, %v972
    %v974 = vpop.f32.mrf.mxu0
    %975 = vmatprep.mubr.f32.mxu0 0.0
    %976 = vmatmul.mubr.f32.gmra.mxu0 %v882
    %v977 = vpop.f32.mrf.mxu0
    %v978 = vadd.f32 0.0, %v977
    %v979 = vpop.f32.mrf.mxu0
    %980 = vmatprep.mubr.f32.mxu0 0.0
    %981 = vmatmul.mubr.f32.gmra.mxu0 %v885
    %v982 = vpop.f32.mrf.mxu0
    %v983 = vadd.f32 0.0, %v982
    %v984 = vpop.f32.mrf.mxu0
    %985 = vmatprep.mubr.f32.mxu0 0.0
    %986 = vmatmul.mubr.f32.gmra.mxu0 %v888
    %v987 = vpop.f32.mrf.mxu0
    %v988 = vadd.f32 0.0, %v987
    %v989 = vpop.f32.mrf.mxu0
    %990 = vmatprep.mubr.f32.mxu0 0.0
    %991 = vmatmul.mubr.f32.gmra.mxu0 %v891
    %v992 = vpop.f32.mrf.mxu0
    %v993 = vadd.f32 0.0, %v992
    %v994 = vpop.f32.mrf.mxu0
    %995 = vmatprep.mubr.f32.mxu0 0.0
    %996 = vmatmul.mubr.f32.gmra.mxu0 %v894
    %v997 = vpop.f32.mrf.mxu0
    %v998 = vadd.f32 0.0, %v997
    %v999 = vpop.f32.mrf.mxu0
    %1000 = vdwg.mxu0
    %v1001 = vsel %vm285, %v837, 0.0
    %v1002 = vsel %vm285, %v838, 0.0
    %v1003 = vadd.f32 %v1001, %v1002
    %v1004 = vsel %vm285, %v839, 0.0
    %v1005 = vadd.f32 %v1003, %v1004
    %v1006 = vrot.slane %v1005, 4
    %v1007 = vadd.f32 %v1005, %v1006
    %v1008 = vrot.slane %v1007, 2
    %v1009 = vadd.f32 %v1007, %v1008
    %v1010 = vrot.slane %v1009, 1
    %v1011 = vadd.f32 %v1009, %v1010
    %v1013 = vsel %vm285, %v837, 0
    %v1016 = vsel %vm285, %v838, 0
    %v1019 = vsel %vm285, %v839, 0
    %v1022 = vsel %vm285, %v135, 0
    %v1025 = vsel %vm285, %v136, 0
    %v1028 = vsel %vm285, %v137, 0
    %v1031 = vsel %vm285, %v138, 0
    %v1034 = vsel %vm285, %v139, 0
    %v1037 = vsel %vm285, %v140, 0
    %v1040 = vsel %vm285, %v141, 0
    %v1043 = vsel %vm285, %v142, 0
    %1045 = vmatprep.subr.mxu0 0.0
    %1046 = vmatpush1.xpose.msra.mxu0 0.0
    %1047 = vmatprep.subr.mxu0 0.0
    %1048 = vmatpush1.xpose.msra.mxu0 0.0
    %1049 = vmatprep.subr.mxu0 0.0
    %1050 = vmatpush1.xpose.msra.mxu0 0.0
    %1051 = vmatprep.subr.mxu0 0.0
    %1052 = vmatpush1.xpose.msra.mxu0 0.0
    %1053 = vmatprep.subr.mxu0 0.0
    %1054 = vmatpush1.xpose.msra.mxu0 0.0
    %1055 = vmatprep.subr.mxu0 0.0
    %1056 = vmatpush1.xpose.msra.mxu0 0.0
    %1057 = vmatprep.subr.mxu0 0.0
    %1058 = vmatpush1.xpose.msra.mxu0 0.0
    %1059 = vmatprep.subr.mxu0 0.0
    %1060 = vmatpush1.xpose.msra.mxu0 0.0
    %1061 = vmatprep.subr.mxu0 0.0
    %1062 = vmatpush1.xpose.msra.mxu0 %v1043
    %1063 = vmatprep.subr.mxu0 0.0
    %1064 = vmatpush1.xpose.msra.mxu0 %v1040
    %1065 = vmatprep.subr.mxu0 0.0
    %1066 = vmatpush1.xpose.msra.mxu0 %v1037
    %1067 = vmatprep.subr.mxu0 0.0
    %1068 = vmatpush1.xpose.msra.mxu0 %v1034
    %1069 = vmatprep.subr.mxu0 0.0
    %1070 = vmatpush1.xpose.msra.mxu0 %v1031
    %1071 = vmatprep.subr.mxu0 0.0
    %1072 = vmatpush1.xpose.msra.mxu0 %v1028
    %1073 = vmatprep.subr.mxu0 0.0
    %1074 = vmatpush1.xpose.msra.mxu0 %v1025
    %1075 = vmatprep.subr.mxu0 0.0
    %1076 = vmatpush1.xpose.msra.mxu0 %v1022
    %1077 = vmatprep.subr.mxu0 0.0
    %1078 = vmatpush2.xpose.msra.mxu0 0.0
    %1079 = vmatprep.subr.mxu0 0.0
    %1080 = vmatpush2.xpose.msra.mxu0 0.0
    %1081 = vmatprep.subr.mxu0 0.0
    %1082 = vmatpush2.xpose.msra.mxu0 0.0
    %1083 = vmatprep.subr.mxu0 0.0
    %1084 = vmatpush2.xpose.msra.mxu0 0.0
    %1085 = vmatprep.subr.mxu0 0.0
    %1086 = vmatpush2.xpose.msra.mxu0 0.0
    %1087 = vmatprep.subr.mxu0 0.0
    %1088 = vmatpush2.xpose.msra.mxu0 0.0
    %1089 = vmatprep.subr.mxu0 0.0
    %1090 = vmatpush2.xpose.msra.mxu0 0.0
    %1091 = vmatprep.subr.mxu0 0.0
    %1092 = vmatpush2.xpose.msra.mxu0 0.0
    %1093 = vmatprep.subr.mxu0 0.0
    %1094 = vmatpush2.xpose.msra.mxu0 0.0
    %1095 = vmatprep.subr.mxu0 0.0
    %1096 = vmatpush2.xpose.msra.mxu0 0.0
    %1097 = vmatprep.subr.mxu0 0.0
    %1098 = vmatpush2.xpose.msra.mxu0 0.0
    %1099 = vmatprep.subr.mxu0 0.0
    %1100 = vmatpush2.xpose.msra.mxu0 0.0
    %1101 = vmatprep.subr.mxu0 0.0
    %1102 = vmatpush2.xpose.msra.mxu0 0.0
    %1103 = vmatprep.subr.mxu0 0.0
    %1104 = vmatpush2.xpose.msra.mxu0 0.0
    %1105 = vmatprep.subr.mxu0 0.0
    %1106 = vmatpush2.xpose.msra.mxu0 0.0
    %1107 = vmatprep.subr.mxu0 0.0
    %1108 = vmatpush2.xpose.msra.mxu0 0.0
    %1109 = vmatprep.mubr.f32.mxu0 0.0
    %1110 = vmatmul.mubr.f32.gmra.mxu0 %v1013
    %v1111 = vpop.f32.mrf.mxu0
    %v1112 = vadd.f32 0.0, %v1111
    %v1113 = vpop.f32.mrf.mxu0
    %1114 = vmatprep.mubr.f32.mxu0 0.0
    %1115 = vmatmul.mubr.f32.gmra.mxu0 %v1016
    %v1116 = vpop.f32.mrf.mxu0
    %v1117 = vadd.f32 0.0, %v1116
    %v1118 = vpop.f32.mrf.mxu0
    %1119 = vmatprep.mubr.f32.mxu0 0.0
    %1120 = vmatmul.mubr.f32.gmra.mxu0 %v1019
    %v1121 = vpop.f32.mrf.mxu0
    %v1122 = vadd.f32 0.0, %v1121
    %v1123 = vpop.f32.mrf.mxu0
    %1124 = vdwg.mxu0
    %vm1125 = vcmp.gt.f32.partialorder %v263, 0.0
    %vm1126 = vcmp.gt.f32.partialorder %v268, 0.0
    %vm1127 = vcmp.gt.f32.partialorder %v273, 0.0
    %v1128 = vsel %vm1125, %v1112, 0.0
    %v1129 = vsel %vm1126, %v1117, 0.0
    %v1130 = vsel %vm1127, %v1122, 0.0
    %1131 = vxpose.xlu0.b32.start [1/16] %v153, 128
    %1132 = vxpose.xlu0.b32.cont [2/16] %v154, 128
    %1133 = vxpose.xlu0.b32.cont [3/16] %v155, 128
    %1134 = vxpose.xlu0.b32.cont [4/16] 0.0, 128
    %1135 = vxpose.xlu0.b32.cont [5/16] 0.0, 128
    %1136 = vxpose.xlu0.b32.cont [6/16] 0.0, 128
    %1137 = vxpose.xlu0.b32.cont [7/16] 0.0, 128
    %1138 = vxpose.xlu0.b32.cont [8/16] 0.0, 128
    %1139 = vxpose.xlu0.b32.cont [9/16] 0.0, 128
    %1140 = vxpose.xlu0.b32.cont [10/16] 0.0, 128
    %1141 = vxpose.xlu0.b32.cont [11/16] 0.0, 128
    %1142 = vxpose.xlu0.b32.cont [12/16] 0.0, 128
    %1143 = vxpose.xlu0.b32.cont [13/16] 0.0, 128
    %1144 = vxpose.xlu0.b32.cont [14/16] 0.0, 128
    %1145 = vxpose.xlu0.b32.cont [15/16] 0.0, 128
    %1146 = vxpose.xlu0.b32.end [16/16] 0.0, 128
    %v1147 = vpop.trf.xlu0
    %v1148 = vpop.trf.xlu0
    %v1149 = vpop.trf.xlu0
    %v1150 = vpop.trf.xlu0
    %v1151 = vpop.trf.xlu0
    %v1152 = vpop.trf.xlu0
    %v1153 = vpop.trf.xlu0
    %v1154 = vpop.trf.xlu0
    %v1155 = vpop.trf.xlu0
    %v1156 = vpop.trf.xlu0
    %v1157 = vpop.trf.xlu0
    %v1158 = vpop.trf.xlu0
    %v1159 = vpop.trf.xlu0
    %v1160 = vpop.trf.xlu0
    %v1161 = vpop.trf.xlu0
    %v1162 = vpop.trf.xlu0
    %v1164 = vsel %vm580, %v1147, 0
    %v1167 = vsel %vm580, %v1148, 0
    %v1170 = vsel %vm580, %v1149, 0
    %v1173 = vsel %vm580, %v1150, 0
    %1175 = vmatprep.subr.mxu0 0.0
    %1176 = vmatpush1.msra.mxu0 0.0
    %1177 = vmatprep.subr.mxu0 0.0
    %1178 = vmatpush1.msra.mxu0 0.0
    %1179 = vmatprep.subr.mxu0 0.0
    %1180 = vmatpush1.msra.mxu0 0.0
    %1181 = vmatprep.subr.mxu0 0.0
    %1182 = vmatpush1.msra.mxu0 0.0
    %1183 = vmatprep.subr.mxu0 0.0
    %1184 = vmatpush1.msra.mxu0 0.0
    %1185 = vmatprep.subr.mxu0 0.0
    %1186 = vmatpush1.msra.mxu0 0.0
    %1187 = vmatprep.subr.mxu0 0.0
    %1188 = vmatpush1.msra.mxu0 0.0
    %1189 = vmatprep.subr.mxu0 0.0
    %1190 = vmatpush1.msra.mxu0 0.0
    %1191 = vmatprep.subr.mxu0 0.0
    %1192 = vmatpush1.msra.mxu0 0.0
    %1193 = vmatprep.subr.mxu0 0.0
    %1194 = vmatpush1.msra.mxu0 0.0
    %1195 = vmatprep.subr.mxu0 0.0
    %1196 = vmatpush1.msra.mxu0 0.0
    %1197 = vmatprep.subr.mxu0 0.0
    %1198 = vmatpush1.msra.mxu0 0.0
    %1199 = vmatprep.subr.mxu0 0.0
    %1200 = vmatpush1.msra.mxu0 0.0
    %1201 = vmatprep.subr.mxu0 0.0
    %1202 = vmatpush1.msra.mxu0 %v1130
    %1203 = vmatprep.subr.mxu0 0.0
    %1204 = vmatpush1.msra.mxu0 %v1129
    %1205 = vmatprep.subr.mxu0 0.0
    %1206 = vmatpush1.msra.mxu0 %v1128
    %1207 = vmatprep.subr.mxu0 0.0
    %1208 = vmatpush2.msra.mxu0 0.0
    %1209 = vmatprep.subr.mxu0 0.0
    %1210 = vmatpush2.msra.mxu0 0.0
    %1211 = vmatprep.subr.mxu0 0.0
    %1212 = vmatpush2.msra.mxu0 0.0
    %1213 = vmatprep.subr.mxu0 0.0
    %1214 = vmatpush2.msra.mxu0 0.0
    %1215 = vmatprep.subr.mxu0 0.0
    %1216 = vmatpush2.msra.mxu0 0.0
    %1217 = vmatprep.subr.mxu0 0.0
    %1218 = vmatpush2.msra.mxu0 0.0
    %1219 = vmatprep.subr.mxu0 0.0
    %1220 = vmatpush2.msra.mxu0 0.0
    %1221 = vmatprep.subr.mxu0 0.0
    %1222 = vmatpush2.msra.mxu0 0.0
    %1223 = vmatprep.subr.mxu0 0.0
    %1224 = vmatpush2.msra.mxu0 0.0
    %1225 = vmatprep.subr.mxu0 0.0
    %1226 = vmatpush2.msra.mxu0 0.0
    %1227 = vmatprep.subr.mxu0 0.0
    %1228 = vmatpush2.msra.mxu0 0.0
    %1229 = vmatprep.subr.mxu0 0.0
    %1230 = vmatpush2.msra.mxu0 0.0
    %1231 = vmatprep.subr.mxu0 0.0
    %1232 = vmatpush2.msra.mxu0 0.0
    %1233 = vmatprep.subr.mxu0 0.0
    %1234 = vmatpush2.msra.mxu0 0.0
    %1235 = vmatprep.subr.mxu0 0.0
    %1236 = vmatpush2.msra.mxu0 0.0
    %1237 = vmatprep.subr.mxu0 0.0
    %1238 = vmatpush2.msra.mxu0 0.0
    %1239 = vmatprep.mubr.f32.mxu0 0.0
    %1240 = vmatmul.mubr.f32.gmra.mxu0 %v1164
    %v1241 = vpop.f32.mrf.mxu0
    %v1242 = vadd.f32 0.0, %v1241
    %v1243 = vpop.f32.mrf.mxu0
    %1244 = vmatprep.mubr.f32.mxu0 0.0
    %1245 = vmatmul.mubr.f32.gmra.mxu0 %v1167
    %v1246 = vpop.f32.mrf.mxu0
    %v1247 = vadd.f32 0.0, %v1246
    %v1248 = vpop.f32.mrf.mxu0
    %1249 = vmatprep.mubr.f32.mxu0 0.0
    %1250 = vmatmul.mubr.f32.gmra.mxu0 %v1170
    %v1251 = vpop.f32.mrf.mxu0
    %v1252 = vadd.f32 0.0, %v1251
    %v1253 = vpop.f32.mrf.mxu0
    %1254 = vmatprep.mubr.f32.mxu0 0.0
    %1255 = vmatmul.mubr.f32.gmra.mxu0 %v1173
    %v1256 = vpop.f32.mrf.mxu0
    %v1257 = vadd.f32 0.0, %v1256
    %v1258 = vpop.f32.mrf.mxu0
    %1259 = vdwg.mxu0
    %v1260 = vsel %vm285, %v1128, 0.0
    %v1261 = vsel %vm285, %v1129, 0.0
    %v1262 = vadd.f32 %v1260, %v1261
    %v1263 = vsel %vm285, %v1130, 0.0
    %v1264 = vadd.f32 %v1262, %v1263
    %v1265 = vrot.slane %v1264, 4
    %v1266 = vadd.f32 %v1264, %v1265
    %v1267 = vrot.slane %v1266, 2
    %v1268 = vadd.f32 %v1266, %v1267
    %v1269 = vrot.slane %v1268, 1
    %v1270 = vadd.f32 %v1268, %v1269
    %vm1271 = vcmp.ne.f32.partialorder %v1242, %v1242
    %vm1272 = vcmp.ne.f32.partialorder %v1247, %v1247
    %vm1273 = vcmp.ne.f32.partialorder %v1252, %v1252
    %vm1274 = vcmp.ne.f32.partialorder %v1257, %v1257
    %v1275 = vsel %vm1271, 0.0, %v1242
    %v1276 = vsel %vm1272, 0.0, %v1247
    %v1277 = vsel %vm1273, 0.0, %v1252
    %v1278 = vsel %vm1274, 0.0, %v1257
    %v1279 = vld [vmem:[%s10] sm:$0xff]
    %v1280 = vld [vmem:[%s10 + $0x8] sm:$0xff]
    %v1281 = vld [vmem:[%s10 + $0x10] sm:$0xff]
    %v1282 = vld [vmem:[%s10 + $0x18] sm:$0xff]
    %v1283 = vmul.f32 %v1275, %v1279
    %v1284 = vmul.f32 %v1276, %v1280
    %v1285 = vmul.f32 %v1277, %v1281
    %v1286 = vmul.f32 %v1278, %v1282
    %v1287 = vsub.f32 %v130, %v1283
    %v1288 = vsub.f32 %v131, %v1284
    %v1289 = vsub.f32 %v132, %v1285
    %v1290 = vsub.f32 %v133, %v1286
    %vm1291 = vcmp.ne.f32.partialorder %v1270, %v1270
    %v1292 = vsel %vm1291, 0.0, %v1270
    %v1293 = vld [vmem:[%s11] sm:$0x1]
    %v1294 = vmul.f32 %v1292, %v1293
    %v1295 = vsub.f32 %v134, %v1294
    %vm1296 = vcmp.ne.f32.partialorder %v963, %v963
    %vm1297 = vcmp.ne.f32.partialorder %v968, %v968
    %vm1298 = vcmp.ne.f32.partialorder %v973, %v973
    %vm1299 = vcmp.ne.f32.partialorder %v978, %v978
    %vm1300 = vcmp.ne.f32.partialorder %v983, %v983
    %vm1301 = vcmp.ne.f32.partialorder %v988, %v988
    %vm1302 = vcmp.ne.f32.partialorder %v993, %v993
    %vm1303 = vcmp.ne.f32.partialorder %v998, %v998
    %v1304 = vsel %vm1296, 0.0, %v963
    %v1305 = vsel %vm1297, 0.0, %v968
    %v1306 = vsel %vm1298, 0.0, %v973
    %v1307 = vsel %vm1299, 0.0, %v978
    %v1308 = vsel %vm1300, 0.0, %v983
    %v1309 = vsel %vm1301, 0.0, %v988
    %v1310 = vsel %vm1302, 0.0, %v993
    %v1311 = vsel %vm1303, 0.0, %v998
    %v1312 = vld [vmem:[%s12] sm:$0xff]
    %v1313 = vld [vmem:[%s12 + $0x8] sm:$0xff]
    %v1314 = vld [vmem:[%s12 + $0x10] sm:$0xff]
    %v1315 = vld [vmem:[%s12 + $0x18] sm:$0xff]
    %v1316 = vld [vmem:[%s12 + $0x20] sm:$0xff]
    %v1317 = vld [vmem:[%s12 + $0x28] sm:$0xff]
    %v1318 = vld [vmem:[%s12 + $0x30] sm:$0xff]
    %v1319 = vld [vmem:[%s12 + $0x38] sm:$0xff]
    %v1320 = vmul.f32 %v1304, %v1312
    %v1321 = vmul.f32 %v1305, %v1313
    %v1322 = vmul.f32 %v1306, %v1314
    %v1323 = vmul.f32 %v1307, %v1315
    %v1324 = vmul.f32 %v1308, %v1316
    %v1325 = vmul.f32 %v1309, %v1317
    %v1326 = vmul.f32 %v1310, %v1318
    %v1327 = vmul.f32 %v1311, %v1319
    %v1328 = vsub.f32 %v135, %v1320
    %v1329 = vsub.f32 %v136, %v1321
    %v1330 = vsub.f32 %v137, %v1322
    %v1331 = vsub.f32 %v138, %v1323
    %v1332 = vsub.f32 %v139, %v1324
    %v1333 = vsub.f32 %v140, %v1325
    %v1334 = vsub.f32 %v141, %v1326
    %v1335 = vsub.f32 %v142, %v1327
    %vm1336 = vcmp.ne.f32.partialorder %v1011, %v1011
    %v1337 = vsel %vm1336, 0.0, %v1011
    %v1338 = vld [vmem:[%s13] sm:$0x1]
    %v1339 = vmul.f32 %v1337, %v1338
    %v1340 = vsub.f32 %v143, %v1339
    %vm1341 = vcmp.ne.f32.partialorder %v672, %v672
    %vm1342 = vcmp.ne.f32.partialorder %v677, %v677
    %vm1343 = vcmp.ne.f32.partialorder %v682, %v682
    %vm1344 = vcmp.ne.f32.partialorder %v687, %v687
    %vm1345 = vcmp.ne.f32.partialorder %v692, %v692
    %vm1346 = vcmp.ne.f32.partialorder %v697, %v697
    %vm1347 = vcmp.ne.f32.partialorder %v702, %v702
    %vm1348 = vcmp.ne.f32.partialorder %v707, %v707
    %v1349 = vsel %vm1341, 0.0, %v672
    %v1350 = vsel %vm1342, 0.0, %v677
    %v1351 = vsel %vm1343, 0.0, %v682
    %v1352 = vsel %vm1344, 0.0, %v687
    %v1353 = vsel %vm1345, 0.0, %v692
    %v1354 = vsel %vm1346, 0.0, %v697
    %v1355 = vsel %vm1347, 0.0, %v702
    %v1356 = vsel %vm1348, 0.0, %v707
    %v1357 = vld [vmem:[%s14] sm:$0xff]
    %v1358 = vld [vmem:[%s14 + $0x8] sm:$0xff]
    %v1359 = vld [vmem:[%s14 + $0x10] sm:$0xff]
    %v1360 = vld [vmem:[%s14 + $0x18] sm:$0xff]
    %v1361 = vld [vmem:[%s14 + $0x20] sm:$0xff]
    %v1362 = vld [vmem:[%s14 + $0x28] sm:$0xff]
    %v1363 = vld [vmem:[%s14 + $0x30] sm:$0xff]
    %v1364 = vld [vmem:[%s14 + $0x38] sm:$0xff]
    %v1365 = vmul.f32 %v1349, %v1357
    %v1366 = vmul.f32 %v1350, %v1358
    %v1367 = vmul.f32 %v1351, %v1359
    %v1368 = vmul.f32 %v1352, %v1360
    %v1369 = vmul.f32 %v1353, %v1361
    %v1370 = vmul.f32 %v1354, %v1362
    %v1371 = vmul.f32 %v1355, %v1363
    %v1372 = vmul.f32 %v1356, %v1364
    %v1373 = vsub.f32 %v144, %v1365
    %v1374 = vsub.f32 %v145, %v1366
    %v1375 = vsub.f32 %v146, %v1367
    %v1376 = vsub.f32 %v147, %v1368
    %v1377 = vsub.f32 %v148, %v1369
    %v1378 = vsub.f32 %v149, %v1370
    %v1379 = vsub.f32 %v150, %v1371
    %v1380 = vsub.f32 %v151, %v1372
    %vm1381 = vcmp.ne.f32.partialorder %v720, %v720
    %v1382 = vsel %vm1381, 0.0, %v720
    %v1383 = vld [vmem:[%s15] sm:$0x1]
    %v1384 = vmul.f32 %v1382, %v1383
    %v1385 = vsub.f32 %v152, %v1384
    %s1386 = scalar_lea.vmem %s2, 24
    %v1387 = vld [vmem:[%s1386] sm:$0xff]
    %v1388 = vld [vmem:[%s1386 + $0x8] sm:$0xff]
    %v1389 = vld [vmem:[%s1386 + $0x10] sm:$0xff]
    %s1390 = scalar_lea.vmem %s3, 24
    %v1391 = vld [vmem:[%s1390] sm:$0xff]
    %v1392 = vld [vmem:[%s1390 + $0x8] sm:$0xff]
    %v1393 = vld [vmem:[%s1390 + $0x10] sm:$0xff]
    %v1394 = vcvt.f32.s32.to.zero.pseudo %v1391
    %v1395 = vcvt.f32.s32.to.zero.pseudo %v1392
    %v1396 = vcvt.f32.s32.to.zero.pseudo %v1393
    %1397 = vset.pattern.permute.xlu0 1
    %1398 = vperm.xlu0 %1397, %v1394
    %v1399 = vpop.permute.xlu0 %1398
    %1400 = vset.pattern.permute.xlu0 1
    %1401 = vperm.xlu0 %1400, %v1395
    %v1402 = vpop.permute.xlu0 %1401
    %1403 = vset.pattern.permute.xlu0 1
    %1404 = vperm.xlu0 %1403, %v1396
    %v1405 = vpop.permute.xlu0 %1404
    %vm1406 = vcmp.eq.s32.totalorder %v129, %v1399
    %vm1407 = vcmp.eq.s32.totalorder %v129, %v1402
    %vm1408 = vcmp.eq.s32.totalorder %v129, %v1405
    %v1409 = vsel %vm1406, 1, 0
    %v1410 = vsel %vm1407, 1, 0
    %v1411 = vsel %vm1408, 1, 0
    %v1412 = vcvt.s32.f32 %v1409
    %v1413 = vcvt.s32.f32 %v1410
    %v1414 = vcvt.s32.f32 %v1411
    %v1416 = vlaneseq
    %v1417 = vshrl.u32 %v1416, 7
    %v1418 = vsub.s32 0, %v1417
    %v1419 = vrot.slane %v1295, %v1418
    %v1422 = vsel %vm186, %v1387, 0
    %v1425 = vsel %vm186, %v1388, 0
    %v1428 = vsel %vm186, %v1389, 0
    %1430 = vmatprep.subr.mxu0 0.0
    %1431 = vmatpush1.msra.mxu0 0.0
    %1432 = vmatprep.subr.mxu0 0.0
    %1433 = vmatpush1.msra.mxu0 0.0
    %1434 = vmatprep.subr.mxu0 0.0
    %1435 = vmatpush1.msra.mxu0 0.0
    %1436 = vmatprep.subr.mxu0 0.0
    %1437 = vmatpush1.msra.mxu0 0.0
    %1438 = vmatprep.subr.mxu0 0.0
    %1439 = vmatpush1.msra.mxu0 0.0
    %1440 = vmatprep.subr.mxu0 0.0
    %1441 = vmatpush1.msra.mxu0 0.0
    %1442 = vmatprep.subr.mxu0 0.0
    %1443 = vmatpush1.msra.mxu0 0.0
    %1444 = vmatprep.subr.mxu0 0.0
    %1445 = vmatpush1.msra.mxu0 0.0
    %1446 = vmatprep.subr.mxu0 0.0
    %1447 = vmatpush1.msra.mxu0 0.0
    %1448 = vmatprep.subr.mxu0 0.0
    %1449 = vmatpush1.msra.mxu0 0.0
    %1450 = vmatprep.subr.mxu0 0.0
    %1451 = vmatpush1.msra.mxu0 0.0
    %1452 = vmatprep.subr.mxu0 0.0
    %1453 = vmatpush1.msra.mxu0 0.0
    %1454 = vmatprep.subr.mxu0 0.0
    %1455 = vmatpush1.msra.mxu0 %v1290
    %1456 = vmatprep.subr.mxu0 0.0
    %1457 = vmatpush1.msra.mxu0 %v1289
    %1458 = vmatprep.subr.mxu0 0.0
    %1459 = vmatpush1.msra.mxu0 %v1288
    %1460 = vmatprep.subr.mxu0 0.0
    %1461 = vmatpush1.msra.mxu0 %v1287
    %1462 = vmatprep.subr.mxu0 0.0
    %1463 = vmatpush2.msra.mxu0 0.0
    %1464 = vmatprep.subr.mxu0 0.0
    %1465 = vmatpush2.msra.mxu0 0.0
    %1466 = vmatprep.subr.mxu0 0.0
    %1467 = vmatpush2.msra.mxu0 0.0
    %1468 = vmatprep.subr.mxu0 0.0
    %1469 = vmatpush2.msra.mxu0 0.0
    %1470 = vmatprep.subr.mxu0 0.0
    %1471 = vmatpush2.msra.mxu0 0.0
    %1472 = vmatprep.subr.mxu0 0.0
    %1473 = vmatpush2.msra.mxu0 0.0
    %1474 = vmatprep.subr.mxu0 0.0
    %1475 = vmatpush2.msra.mxu0 0.0
    %1476 = vmatprep.subr.mxu0 0.0
    %1477 = vmatpush2.msra.mxu0 0.0
    %1478 = vmatprep.subr.mxu0 0.0
    %1479 = vmatpush2.msra.mxu0 0.0
    %1480 = vmatprep.subr.mxu0 0.0
    %1481 = vmatpush2.msra.mxu0 0.0
    %1482 = vmatprep.subr.mxu0 0.0
    %1483 = vmatpush2.msra.mxu0 0.0
    %1484 = vmatprep.subr.mxu0 0.0
    %1485 = vmatpush2.msra.mxu0 0.0
    %1486 = vmatprep.subr.mxu0 0.0
    %1487 = vmatpush2.msra.mxu0 0.0
    %1488 = vmatprep.subr.mxu0 0.0
    %1489 = vmatpush2.msra.mxu0 0.0
    %1490 = vmatprep.subr.mxu0 0.0
    %1491 = vmatpush2.msra.mxu0 0.0
    %1492 = vmatprep.subr.mxu0 0.0
    %1493 = vmatpush2.msra.mxu0 0.0
    %1494 = vmatprep.mubr.f32.mxu0 0.0
    %1495 = vmatmul.mubr.f32.gmra.mxu0 %v1422
    %v1496 = vpop.f32.mrf.mxu0
    %v1497 = vadd.f32 %v1419, %v1496
    %v1498 = vpop.f32.mrf.mxu0
    %1499 = vmatprep.mubr.f32.mxu0 0.0
    %1500 = vmatmul.mubr.f32.gmra.mxu0 %v1425
    %v1501 = vpop.f32.mrf.mxu0
    %v1502 = vadd.f32 %v1419, %v1501
    %v1503 = vpop.f32.mrf.mxu0
    %1504 = vmatprep.mubr.f32.mxu0 0.0
    %1505 = vmatmul.mubr.f32.gmra.mxu0 %v1428
    %v1506 = vpop.f32.mrf.mxu0
    %v1507 = vadd.f32 %v1419, %v1506
    %v1508 = vpop.f32.mrf.mxu0
    %1509 = vdwg.mxu0
    %v1510 = vmax.f32 %v1497, 0.0
    %v1511 = vmax.f32 %v1502, 0.0
    %v1512 = vmax.f32 %v1507, 0.0
    %v1514 = vlaneseq
    %v1515 = vshrl.u32 %v1514, 7
    %v1516 = vsub.s32 0, %v1515
    %v1517 = vrot.slane %v1340, %v1516
    %v1520 = vsel %vm285, %v1510, 0
    %v1523 = vsel %vm285, %v1511, 0
    %v1526 = vsel %vm285, %v1512, 0
    %1528 = vmatprep.subr.mxu0 0.0
    %1529 = vmatpush1.msra.mxu0 0.0
    %1530 = vmatprep.subr.mxu0 0.0
    %1531 = vmatpush1.msra.mxu0 0.0
    %1532 = vmatprep.subr.mxu0 0.0
    %1533 = vmatpush1.msra.mxu0 0.0
    %1534 = vmatprep.subr.mxu0 0.0
    %1535 = vmatpush1.msra.mxu0 0.0
    %1536 = vmatprep.subr.mxu0 0.0
    %1537 = vmatpush1.msra.mxu0 0.0
    %1538 = vmatprep.subr.mxu0 0.0
    %1539 = vmatpush1.msra.mxu0 0.0
    %1540 = vmatprep.subr.mxu0 0.0
    %1541 = vmatpush1.msra.mxu0 0.0
    %1542 = vmatprep.subr.mxu0 0.0
    %1543 = vmatpush1.msra.mxu0 0.0
    %1544 = vmatprep.subr.mxu0 0.0
    %1545 = vmatpush1.msra.mxu0 %v1335
    %1546 = vmatprep.subr.mxu0 0.0
    %1547 = vmatpush1.msra.mxu0 %v1334
    %1548 = vmatprep.subr.mxu0 0.0
    %1549 = vmatpush1.msra.mxu0 %v1333
    %1550 = vmatprep.subr.mxu0 0.0
    %1551 = vmatpush1.msra.mxu0 %v1332
    %1552 = vmatprep.subr.mxu0 0.0
    %1553 = vmatpush1.msra.mxu0 %v1331
    %1554 = vmatprep.subr.mxu0 0.0
    %1555 = vmatpush1.msra.mxu0 %v1330
    %1556 = vmatprep.subr.mxu0 0.0
    %1557 = vmatpush1.msra.mxu0 %v1329
    %1558 = vmatprep.subr.mxu0 0.0
    %1559 = vmatpush1.msra.mxu0 %v1328
    %1560 = vmatprep.subr.mxu0 0.0
    %1561 = vmatpush2.msra.mxu0 0.0
    %1562 = vmatprep.subr.mxu0 0.0
    %1563 = vmatpush2.msra.mxu0 0.0
    %1564 = vmatprep.subr.mxu0 0.0
    %1565 = vmatpush2.msra.mxu0 0.0
    %1566 = vmatprep.subr.mxu0 0.0
    %1567 = vmatpush2.msra.mxu0 0.0
    %1568 = vmatprep.subr.mxu0 0.0
    %1569 = vmatpush2.msra.mxu0 0.0
    %1570 = vmatprep.subr.mxu0 0.0
    %1571 = vmatpush2.msra.mxu0 0.0
    %1572 = vmatprep.subr.mxu0 0.0
    %1573 = vmatpush2.msra.mxu0 0.0
    %1574 = vmatprep.subr.mxu0 0.0
    %1575 = vmatpush2.msra.mxu0 0.0
    %1576 = vmatprep.subr.mxu0 0.0
    %1577 = vmatpush2.msra.mxu0 0.0
    %1578 = vmatprep.subr.mxu0 0.0
    %1579 = vmatpush2.msra.mxu0 0.0
    %1580 = vmatprep.subr.mxu0 0.0
    %1581 = vmatpush2.msra.mxu0 0.0
    %1582 = vmatprep.subr.mxu0 0.0
    %1583 = vmatpush2.msra.mxu0 0.0
    %1584 = vmatprep.subr.mxu0 0.0
    %1585 = vmatpush2.msra.mxu0 0.0
    %1586 = vmatprep.subr.mxu0 0.0
    %1587 = vmatpush2.msra.mxu0 0.0
    %1588 = vmatprep.subr.mxu0 0.0
    %1589 = vmatpush2.msra.mxu0 0.0
    %1590 = vmatprep.subr.mxu0 0.0
    %1591 = vmatpush2.msra.mxu0 0.0
    %1592 = vmatprep.mubr.f32.mxu0 0.0
    %1593 = vmatmul.mubr.f32.gmra.mxu0 %v1520
    %v1594 = vpop.f32.mrf.mxu0
    %v1595 = vadd.f32 %v1517, %v1594
    %v1596 = vpop.f32.mrf.mxu0
    %1597 = vmatprep.mubr.f32.mxu0 0.0
    %1598 = vmatmul.mubr.f32.gmra.mxu0 %v1523
    %v1599 = vpop.f32.mrf.mxu0
    %v1600 = vadd.f32 %v1517, %v1599
    %v1601 = vpop.f32.mrf.mxu0
    %1602 = vmatprep.mubr.f32.mxu0 0.0
    %1603 = vmatmul.mubr.f32.gmra.mxu0 %v1526
    %v1604 = vpop.f32.mrf.mxu0
    %v1605 = vadd.f32 %v1517, %v1604
    %v1606 = vpop.f32.mrf.mxu0
    %1607 = vdwg.mxu0
    %v1608 = vmax.f32 %v1595, 0.0
    %v1609 = vmax.f32 %v1600, 0.0
    %v1610 = vmax.f32 %v1605, 0.0
    %v1612 = vlaneseq
    %v1613 = vshrl.u32 %v1612, 7
    %v1614 = vsub.s32 0, %v1613
    %v1615 = vrot.slane %v1385, %v1614
    %v1618 = vsel %vm285, %v1608, 0
    %v1621 = vsel %vm285, %v1609, 0
    %v1624 = vsel %vm285, %v1610, 0
    %1626 = vmatprep.subr.mxu0 0.0
    %1627 = vmatpush1.msra.mxu0 0.0
    %1628 = vmatprep.subr.mxu0 0.0
    %1629 = vmatpush1.msra.mxu0 0.0
    %1630 = vmatprep.subr.mxu0 0.0
    %1631 = vmatpush1.msra.mxu0 0.0
    %1632 = vmatprep.subr.mxu0 0.0
    %1633 = vmatpush1.msra.mxu0 0.0
    %1634 = vmatprep.subr.mxu0 0.0
    %1635 = vmatpush1.msra.mxu0 0.0
    %1636 = vmatprep.subr.mxu0 0.0
    %1637 = vmatpush1.msra.mxu0 0.0
    %1638 = vmatprep.subr.mxu0 0.0
    %1639 = vmatpush1.msra.mxu0 0.0
    %1640 = vmatprep.subr.mxu0 0.0
    %1641 = vmatpush1.msra.mxu0 0.0
    %1642 = vmatprep.subr.mxu0 0.0
    %1643 = vmatpush1.msra.mxu0 %v1380
    %1644 = vmatprep.subr.mxu0 0.0
    %1645 = vmatpush1.msra.mxu0 %v1379
    %1646 = vmatprep.subr.mxu0 0.0
    %1647 = vmatpush1.msra.mxu0 %v1378
    %1648 = vmatprep.subr.mxu0 0.0
    %1649 = vmatpush1.msra.mxu0 %v1377
    %1650 = vmatprep.subr.mxu0 0.0
    %1651 = vmatpush1.msra.mxu0 %v1376
    %1652 = vmatprep.subr.mxu0 0.0
    %1653 = vmatpush1.msra.mxu0 %v1375
    %1654 = vmatprep.subr.mxu0 0.0
    %1655 = vmatpush1.msra.mxu0 %v1374
    %1656 = vmatprep.subr.mxu0 0.0
    %1657 = vmatpush1.msra.mxu0 %v1373
    %1658 = vmatprep.subr.mxu0 0.0
    %1659 = vmatpush2.msra.mxu0 0.0
    %1660 = vmatprep.subr.mxu0 0.0
    %1661 = vmatpush2.msra.mxu0 0.0
    %1662 = vmatprep.subr.mxu0 0.0
    %1663 = vmatpush2.msra.mxu0 0.0
    %1664 = vmatprep.subr.mxu0 0.0
    %1665 = vmatpush2.msra.mxu0 0.0
    %1666 = vmatprep.subr.mxu0 0.0
    %1667 = vmatpush2.msra.mxu0 0.0
    %1668 = vmatprep.subr.mxu0 0.0
    %1669 = vmatpush2.msra.mxu0 0.0
    %1670 = vmatprep.subr.mxu0 0.0
    %1671 = vmatpush2.msra.mxu0 0.0
    %1672 = vmatprep.subr.mxu0 0.0
    %1673 = vmatpush2.msra.mxu0 0.0
    %1674 = vmatprep.subr.mxu0 0.0
    %1675 = vmatpush2.msra.mxu0 0.0
    %1676 = vmatprep.subr.mxu0 0.0
    %1677 = vmatpush2.msra.mxu0 0.0
    %1678 = vmatprep.subr.mxu0 0.0
    %1679 = vmatpush2.msra.mxu0 0.0
    %1680 = vmatprep.subr.mxu0 0.0
    %1681 = vmatpush2.msra.mxu0 0.0
    %1682 = vmatprep.subr.mxu0 0.0
    %1683 = vmatpush2.msra.mxu0 0.0
    %1684 = vmatprep.subr.mxu0 0.0
    %1685 = vmatpush2.msra.mxu0 0.0
    %1686 = vmatprep.subr.mxu0 0.0
    %1687 = vmatpush2.msra.mxu0 0.0
    %1688 = vmatprep.subr.mxu0 0.0
    %1689 = vmatpush2.msra.mxu0 0.0
    %1690 = vmatprep.mubr.f32.mxu0 0.0
    %1691 = vmatmul.mubr.f32.gmra.mxu0 %v1618
    %v1692 = vpop.f32.mrf.mxu0
    %v1693 = vadd.f32 %v1615, %v1692
    %v1694 = vpop.f32.mrf.mxu0
    %1695 = vmatprep.mubr.f32.mxu0 0.0
    %1696 = vmatmul.mubr.f32.gmra.mxu0 %v1621
    %v1697 = vpop.f32.mrf.mxu0
    %v1698 = vadd.f32 %v1615, %v1697
    %v1699 = vpop.f32.mrf.mxu0
    %1700 = vmatprep.mubr.f32.mxu0 0.0
    %1701 = vmatmul.mubr.f32.gmra.mxu0 %v1624
    %v1702 = vpop.f32.mrf.mxu0
    %v1703 = vadd.f32 %v1615, %v1702
    %v1704 = vpop.f32.mrf.mxu0
    %1705 = vdwg.mxu0
    %v1706 = vmul.f32 %v1693, %v1412
    %v1707 = vmul.f32 %v1698, %v1413
    %v1708 = vmul.f32 %v1703, %v1414
    %v1709 = vsel %vm476, %v1706, 0.0
    %1710 = vadd.xlane.f32.xlu0 %v1709
    %v1711 = vpop.xlane.xlu0 %1710
    %v1712 = vsel %vm476, %v1707, 0.0
    %1713 = vadd.xlane.f32.xlu0 %v1712
    %v1714 = vpop.xlane.xlu0 %1713
    %v1715 = vsel %vm476, %v1708, 0.0
    %1716 = vadd.xlane.f32.xlu0 %v1715
    %v1717 = vpop.xlane.xlu0 %1716
    %v1718 = vsub.f32 %v1711, %v1391
    %v1719 = vsub.f32 %v1714, %v1392
    %v1720 = vsub.f32 %v1717, %v1393
    %s1721 = sld [smem:[#allocation2 + $0x1]]
    %v1722 = vstv %s1721
    %vm1723 = vcmp.lt.s32.totalorder %v125, %v1722
    %vm1724 = vcmp.lt.s32.totalorder %v126, %v1722
    %vm1725 = vcmp.lt.s32.totalorder %v127, %v1722
    %v1726 = vsel %vm1723, %v1718, 0.0
    %v1727 = vsel %vm1724, %v1719, 0.0
    %v1728 = vsel %vm1725, %v1720, 0.0
    %v1729 = vmul.f32 %v1726, %v1726
    %v1730 = vmul.f32 %v1727, %v1727
    %v1731 = vmul.f32 %v1728, %v1728
    %v1732 = vsel %vm500, %v1729, 0.0
    %v1733 = vsel %vm500, %v1730, 0.0
    %v1734 = vadd.f32 %v1732, %v1733
    %v1735 = vsel %vm500, %v1731, 0.0
    %v1736 = vadd.f32 %v1734, %v1735
    %1737 = vadd.xlane.f32.xlu0 %v1736
    %v1738 = vpop.xlane.xlu0 %1737
    %v1739 = vrot.slane %v1738, 4
    %v1740 = vadd.f32 %v1738, %v1739
    %v1741 = vrot.slane %v1740, 2
    %v1742 = vadd.f32 %v1740, %v1741
    %v1743 = vrot.slane %v1742, 1
    %v1744 = vadd.f32 %v1742, %v1743
    %s1745 = vtos %v1744
    %v1746 = vstv %s1745
    %s1747 = sld [smem:[#allocation6 + $0x1]]
    %v1748 = vstv %s1747
    %v1749 = vmul.f32 %v1746, %v1748
    %vm1750 = vcmp.eq.s32.totalorder %v129, 1
    %v1751 = vsel %vm1750, %v1749, %v520
    %v1752 = vsel %vm521, %v1718, 0.0
    %v1753 = vsel %vm522, %v1719, 0.0
    %v1754 = vsel %vm523, %v1720, 0.0
    %v1755 = vmul.f32 %v1752, 0.25
    %v1756 = vmul.f32 %v1753, 0.25
    %v1757 = vmul.f32 %v1754, 0.25
    %1759 = vset.pattern.permute.xlu0 0
    %1760 = vperm.xlu0 %1759, %v1755
    %v1761 = vpop.permute.xlu0 %1760
    %1764 = vset.pattern.permute.xlu0 0
    %1765 = vperm.xlu0 %1764, %v1756
    %v1766 = vpop.permute.xlu0 %1765
    %1769 = vset.pattern.permute.xlu0 0
    %1770 = vperm.xlu0 %1769, %v1757
    %v1771 = vpop.permute.xlu0 %1770
    %v1773 = vmul.f32 %v1761, %v1412
    %v1774 = vmul.f32 %v1766, %v1413
    %v1775 = vmul.f32 %v1771, %v1414
    %1776 = vxpose.xlu0.b32.start [1/16] %v1608, 128
    %1777 = vxpose.xlu0.b32.cont [2/16] %v1609, 128
    %1778 = vxpose.xlu0.b32.cont [3/16] %v1610, 128
    %1779 = vxpose.xlu0.b32.cont [4/16] 0.0, 128
    %1780 = vxpose.xlu0.b32.cont [5/16] 0.0, 128
    %1781 = vxpose.xlu0.b32.cont [6/16] 0.0, 128
    %1782 = vxpose.xlu0.b32.cont [7/16] 0.0, 128
    %1783 = vxpose.xlu0.b32.cont [8/16] 0.0, 128
    %1784 = vxpose.xlu0.b32.cont [9/16] 0.0, 128
    %1785 = vxpose.xlu0.b32.cont [10/16] 0.0, 128
    %1786 = vxpose.xlu0.b32.cont [11/16] 0.0, 128
    %1787 = vxpose.xlu0.b32.cont [12/16] 0.0, 128
    %1788 = vxpose.xlu0.b32.cont [13/16] 0.0, 128
    %1789 = vxpose.xlu0.b32.cont [14/16] 0.0, 128
    %1790 = vxpose.xlu0.b32.cont [15/16] 0.0, 128
    %1791 = vxpose.xlu0.b32.end [16/16] 0.0, 128
    %v1792 = vpop.trf.xlu0
    %v1793 = vpop.trf.xlu0
    %v1794 = vpop.trf.xlu0
    %v1795 = vpop.trf.xlu0
    %v1796 = vpop.trf.xlu0
    %v1797 = vpop.trf.xlu0
    %v1798 = vpop.trf.xlu0
    %v1799 = vpop.trf.xlu0
    %v1800 = vpop.trf.xlu0
    %v1801 = vpop.trf.xlu0
    %v1802 = vpop.trf.xlu0
    %v1803 = vpop.trf.xlu0
    %v1804 = vpop.trf.xlu0
    %v1805 = vpop.trf.xlu0
    %v1806 = vpop.trf.xlu0
    %v1807 = vpop.trf.xlu0
    %v1809 = vsel %vm580, %v1792, 0
    %v1812 = vsel %vm580, %v1793, 0
    %v1815 = vsel %vm580, %v1794, 0
    %v1818 = vsel %vm580, %v1795, 0
    %v1821 = vsel %vm580, %v1796, 0
    %v1824 = vsel %vm580, %v1797, 0
    %v1827 = vsel %vm580, %v1798, 0
    %v1830 = vsel %vm580, %v1799, 0
    %1832 = vmatprep.subr.mxu0 0.0
    %1833 = vmatpush1.msra.mxu0 0.0
    %1834 = vmatprep.subr.mxu0 0.0
    %1835 = vmatpush1.msra.mxu0 0.0
    %1836 = vmatprep.subr.mxu0 0.0
    %1837 = vmatpush1.msra.mxu0 0.0
    %1838 = vmatprep.subr.mxu0 0.0
    %1839 = vmatpush1.msra.mxu0 0.0
    %1840 = vmatprep.subr.mxu0 0.0
    %1841 = vmatpush1.msra.mxu0 0.0
    %1842 = vmatprep.subr.mxu0 0.0
    %1843 = vmatpush1.msra.mxu0 0.0
    %1844 = vmatprep.subr.mxu0 0.0
    %1845 = vmatpush1.msra.mxu0 0.0
    %1846 = vmatprep.subr.mxu0 0.0
    %1847 = vmatpush1.msra.mxu0 0.0
    %1848 = vmatprep.subr.mxu0 0.0
    %1849 = vmatpush1.msra.mxu0 0.0
    %1850 = vmatprep.subr.mxu0 0.0
    %1851 = vmatpush1.msra.mxu0 0.0
    %1852 = vmatprep.subr.mxu0 0.0
    %1853 = vmatpush1.msra.mxu0 0.0
    %1854 = vmatprep.subr.mxu0 0.0
    %1855 = vmatpush1.msra.mxu0 0.0
    %1856 = vmatprep.subr.mxu0 0.0
    %1857 = vmatpush1.msra.mxu0 0.0
    %1858 = vmatprep.subr.mxu0 0.0
    %1859 = vmatpush1.msra.mxu0 %v1775
    %1860 = vmatprep.subr.mxu0 0.0
    %1861 = vmatpush1.msra.mxu0 %v1774
    %1862 = vmatprep.subr.mxu0 0.0
    %1863 = vmatpush1.msra.mxu0 %v1773
    %1864 = vmatprep.subr.mxu0 0.0
    %1865 = vmatpush2.msra.mxu0 0.0
    %1866 = vmatprep.subr.mxu0 0.0
    %1867 = vmatpush2.msra.mxu0 0.0
    %1868 = vmatprep.subr.mxu0 0.0
    %1869 = vmatpush2.msra.mxu0 0.0
    %1870 = vmatprep.subr.mxu0 0.0
    %1871 = vmatpush2.msra.mxu0 0.0
    %1872 = vmatprep.subr.mxu0 0.0
    %1873 = vmatpush2.msra.mxu0 0.0
    %1874 = vmatprep.subr.mxu0 0.0
    %1875 = vmatpush2.msra.mxu0 0.0
    %1876 = vmatprep.subr.mxu0 0.0
    %1877 = vmatpush2.msra.mxu0 0.0
    %1878 = vmatprep.subr.mxu0 0.0
    %1879 = vmatpush2.msra.mxu0 0.0
    %1880 = vmatprep.subr.mxu0 0.0
    %1881 = vmatpush2.msra.mxu0 0.0
    %1882 = vmatprep.subr.mxu0 0.0
    %1883 = vmatpush2.msra.mxu0 0.0
    %1884 = vmatprep.subr.mxu0 0.0
    %1885 = vmatpush2.msra.mxu0 0.0
    %1886 = vmatprep.subr.mxu0 0.0
    %1887 = vmatpush2.msra.mxu0 0.0
    %1888 = vmatprep.subr.mxu0 0.0
    %1889 = vmatpush2.msra.mxu0 0.0
    %1890 = vmatprep.subr.mxu0 0.0
    %1891 = vmatpush2.msra.mxu0 0.0
    %1892 = vmatprep.subr.mxu0 0.0
    %1893 = vmatpush2.msra.mxu0 0.0
    %1894 = vmatprep.subr.mxu0 0.0
    %1895 = vmatpush2.msra.mxu0 0.0
    %1896 = vmatprep.mubr.f32.mxu0 0.0
    %1897 = vmatmul.mubr.f32.gmra.mxu0 %v1809
    %v1898 = vpop.f32.mrf.mxu0
    %v1899 = vadd.f32 0.0, %v1898
    %v1900 = vpop.f32.mrf.mxu0
    %1901 = vmatprep.mubr.f32.mxu0 0.0
    %1902 = vmatmul.mubr.f32.gmra.mxu0 %v1812
    %v1903 = vpop.f32.mrf.mxu0
    %v1904 = vadd.f32 0.0, %v1903
    %v1905 = vpop.f32.mrf.mxu0
    %1906 = vmatprep.mubr.f32.mxu0 0.0
    %1907 = vmatmul.mubr.f32.gmra.mxu0 %v1815
    %v1908 = vpop.f32.mrf.mxu0
    %v1909 = vadd.f32 0.0, %v1908
    %v1910 = vpop.f32.mrf.mxu0
    %1911 = vmatprep.mubr.f32.mxu0 0.0
    %1912 = vmatmul.mubr.f32.gmra.mxu0 %v1818
    %v1913 = vpop.f32.mrf.mxu0
    %v1914 = vadd.f32 0.0, %v1913
    %v1915 = vpop.f32.mrf.mxu0
    %1916 = vmatprep.mubr.f32.mxu0 0.0
    %1917 = vmatmul.mubr.f32.gmra.mxu0 %v1821
    %v1918 = vpop.f32.mrf.mxu0
    %v1919 = vadd.f32 0.0, %v1918
    %v1920 = vpop.f32.mrf.mxu0
    %1921 = vmatprep.mubr.f32.mxu0 0.0
    %1922 = vmatmul.mubr.f32.gmra.mxu0 %v1824
    %v1923 = vpop.f32.mrf.mxu0
    %v1924 = vadd.f32 0.0, %v1923
    %v1925 = vpop.f32.mrf.mxu0
    %1926 = vmatprep.mubr.f32.mxu0 0.0
    %1927 = vmatmul.mubr.f32.gmra.mxu0 %v1827
    %v1928 = vpop.f32.mrf.mxu0
    %v1929 = vadd.f32 0.0, %v1928
    %v1930 = vpop.f32.mrf.mxu0
    %1931 = vmatprep.mubr.f32.mxu0 0.0
    %1932 = vmatmul.mubr.f32.gmra.mxu0 %v1830
    %v1933 = vpop.f32.mrf.mxu0
    %v1934 = vadd.f32 0.0, %v1933
    %v1935 = vpop.f32.mrf.mxu0
    %1936 = vdwg.mxu0
    %v1937 = vsel %vm476, %v1773, 0.0
    %v1938 = vsel %vm476, %v1774, 0.0
    %v1939 = vadd.f32 %v1937, %v1938
    %v1940 = vsel %vm476, %v1775, 0.0
    %v1941 = vadd.f32 %v1939, %v1940
    %v1942 = vrot.slane %v1941, 4
    %v1943 = vadd.f32 %v1941, %v1942
    %v1944 = vrot.slane %v1943, 2
    %v1945 = vadd.f32 %v1943, %v1944
    %v1946 = vrot.slane %v1945, 1
    %v1947 = vadd.f32 %v1945, %v1946
    %v1949 = vsel %vm476, %v1773, 0
    %v1952 = vsel %vm476, %v1774, 0
    %v1955 = vsel %vm476, %v1775, 0
    %v1958 = vsel %vm476, %v1373, 0
    %v1961 = vsel %vm476, %v1374, 0
    %v1964 = vsel %vm476, %v1375, 0
    %v1967 = vsel %vm476, %v1376, 0
    %v1970 = vsel %vm476, %v1377, 0
    %v1973 = vsel %vm476, %v1378, 0
    %v1976 = vsel %vm476, %v1379, 0
    %v1979 = vsel %vm476, %v1380, 0
    %1981 = vmatprep.subr.mxu0 0.0
    %1982 = vmatpush1.xpose.msra.mxu0 0.0
    %1983 = vmatprep.subr.mxu0 0.0
    %1984 = vmatpush1.xpose.msra.mxu0 0.0
    %1985 = vmatprep.subr.mxu0 0.0
    %1986 = vmatpush1.xpose.msra.mxu0 0.0
    %1987 = vmatprep.subr.mxu0 0.0
    %1988 = vmatpush1.xpose.msra.mxu0 0.0
    %1989 = vmatprep.subr.mxu0 0.0
    %1990 = vmatpush1.xpose.msra.mxu0 0.0
    %1991 = vmatprep.subr.mxu0 0.0
    %1992 = vmatpush1.xpose.msra.mxu0 0.0
    %1993 = vmatprep.subr.mxu0 0.0
    %1994 = vmatpush1.xpose.msra.mxu0 0.0
    %1995 = vmatprep.subr.mxu0 0.0
    %1996 = vmatpush1.xpose.msra.mxu0 0.0
    %1997 = vmatprep.subr.mxu0 0.0
    %1998 = vmatpush1.xpose.msra.mxu0 %v1979
    %1999 = vmatprep.subr.mxu0 0.0
    %2000 = vmatpush1.xpose.msra.mxu0 %v1976
    %2001 = vmatprep.subr.mxu0 0.0
    %2002 = vmatpush1.xpose.msra.mxu0 %v1973
    %2003 = vmatprep.subr.mxu0 0.0
    %2004 = vmatpush1.xpose.msra.mxu0 %v1970
    %2005 = vmatprep.subr.mxu0 0.0
    %2006 = vmatpush1.xpose.msra.mxu0 %v1967
    %2007 = vmatprep.subr.mxu0 0.0
    %2008 = vmatpush1.xpose.msra.mxu0 %v1964
    %2009 = vmatprep.subr.mxu0 0.0
    %2010 = vmatpush1.xpose.msra.mxu0 %v1961
    %2011 = vmatprep.subr.mxu0 0.0
    %2012 = vmatpush1.xpose.msra.mxu0 %v1958
    %2013 = vmatprep.subr.mxu0 0.0
    %2014 = vmatpush2.xpose.msra.mxu0 0.0
    %2015 = vmatprep.subr.mxu0 0.0
    %2016 = vmatpush2.xpose.msra.mxu0 0.0
    %2017 = vmatprep.subr.mxu0 0.0
    %2018 = vmatpush2.xpose.msra.mxu0 0.0
    %2019 = vmatprep.subr.mxu0 0.0
    %2020 = vmatpush2.xpose.msra.mxu0 0.0
    %2021 = vmatprep.subr.mxu0 0.0
    %2022 = vmatpush2.xpose.msra.mxu0 0.0
    %2023 = vmatprep.subr.mxu0 0.0
    %2024 = vmatpush2.xpose.msra.mxu0 0.0
    %2025 = vmatprep.subr.mxu0 0.0
    %2026 = vmatpush2.xpose.msra.mxu0 0.0
    %2027 = vmatprep.subr.mxu0 0.0
    %2028 = vmatpush2.xpose.msra.mxu0 0.0
    %2029 = vmatprep.subr.mxu0 0.0
    %2030 = vmatpush2.xpose.msra.mxu0 0.0
    %2031 = vmatprep.subr.mxu0 0.0
    %2032 = vmatpush2.xpose.msra.mxu0 0.0
    %2033 = vmatprep.subr.mxu0 0.0
    %2034 = vmatpush2.xpose.msra.mxu0 0.0
    %2035 = vmatprep.subr.mxu0 0.0
    %2036 = vmatpush2.xpose.msra.mxu0 0.0
    %2037 = vmatprep.subr.mxu0 0.0
    %2038 = vmatpush2.xpose.msra.mxu0 0.0
    %2039 = vmatprep.subr.mxu0 0.0
    %2040 = vmatpush2.xpose.msra.mxu0 0.0
    %2041 = vmatprep.subr.mxu0 0.0
    %2042 = vmatpush2.xpose.msra.mxu0 0.0
    %2043 = vmatprep.subr.mxu0 0.0
    %2044 = vmatpush2.xpose.msra.mxu0 0.0
    %2045 = vmatprep.mubr.f32.mxu0 0.0
    %2046 = vmatmul.mubr.f32.gmra.mxu0 %v1949
    %v2047 = vpop.f32.mrf.mxu0
    %v2048 = vadd.f32 0.0, %v2047
    %v2049 = vpop.f32.mrf.mxu0
    %2050 = vmatprep.mubr.f32.mxu0 0.0
    %2051 = vmatmul.mubr.f32.gmra.mxu0 %v1952
    %v2052 = vpop.f32.mrf.mxu0
    %v2053 = vadd.f32 0.0, %v2052
    %v2054 = vpop.f32.mrf.mxu0
    %2055 = vmatprep.mubr.f32.mxu0 0.0
    %2056 = vmatmul.mubr.f32.gmra.mxu0 %v1955
    %v2057 = vpop.f32.mrf.mxu0
    %v2058 = vadd.f32 0.0, %v2057
    %v2059 = vpop.f32.mrf.mxu0
    %2060 = vdwg.mxu0
    %vm2061 = vcmp.gt.f32.partialorder %v1595, 0.0
    %vm2062 = vcmp.gt.f32.partialorder %v1600, 0.0
    %vm2063 = vcmp.gt.f32.partialorder %v1605, 0.0
    %v2064 = vsel %vm2061, %v2048, 0.0
    %v2065 = vsel %vm2062, %v2053, 0.0
    %v2066 = vsel %vm2063, %v2058, 0.0
    %2067 = vxpose.xlu0.b32.start [1/16] %v1510, 128
    %2068 = vxpose.xlu0.b32.cont [2/16] %v1511, 128
    %2069 = vxpose.xlu0.b32.cont [3/16] %v1512, 128
    %2070 = vxpose.xlu0.b32.cont [4/16] 0.0, 128
    %2071 = vxpose.xlu0.b32.cont [5/16] 0.0, 128
    %2072 = vxpose.xlu0.b32.cont [6/16] 0.0, 128
    %2073 = vxpose.xlu0.b32.cont [7/16] 0.0, 128
    %2074 = vxpose.xlu0.b32.cont [8/16] 0.0, 128
    %2075 = vxpose.xlu0.b32.cont [9/16] 0.0, 128
    %2076 = vxpose.xlu0.b32.cont [10/16] 0.0, 128
    %2077 = vxpose.xlu0.b32.cont [11/16] 0.0, 128
    %2078 = vxpose.xlu0.b32.cont [12/16] 0.0, 128
    %2079 = vxpose.xlu0.b32.cont [13/16] 0.0, 128
    %2080 = vxpose.xlu0.b32.cont [14/16] 0.0, 128
    %2081 = vxpose.xlu0.b32.cont [15/16] 0.0, 128
    %2082 = vxpose.xlu0.b32.end [16/16] 0.0, 128
    %v2083 = vpop.trf.xlu0
    %v2084 = vpop.trf.xlu0
    %v2085 = vpop.trf.xlu0
    %v2086 = vpop.trf.xlu0
    %v2087 = vpop.trf.xlu0
    %v2088 = vpop.trf.xlu0
    %v2089 = vpop.trf.xlu0
    %v2090 = vpop.trf.xlu0
    %v2091 = vpop.trf.xlu0
    %v2092 = vpop.trf.xlu0
    %v2093 = vpop.trf.xlu0
    %v2094 = vpop.trf.xlu0
    %v2095 = vpop.trf.xlu0
    %v2096 = vpop.trf.xlu0
    %v2097 = vpop.trf.xlu0
    %v2098 = vpop.trf.xlu0
    %v2100 = vsel %vm580, %v2083, 0
    %v2103 = vsel %vm580, %v2084, 0
    %v2106 = vsel %vm580, %v2085, 0
    %v2109 = vsel %vm580, %v2086, 0
    %v2112 = vsel %vm580, %v2087, 0
    %v2115 = vsel %vm580, %v2088, 0
    %v2118 = vsel %vm580, %v2089, 0
    %v2121 = vsel %vm580, %v2090, 0
    %2123 = vmatprep.subr.mxu0 0.0
    %2124 = vmatpush1.msra.mxu0 0.0
    %2125 = vmatprep.subr.mxu0 0.0
    %2126 = vmatpush1.msra.mxu0 0.0
    %2127 = vmatprep.subr.mxu0 0.0
    %2128 = vmatpush1.msra.mxu0 0.0
    %2129 = vmatprep.subr.mxu0 0.0
    %2130 = vmatpush1.msra.mxu0 0.0
    %2131 = vmatprep.subr.mxu0 0.0
    %2132 = vmatpush1.msra.mxu0 0.0
    %2133 = vmatprep.subr.mxu0 0.0
    %2134 = vmatpush1.msra.mxu0 0.0
    %2135 = vmatprep.subr.mxu0 0.0
    %2136 = vmatpush1.msra.mxu0 0.0
    %2137 = vmatprep.subr.mxu0 0.0
    %2138 = vmatpush1.msra.mxu0 0.0
    %2139 = vmatprep.subr.mxu0 0.0
    %2140 = vmatpush1.msra.mxu0 0.0
    %2141 = vmatprep.subr.mxu0 0.0
    %2142 = vmatpush1.msra.mxu0 0.0
    %2143 = vmatprep.subr.mxu0 0.0
    %2144 = vmatpush1.msra.mxu0 0.0
    %2145 = vmatprep.subr.mxu0 0.0
    %2146 = vmatpush1.msra.mxu0 0.0
    %2147 = vmatprep.subr.mxu0 0.0
    %2148 = vmatpush1.msra.mxu0 0.0
    %2149 = vmatprep.subr.mxu0 0.0
    %2150 = vmatpush1.msra.mxu0 %v2066
    %2151 = vmatprep.subr.mxu0 0.0
    %2152 = vmatpush1.msra.mxu0 %v2065
    %2153 = vmatprep.subr.mxu0 0.0
    %2154 = vmatpush1.msra.mxu0 %v2064
    %2155 = vmatprep.subr.mxu0 0.0
    %2156 = vmatpush2.msra.mxu0 0.0
    %2157 = vmatprep.subr.mxu0 0.0
    %2158 = vmatpush2.msra.mxu0 0.0
    %2159 = vmatprep.subr.mxu0 0.0
    %2160 = vmatpush2.msra.mxu0 0.0
    %2161 = vmatprep.subr.mxu0 0.0
    %2162 = vmatpush2.msra.mxu0 0.0
    %2163 = vmatprep.subr.mxu0 0.0
    %2164 = vmatpush2.msra.mxu0 0.0
    %2165 = vmatprep.subr.mxu0 0.0
    %2166 = vmatpush2.msra.mxu0 0.0
    %2167 = vmatprep.subr.mxu0 0.0
    %2168 = vmatpush2.msra.mxu0 0.0
    %2169 = vmatprep.subr.mxu0 0.0
    %2170 = vmatpush2.msra.mxu0 0.0
    %2171 = vmatprep.subr.mxu0 0.0
    %2172 = vmatpush2.msra.mxu0 0.0
    %2173 = vmatprep.subr.mxu0 0.0
    %2174 = vmatpush2.msra.mxu0 0.0
    %2175 = vmatprep.subr.mxu0 0.0
    %2176 = vmatpush2.msra.mxu0 0.0
    %2177 = vmatprep.subr.mxu0 0.0
    %2178 = vmatpush2.msra.mxu0 0.0
    %2179 = vmatprep.subr.mxu0 0.0
    %2180 = vmatpush2.msra.mxu0 0.0
    %2181 = vmatprep.subr.mxu0 0.0
    %2182 = vmatpush2.msra.mxu0 0.0
    %2183 = vmatprep.subr.mxu0 0.0
    %2184 = vmatpush2.msra.mxu0 0.0
    %2185 = vmatprep.subr.mxu0 0.0
    %2186 = vmatpush2.msra.mxu0 0.0
    %2187 = vmatprep.mubr.f32.mxu0 0.0
    %2188 = vmatmul.mubr.f32.gmra.mxu0 %v2100
    %v2189 = vpop.f32.mrf.mxu0
    %v2190 = vadd.f32 0.0, %v2189
    %v2191 = vpop.f32.mrf.mxu0
    %2192 = vmatprep.mubr.f32.mxu0 0.0
    %2193 = vmatmul.mubr.f32.gmra.mxu0 %v2103
    %v2194 = vpop.f32.mrf.mxu0
    %v2195 = vadd.f32 0.0, %v2194
    %v2196 = vpop.f32.mrf.mxu0
    %2197 = vmatprep.mubr.f32.mxu0 0.0
    %2198 = vmatmul.mubr.f32.gmra.mxu0 %v2106
    %v2199 = vpop.f32.mrf.mxu0
    %v2200 = vadd.f32 0.0, %v2199
    %v2201 = vpop.f32.mrf.mxu0
    %2202 = vmatprep.mubr.f32.mxu0 0.0
    %2203 = vmatmul.mubr.f32.gmra.mxu0 %v2109
    %v2204 = vpop.f32.mrf.mxu0
    %v2205 = vadd.f32 0.0, %v2204
    %v2206 = vpop.f32.mrf.mxu0
    %2207 = vmatprep.mubr.f32.mxu0 0.0
    %2208 = vmatmul.mubr.f32.gmra.mxu0 %v2112
    %v2209 = vpop.f32.mrf.mxu0
    %v2210 = vadd.f32 0.0, %v2209
    %v2211 = vpop.f32.mrf.mxu0
    %2212 = vmatprep.mubr.f32.mxu0 0.0
    %2213 = vmatmul.mubr.f32.gmra.mxu0 %v2115
    %v2214 = vpop.f32.mrf.mxu0
    %v2215 = vadd.f32 0.0, %v2214
    %v2216 = vpop.f32.mrf.mxu0
    %2217 = vmatprep.mubr.f32.mxu0 0.0
    %2218 = vmatmul.mubr.f32.gmra.mxu0 %v2118
    %v2219 = vpop.f32.mrf.mxu0
    %v2220 = vadd.f32 0.0, %v2219
    %v2221 = vpop.f32.mrf.mxu0
    %2222 = vmatprep.mubr.f32.mxu0 0.0
    %2223 = vmatmul.mubr.f32.gmra.mxu0 %v2121
    %v2224 = vpop.f32.mrf.mxu0
    %v2225 = vadd.f32 0.0, %v2224
    %v2226 = vpop.f32.mrf.mxu0
    %2227 = vdwg.mxu0
    %v2228 = vsel %vm285, %v2064, 0.0
    %v2229 = vsel %vm285, %v2065, 0.0
    %v2230 = vadd.f32 %v2228, %v2229
    %v2231 = vsel %vm285, %v2066, 0.0
    %v2232 = vadd.f32 %v2230, %v2231
    %v2233 = vrot.slane %v2232, 4
    %v2234 = vadd.f32 %v2232, %v2233
    %v2235 = vrot.slane %v2234, 2
    %v2236 = vadd.f32 %v2234, %v2235
    %v2237 = vrot.slane %v2236, 1
    %v2238 = vadd.f32 %v2236, %v2237
    %v2240 = vsel %vm285, %v2064, 0
    %v2243 = vsel %vm285, %v2065, 0
    %v2246 = vsel %vm285, %v2066, 0
    %v2249 = vsel %vm285, %v1328, 0
    %v2252 = vsel %vm285, %v1329, 0
    %v2255 = vsel %vm285, %v1330, 0
    %v2258 = vsel %vm285, %v1331, 0
    %v2261 = vsel %vm285, %v1332, 0
    %v2264 = vsel %vm285, %v1333, 0
    %v2267 = vsel %vm285, %v1334, 0
    %v2270 = vsel %vm285, %v1335, 0
    %2272 = vmatprep.subr.mxu0 0.0
    %2273 = vmatpush1.xpose.msra.mxu0 0.0
    %2274 = vmatprep.subr.mxu0 0.0
    %2275 = vmatpush1.xpose.msra.mxu0 0.0
    %2276 = vmatprep.subr.mxu0 0.0
    %2277 = vmatpush1.xpose.msra.mxu0 0.0
    %2278 = vmatprep.subr.mxu0 0.0
    %2279 = vmatpush1.xpose.msra.mxu0 0.0
    %2280 = vmatprep.subr.mxu0 0.0
    %2281 = vmatpush1.xpose.msra.mxu0 0.0
    %2282 = vmatprep.subr.mxu0 0.0
    %2283 = vmatpush1.xpose.msra.mxu0 0.0
    %2284 = vmatprep.subr.mxu0 0.0
    %2285 = vmatpush1.xpose.msra.mxu0 0.0
    %2286 = vmatprep.subr.mxu0 0.0
    %2287 = vmatpush1.xpose.msra.mxu0 0.0
    %2288 = vmatprep.subr.mxu0 0.0
    %2289 = vmatpush1.xpose.msra.mxu0 %v2270
    %2290 = vmatprep.subr.mxu0 0.0
    %2291 = vmatpush1.xpose.msra.mxu0 %v2267
    %2292 = vmatprep.subr.mxu0 0.0
    %2293 = vmatpush1.xpose.msra.mxu0 %v2264
    %2294 = vmatprep.subr.mxu0 0.0
    %2295 = vmatpush1.xpose.msra.mxu0 %v2261
    %2296 = vmatprep.subr.mxu0 0.0
    %2297 = vmatpush1.xpose.msra.mxu0 %v2258
    %2298 = vmatprep.subr.mxu0 0.0
    %2299 = vmatpush1.xpose.msra.mxu0 %v2255
    %2300 = vmatprep.subr.mxu0 0.0
    %2301 = vmatpush1.xpose.msra.mxu0 %v2252
    %2302 = vmatprep.subr.mxu0 0.0
    %2303 = vmatpush1.xpose.msra.mxu0 %v2249
    %2304 = vmatprep.subr.mxu0 0.0
    %2305 = vmatpush2.xpose.msra.mxu0 0.0
    %2306 = vmatprep.subr.mxu0 0.0
    %2307 = vmatpush2.xpose.msra.mxu0 0.0
    %2308 = vmatprep.subr.mxu0 0.0
    %2309 = vmatpush2.xpose.msra.mxu0 0.0
    %2310 = vmatprep.subr.mxu0 0.0
    %2311 = vmatpush2.xpose.msra.mxu0 0.0
    %2312 = vmatprep.subr.mxu0 0.0
    %2313 = vmatpush2.xpose.msra.mxu0 0.0
    %2314 = vmatprep.subr.mxu0 0.0
    %2315 = vmatpush2.xpose.msra.mxu0 0.0
    %2316 = vmatprep.subr.mxu0 0.0
    %2317 = vmatpush2.xpose.msra.mxu0 0.0
    %2318 = vmatprep.subr.mxu0 0.0
    %2319 = vmatpush2.xpose.msra.mxu0 0.0
    %2320 = vmatprep.subr.mxu0 0.0
    %2321 = vmatpush2.xpose.msra.mxu0 0.0
    %2322 = vmatprep.subr.mxu0 0.0
    %2323 = vmatpush2.xpose.msra.mxu0 0.0
    %2324 = vmatprep.subr.mxu0 0.0
    %2325 = vmatpush2.xpose.msra.mxu0 0.0
    %2326 = vmatprep.subr.mxu0 0.0
    %2327 = vmatpush2.xpose.msra.mxu0 0.0
    %2328 = vmatprep.subr.mxu0 0.0
    %2329 = vmatpush2.xpose.msra.mxu0 0.0
    %2330 = vmatprep.subr.mxu0 0.0
    %2331 = vmatpush2.xpose.msra.mxu0 0.0
    %2332 = vmatprep.subr.mxu0 0.0
    %2333 = vmatpush2.xpose.msra.mxu0 0.0
    %2334 = vmatprep.subr.mxu0 0.0
    %2335 = vmatpush2.xpose.msra.mxu0 0.0
    %2336 = vmatprep.mubr.f32.mxu0 0.0
    %2337 = vmatmul.mubr.f32.gmra.mxu0 %v2240
    %v2338 = vpop.f32.mrf.mxu0
    %v2339 = vadd.f32 0.0, %v2338
    %v2340 = vpop.f32.mrf.mxu0
    %2341 = vmatprep.mubr.f32.mxu0 0.0
    %2342 = vmatmul.mubr.f32.gmra.mxu0 %v2243
    %v2343 = vpop.f32.mrf.mxu0
    %v2344 = vadd.f32 0.0, %v2343
    %v2345 = vpop.f32.mrf.mxu0
    %2346 = vmatprep.mubr.f32.mxu0 0.0
    %2347 = vmatmul.mubr.f32.gmra.mxu0 %v2246
    %v2348 = vpop.f32.mrf.mxu0
    %v2349 = vadd.f32 0.0, %v2348
    %v2350 = vpop.f32.mrf.mxu0
    %2351 = vdwg.mxu0
    %vm2352 = vcmp.gt.f32.partialorder %v1497, 0.0
    %vm2353 = vcmp.gt.f32.partialorder %v1502, 0.0
    %vm2354 = vcmp.gt.f32.partialorder %v1507, 0.0
    %v2355 = vsel %vm2352, %v2339, 0.0
    %v2356 = vsel %vm2353, %v2344, 0.0
    %v2357 = vsel %vm2354, %v2349, 0.0
    %2358 = vxpose.xlu0.b32.start [1/16] %v1387, 128
    %2359 = vxpose.xlu0.b32.cont [2/16] %v1388, 128
    %2360 = vxpose.xlu0.b32.cont [3/16] %v1389, 128
    %2361 = vxpose.xlu0.b32.cont [4/16] 0.0, 128
    %2362 = vxpose.xlu0.b32.cont [5/16] 0.0, 128
    %2363 = vxpose.xlu0.b32.cont [6/16] 0.0, 128
    %2364 = vxpose.xlu0.b32.cont [7/16] 0.0, 128
    %2365 = vxpose.xlu0.b32.cont [8/16] 0.0, 128
    %2366 = vxpose.xlu0.b32.cont [9/16] 0.0, 128
    %2367 = vxpose.xlu0.b32.cont [10/16] 0.0, 128
    %2368 = vxpose.xlu0.b32.cont [11/16] 0.0, 128
    %2369 = vxpose.xlu0.b32.cont [12/16] 0.0, 128
    %2370 = vxpose.xlu0.b32.cont [13/16] 0.0, 128
    %2371 = vxpose.xlu0.b32.cont [14/16] 0.0, 128
    %2372 = vxpose.xlu0.b32.cont [15/16] 0.0, 128
    %2373 = vxpose.xlu0.b32.end [16/16] 0.0, 128
    %v2374 = vpop.trf.xlu0
    %v2375 = vpop.trf.xlu0
    %v2376 = vpop.trf.xlu0
    %v2377 = vpop.trf.xlu0
    %v2378 = vpop.trf.xlu0
    %v2379 = vpop.trf.xlu0
    %v2380 = vpop.trf.xlu0
    %v2381 = vpop.trf.xlu0
    %v2382 = vpop.trf.xlu0
    %v2383 = vpop.trf.xlu0
    %v2384 = vpop.trf.xlu0
    %v2385 = vpop.trf.xlu0
    %v2386 = vpop.trf.xlu0
    %v2387 = vpop.trf.xlu0
    %v2388 = vpop.trf.xlu0
    %v2389 = vpop.trf.xlu0
    %v2391 = vsel %vm580, %v2374, 0
    %v2394 = vsel %vm580, %v2375, 0
    %v2397 = vsel %vm580, %v2376, 0
    %v2400 = vsel %vm580, %v2377, 0
    %2402 = vmatprep.subr.mxu0 0.0
    %2403 = vmatpush1.msra.mxu0 0.0
    %2404 = vmatprep.subr.mxu0 0.0
    %2405 = vmatpush1.msra.mxu0 0.0
    %2406 = vmatprep.subr.mxu0 0.0
    %2407 = vmatpush1.msra.mxu0 0.0
    %2408 = vmatprep.subr.mxu0 0.0
    %2409 = vmatpush1.msra.mxu0 0.0
    %2410 = vmatprep.subr.mxu0 0.0
    %2411 = vmatpush1.msra.mxu0 0.0
    %2412 = vmatprep.subr.mxu0 0.0
    %2413 = vmatpush1.msra.mxu0 0.0
    %2414 = vmatprep.subr.mxu0 0.0
    %2415 = vmatpush1.msra.mxu0 0.0
    %2416 = vmatprep.subr.mxu0 0.0
    %2417 = vmatpush1.msra.mxu0 0.0
    %2418 = vmatprep.subr.mxu0 0.0
    %2419 = vmatpush1.msra.mxu0 0.0
    %2420 = vmatprep.subr.mxu0 0.0
    %2421 = vmatpush1.msra.mxu0 0.0
    %2422 = vmatprep.subr.mxu0 0.0
    %2423 = vmatpush1.msra.mxu0 0.0
    %2424 = vmatprep.subr.mxu0 0.0
    %2425 = vmatpush1.msra.mxu0 0.0
    %2426 = vmatprep.subr.mxu0 0.0
    %2427 = vmatpush1.msra.mxu0 0.0
    %2428 = vmatprep.subr.mxu0 0.0
    %2429 = vmatpush1.msra.mxu0 %v2357
    %2430 = vmatprep.subr.mxu0 0.0
    %2431 = vmatpush1.msra.mxu0 %v2356
    %2432 = vmatprep.subr.mxu0 0.0
    %2433 = vmatpush1.msra.mxu0 %v2355
    %2434 = vmatprep.subr.mxu0 0.0
    %2435 = vmatpush2.msra.mxu0 0.0
    %2436 = vmatprep.subr.mxu0 0.0
    %2437 = vmatpush2.msra.mxu0 0.0
    %2438 = vmatprep.subr.mxu0 0.0
    %2439 = vmatpush2.msra.mxu0 0.0
    %2440 = vmatprep.subr.mxu0 0.0
    %2441 = vmatpush2.msra.mxu0 0.0
    %2442 = vmatprep.subr.mxu0 0.0
    %2443 = vmatpush2.msra.mxu0 0.0
    %2444 = vmatprep.subr.mxu0 0.0
    %2445 = vmatpush2.msra.mxu0 0.0
    %2446 = vmatprep.subr.mxu0 0.0
    %2447 = vmatpush2.msra.mxu0 0.0
    %2448 = vmatprep.subr.mxu0 0.0
    %2449 = vmatpush2.msra.mxu0 0.0
    %2450 = vmatprep.subr.mxu0 0.0
    %2451 = vmatpush2.msra.mxu0 0.0
    %2452 = vmatprep.subr.mxu0 0.0
    %2453 = vmatpush2.msra.mxu0 0.0
    %2454 = vmatprep.subr.mxu0 0.0
    %2455 = vmatpush2.msra.mxu0 0.0
    %2456 = vmatprep.subr.mxu0 0.0
    %2457 = vmatpush2.msra.mxu0 0.0
    %2458 = vmatprep.subr.mxu0 0.0
    %2459 = vmatpush2.msra.mxu0 0.0
    %2460 = vmatprep.subr.mxu0 0.0
    %2461 = vmatpush2.msra.mxu0 0.0
    %2462 = vmatprep.subr.mxu0 0.0
    %2463 = vmatpush2.msra.mxu0 0.0
    %2464 = vmatprep.subr.mxu0 0.0
    %2465 = vmatpush2.msra.mxu0 0.0
    %2466 = vmatprep.mubr.f32.mxu0 0.0
    %2467 = vmatmul.mubr.f32.gmra.mxu0 %v2391
    %v2468 = vpop.f32.mrf.mxu0
    %v2469 = vadd.f32 0.0, %v2468
    %v2470 = vpop.f32.mrf.mxu0
    %2471 = vmatprep.mubr.f32.mxu0 0.0
    %2472 = vmatmul.mubr.f32.gmra.mxu0 %v2394
    %v2473 = vpop.f32.mrf.mxu0
    %v2474 = vadd.f32 0.0, %v2473
    %v2475 = vpop.f32.mrf.mxu0
    %2476 = vmatprep.mubr.f32.mxu0 0.0
    %2477 = vmatmul.mubr.f32.gmra.mxu0 %v2397
    %v2478 = vpop.f32.mrf.mxu0
    %v2479 = vadd.f32 0.0, %v2478
    %v2480 = vpop.f32.mrf.mxu0
    %2481 = vmatprep.mubr.f32.mxu0 0.0
    %2482 = vmatmul.mubr.f32.gmra.mxu0 %v2400
    %v2483 = vpop.f32.mrf.mxu0
    %v2484 = vadd.f32 0.0, %v2483
    %v2485 = vpop.f32.mrf.mxu0
    %2486 = vdwg.mxu0
    %v2487 = vsel %vm285, %v2355, 0.0
    %v2488 = vsel %vm285, %v2356, 0.0
    %v2489 = vadd.f32 %v2487, %v2488
    %v2490 = vsel %vm285, %v2357, 0.0
    %v2491 = vadd.f32 %v2489, %v2490
    %v2492 = vrot.slane %v2491, 4
    %v2493 = vadd.f32 %v2491, %v2492
    %v2494 = vrot.slane %v2493, 2
    %v2495 = vadd.f32 %v2493, %v2494
    %v2496 = vrot.slane %v2495, 1
    %v2497 = vadd.f32 %v2495, %v2496
    %vm2498 = vcmp.ne.f32.partialorder %v2469, %v2469
    %vm2499 = vcmp.ne.f32.partialorder %v2474, %v2474
    %vm2500 = vcmp.ne.f32.partialorder %v2479, %v2479
    %vm2501 = vcmp.ne.f32.partialorder %v2484, %v2484
    %v2502 = vsel %vm2498, 0.0, %v2469
    %v2503 = vsel %vm2499, 0.0, %v2474
    %v2504 = vsel %vm2500, 0.0, %v2479
    %v2505 = vsel %vm2501, 0.0, %v2484
    %v2506 = vmul.f32 %v2502, %v1279
    %v2507 = vmul.f32 %v2503, %v1280
    %v2508 = vmul.f32 %v2504, %v1281
    %v2509 = vmul.f32 %v2505, %v1282
    %v2510 = vsub.f32 %v1287, %v2506
    %v2511 = vsub.f32 %v1288, %v2507
    %v2512 = vsub.f32 %v1289, %v2508
    %v2513 = vsub.f32 %v1290, %v2509
    %vm2514 = vcmp.ne.f32.partialorder %v2497, %v2497
    %v2515 = vsel %vm2514, 0.0, %v2497
    %v2516 = vmul.f32 %v2515, %v1293
    %v2517 = vsub.f32 %v1295, %v2516
    %vm2518 = vcmp.ne.f32.partialorder %v2190, %v2190
    %vm2519 = vcmp.ne.f32.partialorder %v2195, %v2195
    %vm2520 = vcmp.ne.f32.partialorder %v2200, %v2200
    %vm2521 = vcmp.ne.f32.partialorder %v2205, %v2205
    %vm2522 = vcmp.ne.f32.partialorder %v2210, %v2210
    %vm2523 = vcmp.ne.f32.partialorder %v2215, %v2215
    %vm2524 = vcmp.ne.f32.partialorder %v2220, %v2220
    %vm2525 = vcmp.ne.f32.partialorder %v2225, %v2225
    %v2526 = vsel %vm2518, 0.0, %v2190
    %v2527 = vsel %vm2519, 0.0, %v2195
    %v2528 = vsel %vm2520, 0.0, %v2200
    %v2529 = vsel %vm2521, 0.0, %v2205
    %v2530 = vsel %vm2522, 0.0, %v2210
    %v2531 = vsel %vm2523, 0.0, %v2215
    %v2532 = vsel %vm2524, 0.0, %v2220
    %v2533 = vsel %vm2525, 0.0, %v2225
    %v2534 = vmul.f32 %v2526, %v1312
    %v2535 = vmul.f32 %v2527, %v1313
    %v2536 = vmul.f32 %v2528, %v1314
    %v2537 = vmul.f32 %v2529, %v1315
    %v2538 = vmul.f32 %v2530, %v1316
    %v2539 = vmul.f32 %v2531, %v1317
    %v2540 = vmul.f32 %v2532, %v1318
    %v2541 = vmul.f32 %v2533, %v1319
    %v2542 = vsub.f32 %v1328, %v2534
    %v2543 = vsub.f32 %v1329, %v2535
    %v2544 = vsub.f32 %v1330, %v2536
    %v2545 = vsub.f32 %v1331, %v2537
    %v2546 = vsub.f32 %v1332, %v2538
    %v2547 = vsub.f32 %v1333, %v2539
    %v2548 = vsub.f32 %v1334, %v2540
    %v2549 = vsub.f32 %v1335, %v2541
    %vm2550 = vcmp.ne.f32.partialorder %v2238, %v2238
    %v2551 = vsel %vm2550, 0.0, %v2238
    %v2552 = vmul.f32 %v2551, %v1338
    %v2553 = vsub.f32 %v1340, %v2552
    %vm2554 = vcmp.ne.f32.partialorder %v1899, %v1899
    %vm2555 = vcmp.ne.f32.partialorder %v1904, %v1904
    %vm2556 = vcmp.ne.f32.partialorder %v1909, %v1909
    %vm2557 = vcmp.ne.f32.partialorder %v1914, %v1914
    %vm2558 = vcmp.ne.f32.partialorder %v1919, %v1919
    %vm2559 = vcmp.ne.f32.partialorder %v1924, %v1924
    %vm2560 = vcmp.ne.f32.partialorder %v1929, %v1929
    %vm2561 = vcmp.ne.f32.partialorder %v1934, %v1934
    %v2562 = vsel %vm2554, 0.0, %v1899
    %v2563 = vsel %vm2555, 0.0, %v1904
    %v2564 = vsel %vm2556, 0.0, %v1909
    %v2565 = vsel %vm2557, 0.0, %v1914
    %v2566 = vsel %vm2558, 0.0, %v1919
    %v2567 = vsel %vm2559, 0.0, %v1924
    %v2568 = vsel %vm2560, 0.0, %v1929
    %v2569 = vsel %vm2561, 0.0, %v1934
    %v2570 = vmul.f32 %v2562, %v1357
    %v2571 = vmul.f32 %v2563, %v1358
    %v2572 = vmul.f32 %v2564, %v1359
    %v2573 = vmul.f32 %v2565, %v1360
    %v2574 = vmul.f32 %v2566, %v1361
    %v2575 = vmul.f32 %v2567, %v1362
    %v2576 = vmul.f32 %v2568, %v1363
    %v2577 = vmul.f32 %v2569, %v1364
    %v2578 = vsub.f32 %v1373, %v2570
    %v2579 = vsub.f32 %v1374, %v2571
    %v2580 = vsub.f32 %v1375, %v2572
    %v2581 = vsub.f32 %v1376, %v2573
    %v2582 = vsub.f32 %v1377, %v2574
    %v2583 = vsub.f32 %v1378, %v2575
    %v2584 = vsub.f32 %v1379, %v2576
    %v2585 = vsub.f32 %v1380, %v2577
    %vm2586 = vcmp.ne.f32.partialorder %v1947, %v1947
    %v2587 = vsel %vm2586, 0.0, %v1947
    %v2588 = vmul.f32 %v2587, %v1383
    %v2589 = vsub.f32 %v1385, %v2588
    %s2590 = scalar_lea.vmem %s2, 48
    %v2591 = vld [vmem:[%s2590] sm:$0xff]
    %v2592 = vld [vmem:[%s2590 + $0x8] sm:$0xff]
    %v2593 = vld [vmem:[%s2590 + $0x10] sm:$0xff]
    %s2594 = scalar_lea.vmem %s3, 48
    %v2595 = vld [vmem:[%s2594] sm:$0xff]
    %v2596 = vld [vmem:[%s2594 + $0x8] sm:$0xff]
    %v2597 = vld [vmem:[%s2594 + $0x10] sm:$0xff]
    %v2598 = vcvt.f32.s32.to.zero.pseudo %v2595
    %v2599 = vcvt.f32.s32.to.zero.pseudo %v2596
    %v2600 = vcvt.f32.s32.to.zero.pseudo %v2597
    %2601 = vset.pattern.permute.xlu0 1
    %2602 = vperm.xlu0 %2601, %v2598
    %v2603 = vpop.permute.xlu0 %2602
    %2604 = vset.pattern.permute.xlu0 1
    %2605 = vperm.xlu0 %2604, %v2599
    %v2606 = vpop.permute.xlu0 %2605
    %2607 = vset.pattern.permute.xlu0 1
    %2608 = vperm.xlu0 %2607, %v2600
    %v2609 = vpop.permute.xlu0 %2608
    %vm2610 = vcmp.eq.s32.totalorder %v129, %v2603
    %vm2611 = vcmp.eq.s32.totalorder %v129, %v2606
    %vm2612 = vcmp.eq.s32.totalorder %v129, %v2609
    %v2613 = vsel %vm2610, 1, 0
    %v2614 = vsel %vm2611, 1, 0
    %v2615 = vsel %vm2612, 1, 0
    %v2616 = vcvt.s32.f32 %v2613
    %v2617 = vcvt.s32.f32 %v2614
    %v2618 = vcvt.s32.f32 %v2615
    %v2620 = vlaneseq
    %v2621 = vshrl.u32 %v2620, 7
    %v2622 = vsub.s32 0, %v2621
    %v2623 = vrot.slane %v2517, %v2622
    %v2626 = vsel %vm186, %v2591, 0
    %v2629 = vsel %vm186, %v2592, 0
    %v2632 = vsel %vm186, %v2593, 0
    %2634 = vmatprep.subr.mxu0 0.0
    %2635 = vmatpush1.msra.mxu0 0.0
    %2636 = vmatprep.subr.mxu0 0.0
    %2637 = vmatpush1.msra.mxu0 0.0
    %2638 = vmatprep.subr.mxu0 0.0
    %2639 = vmatpush1.msra.mxu0 0.0
    %2640 = vmatprep.subr.mxu0 0.0
    %2641 = vmatpush1.msra.mxu0 0.0
    %2642 = vmatprep.subr.mxu0 0.0
    %2643 = vmatpush1.msra.mxu0 0.0
    %2644 = vmatprep.subr.mxu0 0.0
    %2645 = vmatpush1.msra.mxu0 0.0
    %2646 = vmatprep.subr.mxu0 0.0
    %2647 = vmatpush1.msra.mxu0 0.0
    %2648 = vmatprep.subr.mxu0 0.0
    %2649 = vmatpush1.msra.mxu0 0.0
    %2650 = vmatprep.subr.mxu0 0.0
    %2651 = vmatpush1.msra.mxu0 0.0
    %2652 = vmatprep.subr.mxu0 0.0
    %2653 = vmatpush1.msra.mxu0 0.0
    %2654 = vmatprep.subr.mxu0 0.0
    %2655 = vmatpush1.msra.mxu0 0.0
    %2656 = vmatprep.subr.mxu0 0.0
    %2657 = vmatpush1.msra.mxu0 0.0
    %2658 = vmatprep.subr.mxu0 0.0
    %2659 = vmatpush1.msra.mxu0 %v2513
    %2660 = vmatprep.subr.mxu0 0.0
    %2661 = vmatpush1.msra.mxu0 %v2512
    %2662 = vmatprep.subr.mxu0 0.0
    %2663 = vmatpush1.msra.mxu0 %v2511
    %2664 = vmatprep.subr.mxu0 0.0
    %2665 = vmatpush1.msra.mxu0 %v2510
    %2666 = vmatprep.subr.mxu0 0.0
    %2667 = vmatpush2.msra.mxu0 0.0
    %2668 = vmatprep.subr.mxu0 0.0
    %2669 = vmatpush2.msra.mxu0 0.0
    %2670 = vmatprep.subr.mxu0 0.0
    %2671 = vmatpush2.msra.mxu0 0.0
    %2672 = vmatprep.subr.mxu0 0.0
    %2673 = vmatpush2.msra.mxu0 0.0
    %2674 = vmatprep.subr.mxu0 0.0
    %2675 = vmatpush2.msra.mxu0 0.0
    %2676 = vmatprep.subr.mxu0 0.0
    %2677 = vmatpush2.msra.mxu0 0.0
    %2678 = vmatprep.subr.mxu0 0.0
    %2679 = vmatpush2.msra.mxu0 0.0
    %2680 = vmatprep.subr.mxu0 0.0
    %2681 = vmatpush2.msra.mxu0 0.0
    %2682 = vmatprep.subr.mxu0 0.0
    %2683 = vmatpush2.msra.mxu0 0.0
    %2684 = vmatprep.subr.mxu0 0.0
    %2685 = vmatpush2.msra.mxu0 0.0
    %2686 = vmatprep.subr.mxu0 0.0
    %2687 = vmatpush2.msra.mxu0 0.0
    %2688 = vmatprep.subr.mxu0 0.0
    %2689 = vmatpush2.msra.mxu0 0.0
    %2690 = vmatprep.subr.mxu0 0.0
    %2691 = vmatpush2.msra.mxu0 0.0
    %2692 = vmatprep.subr.mxu0 0.0
    %2693 = vmatpush2.msra.mxu0 0.0
    %2694 = vmatprep.subr.mxu0 0.0
    %2695 = vmatpush2.msra.mxu0 0.0
    %2696 = vmatprep.subr.mxu0 0.0
    %2697 = vmatpush2.msra.mxu0 0.0
    %2698 = vmatprep.mubr.f32.mxu0 0.0
    %2699 = vmatmul.mubr.f32.gmra.mxu0 %v2626
    %v2700 = vpop.f32.mrf.mxu0
    %v2701 = vadd.f32 %v2623, %v2700
    %v2702 = vpop.f32.mrf.mxu0
    %2703 = vmatprep.mubr.f32.mxu0 0.0
    %2704 = vmatmul.mubr.f32.gmra.mxu0 %v2629
    %v2705 = vpop.f32.mrf.mxu0
    %v2706 = vadd.f32 %v2623, %v2705
    %v2707 = vpop.f32.mrf.mxu0
    %2708 = vmatprep.mubr.f32.mxu0 0.0
    %2709 = vmatmul.mubr.f32.gmra.mxu0 %v2632
    %v2710 = vpop.f32.mrf.mxu0
    %v2711 = vadd.f32 %v2623, %v2710
    %v2712 = vpop.f32.mrf.mxu0
    %2713 = vdwg.mxu0
    %v2714 = vmax.f32 %v2701, 0.0
    %v2715 = vmax.f32 %v2706, 0.0
    %v2716 = vmax.f32 %v2711, 0.0
    %v2718 = vlaneseq
    %v2719 = vshrl.u32 %v2718, 7
    %v2720 = vsub.s32 0, %v2719
    %v2721 = vrot.slane %v2553, %v2720
    %v2724 = vsel %vm285, %v2714, 0
    %v2727 = vsel %vm285, %v2715, 0
    %v2730 = vsel %vm285, %v2716, 0
    %2732 = vmatprep.subr.mxu0 0.0
    %2733 = vmatpush1.msra.mxu0 0.0
    %2734 = vmatprep.subr.mxu0 0.0
    %2735 = vmatpush1.msra.mxu0 0.0
    %2736 = vmatprep.subr.mxu0 0.0
    %2737 = vmatpush1.msra.mxu0 0.0
    %2738 = vmatprep.subr.mxu0 0.0
    %2739 = vmatpush1.msra.mxu0 0.0
    %2740 = vmatprep.subr.mxu0 0.0
    %2741 = vmatpush1.msra.mxu0 0.0
    %2742 = vmatprep.subr.mxu0 0.0
    %2743 = vmatpush1.msra.mxu0 0.0
    %2744 = vmatprep.subr.mxu0 0.0
    %2745 = vmatpush1.msra.mxu0 0.0
    %2746 = vmatprep.subr.mxu0 0.0
    %2747 = vmatpush1.msra.mxu0 0.0
    %2748 = vmatprep.subr.mxu0 0.0
    %2749 = vmatpush1.msra.mxu0 %v2549
    %2750 = vmatprep.subr.mxu0 0.0
    %2751 = vmatpush1.msra.mxu0 %v2548
    %2752 = vmatprep.subr.mxu0 0.0
    %2753 = vmatpush1.msra.mxu0 %v2547
    %2754 = vmatprep.subr.mxu0 0.0
    %2755 = vmatpush1.msra.mxu0 %v2546
    %2756 = vmatprep.subr.mxu0 0.0
    %2757 = vmatpush1.msra.mxu0 %v2545
    %2758 = vmatprep.subr.mxu0 0.0
    %2759 = vmatpush1.msra.mxu0 %v2544
    %2760 = vmatprep.subr.mxu0 0.0
    %2761 = vmatpush1.msra.mxu0 %v2543
    %2762 = vmatprep.subr.mxu0 0.0
    %2763 = vmatpush1.msra.mxu0 %v2542
    %2764 = vmatprep.subr.mxu0 0.0
    %2765 = vmatpush2.msra.mxu0 0.0
    %2766 = vmatprep.subr.mxu0 0.0
    %2767 = vmatpush2.msra.mxu0 0.0
    %2768 = vmatprep.subr.mxu0 0.0
    %2769 = vmatpush2.msra.mxu0 0.0
    %2770 = vmatprep.subr.mxu0 0.0
    %2771 = vmatpush2.msra.mxu0 0.0
    %2772 = vmatprep.subr.mxu0 0.0
    %2773 = vmatpush2.msra.mxu0 0.0
    %2774 = vmatprep.subr.mxu0 0.0
    %2775 = vmatpush2.msra.mxu0 0.0
    %2776 = vmatprep.subr.mxu0 0.0
    %2777 = vmatpush2.msra.mxu0 0.0
    %2778 = vmatprep.subr.mxu0 0.0
    %2779 = vmatpush2.msra.mxu0 0.0
    %2780 = vmatprep.subr.mxu0 0.0
    %2781 = vmatpush2.msra.mxu0 0.0
    %2782 = vmatprep.subr.mxu0 0.0
    %2783 = vmatpush2.msra.mxu0 0.0
    %2784 = vmatprep.subr.mxu0 0.0
    %2785 = vmatpush2.msra.mxu0 0.0
    %2786 = vmatprep.subr.mxu0 0.0
    %2787 = vmatpush2.msra.mxu0 0.0
    %2788 = vmatprep.subr.mxu0 0.0
    %2789 = vmatpush2.msra.mxu0 0.0
    %2790 = vmatprep.subr.mxu0 0.0
    %2791 = vmatpush2.msra.mxu0 0.0
    %2792 = vmatprep.subr.mxu0 0.0
    %2793 = vmatpush2.msra.mxu0 0.0
    %2794 = vmatprep.subr.mxu0 0.0
    %2795 = vmatpush2.msra.mxu0 0.0
    %2796 = vmatprep.mubr.f32.mxu0 0.0
    %2797 = vmatmul.mubr.f32.gmra.mxu0 %v2724
    %v2798 = vpop.f32.mrf.mxu0
    %v2799 = vadd.f32 %v2721, %v2798
    %v2800 = vpop.f32.mrf.mxu0
    %2801 = vmatprep.mubr.f32.mxu0 0.0
    %2802 = vmatmul.mubr.f32.gmra.mxu0 %v2727
    %v2803 = vpop.f32.mrf.mxu0
    %v2804 = vadd.f32 %v2721, %v2803
    %v2805 = vpop.f32.mrf.mxu0
    %2806 = vmatprep.mubr.f32.mxu0 0.0
    %2807 = vmatmul.mubr.f32.gmra.mxu0 %v2730
    %v2808 = vpop.f32.mrf.mxu0
    %v2809 = vadd.f32 %v2721, %v2808
    %v2810 = vpop.f32.mrf.mxu0
    %2811 = vdwg.mxu0
    %v2812 = vmax.f32 %v2799, 0.0
    %v2813 = vmax.f32 %v2804, 0.0
    %v2814 = vmax.f32 %v2809, 0.0
    %v2816 = vlaneseq
    %v2817 = vshrl.u32 %v2816, 7
    %v2818 = vsub.s32 0, %v2817
    %v2819 = vrot.slane %v2589, %v2818
    %v2822 = vsel %vm285, %v2812, 0
    %v2825 = vsel %vm285, %v2813, 0
    %v2828 = vsel %vm285, %v2814, 0
    %2830 = vmatprep.subr.mxu0 0.0
    %2831 = vmatpush1.msra.mxu0 0.0
    %2832 = vmatprep.subr.mxu0 0.0
    %2833 = vmatpush1.msra.mxu0 0.0
    %2834 = vmatprep.subr.mxu0 0.0
    %2835 = vmatpush1.msra.mxu0 0.0
    %2836 = vmatprep.subr.mxu0 0.0
    %2837 = vmatpush1.msra.mxu0 0.0
    %2838 = vmatprep.subr.mxu0 0.0
    %2839 = vmatpush1.msra.mxu0 0.0
    %2840 = vmatprep.subr.mxu0 0.0
    %2841 = vmatpush1.msra.mxu0 0.0
    %2842 = vmatprep.subr.mxu0 0.0
    %2843 = vmatpush1.msra.mxu0 0.0
    %2844 = vmatprep.subr.mxu0 0.0
    %2845 = vmatpush1.msra.mxu0 0.0
    %2846 = vmatprep.subr.mxu0 0.0
    %2847 = vmatpush1.msra.mxu0 %v2585
    %2848 = vmatprep.subr.mxu0 0.0
    %2849 = vmatpush1.msra.mxu0 %v2584
    %2850 = vmatprep.subr.mxu0 0.0
    %2851 = vmatpush1.msra.mxu0 %v2583
    %2852 = vmatprep.subr.mxu0 0.0
    %2853 = vmatpush1.msra.mxu0 %v2582
    %2854 = vmatprep.subr.mxu0 0.0
    %2855 = vmatpush1.msra.mxu0 %v2581
    %2856 = vmatprep.subr.mxu0 0.0
    %2857 = vmatpush1.msra.mxu0 %v2580
    %2858 = vmatprep.subr.mxu0 0.0
    %2859 = vmatpush1.msra.mxu0 %v2579
    %2860 = vmatprep.subr.mxu0 0.0
    %2861 = vmatpush1.msra.mxu0 %v2578
    %2862 = vmatprep.subr.mxu0 0.0
    %2863 = vmatpush2.msra.mxu0 0.0
    %2864 = vmatprep.subr.mxu0 0.0
    %2865 = vmatpush2.msra.mxu0 0.0
    %2866 = vmatprep.subr.mxu0 0.0
    %2867 = vmatpush2.msra.mxu0 0.0
    %2868 = vmatprep.subr.mxu0 0.0
    %2869 = vmatpush2.msra.mxu0 0.0
    %2870 = vmatprep.subr.mxu0 0.0
    %2871 = vmatpush2.msra.mxu0 0.0
    %2872 = vmatprep.subr.mxu0 0.0
    %2873 = vmatpush2.msra.mxu0 0.0
    %2874 = vmatprep.subr.mxu0 0.0
    %2875 = vmatpush2.msra.mxu0 0.0
    %2876 = vmatprep.subr.mxu0 0.0
    %2877 = vmatpush2.msra.mxu0 0.0
    %2878 = vmatprep.subr.mxu0 0.0
    %2879 = vmatpush2.msra.mxu0 0.0
    %2880 = vmatprep.subr.mxu0 0.0
    %2881 = vmatpush2.msra.mxu0 0.0
    %2882 = vmatprep.subr.mxu0 0.0
    %2883 = vmatpush2.msra.mxu0 0.0
    %2884 = vmatprep.subr.mxu0 0.0
    %2885 = vmatpush2.msra.mxu0 0.0
    %2886 = vmatprep.subr.mxu0 0.0
    %2887 = vmatpush2.msra.mxu0 0.0
    %2888 = vmatprep.subr.mxu0 0.0
    %2889 = vmatpush2.msra.mxu0 0.0
    %2890 = vmatprep.subr.mxu0 0.0
    %2891 = vmatpush2.msra.mxu0 0.0
    %2892 = vmatprep.subr.mxu0 0.0
    %2893 = vmatpush2.msra.mxu0 0.0
    %2894 = vmatprep.mubr.f32.mxu0 0.0
    %2895 = vmatmul.mubr.f32.gmra.mxu0 %v2822
    %v2896 = vpop.f32.mrf.mxu0
    %v2897 = vadd.f32 %v2819, %v2896
    %v2898 = vpop.f32.mrf.mxu0
    %2899 = vmatprep.mubr.f32.mxu0 0.0
    %2900 = vmatmul.mubr.f32.gmra.mxu0 %v2825
    %v2901 = vpop.f32.mrf.mxu0
    %v2902 = vadd.f32 %v2819, %v2901
    %v2903 = vpop.f32.mrf.mxu0
    %2904 = vmatprep.mubr.f32.mxu0 0.0
    %2905 = vmatmul.mubr.f32.gmra.mxu0 %v2828
    %v2906 = vpop.f32.mrf.mxu0
    %v2907 = vadd.f32 %v2819, %v2906
    %v2908 = vpop.f32.mrf.mxu0
    %2909 = vdwg.mxu0
    %v2910 = vmul.f32 %v2897, %v2616
    %v2911 = vmul.f32 %v2902, %v2617
    %v2912 = vmul.f32 %v2907, %v2618
    %v2913 = vsel %vm476, %v2910, 0.0
    %2914 = vadd.xlane.f32.xlu0 %v2913
    %v2915 = vpop.xlane.xlu0 %2914
    %v2916 = vsel %vm476, %v2911, 0.0
    %2917 = vadd.xlane.f32.xlu0 %v2916
    %v2918 = vpop.xlane.xlu0 %2917
    %v2919 = vsel %vm476, %v2912, 0.0
    %2920 = vadd.xlane.f32.xlu0 %v2919
    %v2921 = vpop.xlane.xlu0 %2920
    %v2922 = vsub.f32 %v2915, %v2595
    %v2923 = vsub.f32 %v2918, %v2596
    %v2924 = vsub.f32 %v2921, %v2597
    %s2925 = sld [smem:[#allocation2 + $0x2]]
    %v2926 = vstv %s2925
    %vm2927 = vcmp.lt.s32.totalorder %v125, %v2926
    %vm2928 = vcmp.lt.s32.totalorder %v126, %v2926
    %vm2929 = vcmp.lt.s32.totalorder %v127, %v2926
    %v2930 = vsel %vm2927, %v2922, 0.0
    %v2931 = vsel %vm2928, %v2923, 0.0
    %v2932 = vsel %vm2929, %v2924, 0.0
    %v2933 = vmul.f32 %v2930, %v2930
    %v2934 = vmul.f32 %v2931, %v2931
    %v2935 = vmul.f32 %v2932, %v2932
    %v2936 = vsel %vm500, %v2933, 0.0
    %v2937 = vsel %vm500, %v2934, 0.0
    %v2938 = vadd.f32 %v2936, %v2937
    %v2939 = vsel %vm500, %v2935, 0.0
    %v2940 = vadd.f32 %v2938, %v2939
    %2941 = vadd.xlane.f32.xlu0 %v2940
    %v2942 = vpop.xlane.xlu0 %2941
    %v2943 = vrot.slane %v2942, 4
    %v2944 = vadd.f32 %v2942, %v2943
    %v2945 = vrot.slane %v2944, 2
    %v2946 = vadd.f32 %v2944, %v2945
    %v2947 = vrot.slane %v2946, 1
    %v2948 = vadd.f32 %v2946, %v2947
    %s2949 = vtos %v2948
    %v2950 = vstv %s2949
    %s2951 = sld [smem:[#allocation6 + $0x2]]
    %v2952 = vstv %s2951
    %v2953 = vmul.f32 %v2950, %v2952
    %vm2954 = vcmp.eq.s32.totalorder %v129, 2
    %v2955 = vsel %vm2954, %v2953, %v1751
    %v2956 = vsel %vm521, %v2922, 0.0
    %v2957 = vsel %vm522, %v2923, 0.0
    %v2958 = vsel %vm523, %v2924, 0.0
    %v2959 = vmul.f32 %v2956, 0.25
    %v2960 = vmul.f32 %v2957, 0.25
    %v2961 = vmul.f32 %v2958, 0.25
    %2963 = vset.pattern.permute.xlu0 0
    %2964 = vperm.xlu0 %2963, %v2959
    %v2965 = vpop.permute.xlu0 %2964
    %2968 = vset.pattern.permute.xlu0 0
    %2969 = vperm.xlu0 %2968, %v2960
    %v2970 = vpop.permute.xlu0 %2969
    %2973 = vset.pattern.permute.xlu0 0
    %2974 = vperm.xlu0 %2973, %v2961
    %v2975 = vpop.permute.xlu0 %2974
    %v2977 = vmul.f32 %v2965, %v2616
    %v2978 = vmul.f32 %v2970, %v2617
    %v2979 = vmul.f32 %v2975, %v2618
    %2980 = vxpose.xlu0.b32.start [1/16] %v2812, 128
    %2981 = vxpose.xlu0.b32.cont [2/16] %v2813, 128
    %2982 = vxpose.xlu0.b32.cont [3/16] %v2814, 128
    %2983 = vxpose.xlu0.b32.cont [4/16] 0.0, 128
    %2984 = vxpose.xlu0.b32.cont [5/16] 0.0, 128
    %2985 = vxpose.xlu0.b32.cont [6/16] 0.0, 128
    %2986 = vxpose.xlu0.b32.cont [7/16] 0.0, 128
    %2987 = vxpose.xlu0.b32.cont [8/16] 0.0, 128
    %2988 = vxpose.xlu0.b32.cont [9/16] 0.0, 128
    %2989 = vxpose.xlu0.b32.cont [10/16] 0.0, 128
    %2990 = vxpose.xlu0.b32.cont [11/16] 0.0, 128
    %2991 = vxpose.xlu0.b32.cont [12/16] 0.0, 128
    %2992 = vxpose.xlu0.b32.cont [13/16] 0.0, 128
    %2993 = vxpose.xlu0.b32.cont [14/16] 0.0, 128
    %2994 = vxpose.xlu0.b32.cont [15/16] 0.0, 128
    %2995 = vxpose.xlu0.b32.end [16/16] 0.0, 128
    %v2996 = vpop.trf.xlu0
    %v2997 = vpop.trf.xlu0
    %v2998 = vpop.trf.xlu0
    %v2999 = vpop.trf.xlu0
    %v3000 = vpop.trf.xlu0
    %v3001 = vpop.trf.xlu0
    %v3002 = vpop.trf.xlu0
    %v3003 = vpop.trf.xlu0
    %v3004 = vpop.trf.xlu0
    %v3005 = vpop.trf.xlu0
    %v3006 = vpop.trf.xlu0
    %v3007 = vpop.trf.xlu0
    %v3008 = vpop.trf.xlu0
    %v3009 = vpop.trf.xlu0
    %v3010 = vpop.trf.xlu0
    %v3011 = vpop.trf.xlu0
    %v3013 = vsel %vm580, %v2996, 0
    %v3016 = vsel %vm580, %v2997, 0
    %v3019 = vsel %vm580, %v2998, 0
    %v3022 = vsel %vm580, %v2999, 0
    %v3025 = vsel %vm580, %v3000, 0
    %v3028 = vsel %vm580, %v3001, 0
    %v3031 = vsel %vm580, %v3002, 0
    %v3034 = vsel %vm580, %v3003, 0
    %3036 = vmatprep.subr.mxu0 0.0
    %3037 = vmatpush1.msra.mxu0 0.0
    %3038 = vmatprep.subr.mxu0 0.0
    %3039 = vmatpush1.msra.mxu0 0.0
    %3040 = vmatprep.subr.mxu0 0.0
    %3041 = vmatpush1.msra.mxu0 0.0
    %3042 = vmatprep.subr.mxu0 0.0
    %3043 = vmatpush1.msra.mxu0 0.0
    %3044 = vmatprep.subr.mxu0 0.0
    %3045 = vmatpush1.msra.mxu0 0.0
    %3046 = vmatprep.subr.mxu0 0.0
    %3047 = vmatpush1.msra.mxu0 0.0
    %3048 = vmatprep.subr.mxu0 0.0
    %3049 = vmatpush1.msra.mxu0 0.0
    %3050 = vmatprep.subr.mxu0 0.0
    %3051 = vmatpush1.msra.mxu0 0.0
    %3052 = vmatprep.subr.mxu0 0.0
    %3053 = vmatpush1.msra.mxu0 0.0
    %3054 = vmatprep.subr.mxu0 0.0
    %3055 = vmatpush1.msra.mxu0 0.0
    %3056 = vmatprep.subr.mxu0 0.0
    %3057 = vmatpush1.msra.mxu0 0.0
    %3058 = vmatprep.subr.mxu0 0.0
    %3059 = vmatpush1.msra.mxu0 0.0
    %3060 = vmatprep.subr.mxu0 0.0
    %3061 = vmatpush1.msra.mxu0 0.0
    %3062 = vmatprep.subr.mxu0 0.0
    %3063 = vmatpush1.msra.mxu0 %v2979
    %3064 = vmatprep.subr.mxu0 0.0
    %3065 = vmatpush1.msra.mxu0 %v2978
    %3066 = vmatprep.subr.mxu0 0.0
    %3067 = vmatpush1.msra.mxu0 %v2977
    %3068 = vmatprep.subr.mxu0 0.0
    %3069 = vmatpush2.msra.mxu0 0.0
    %3070 = vmatprep.subr.mxu0 0.0
    %3071 = vmatpush2.msra.mxu0 0.0
    %3072 = vmatprep.subr.mxu0 0.0
    %3073 = vmatpush2.msra.mxu0 0.0
    %3074 = vmatprep.subr.mxu0 0.0
    %3075 = vmatpush2.msra.mxu0 0.0
    %3076 = vmatprep.subr.mxu0 0.0
    %3077 = vmatpush2.msra.mxu0 0.0
    %3078 = vmatprep.subr.mxu0 0.0
    %3079 = vmatpush2.msra.mxu0 0.0
    %3080 = vmatprep.subr.mxu0 0.0
    %3081 = vmatpush2.msra.mxu0 0.0
    %3082 = vmatprep.subr.mxu0 0.0
    %3083 = vmatpush2.msra.mxu0 0.0
    %3084 = vmatprep.subr.mxu0 0.0
    %3085 = vmatpush2.msra.mxu0 0.0
    %3086 = vmatprep.subr.mxu0 0.0
    %3087 = vmatpush2.msra.mxu0 0.0
    %3088 = vmatprep.subr.mxu0 0.0
    %3089 = vmatpush2.msra.mxu0 0.0
    %3090 = vmatprep.subr.mxu0 0.0
    %3091 = vmatpush2.msra.mxu0 0.0
    %3092 = vmatprep.subr.mxu0 0.0
    %3093 = vmatpush2.msra.mxu0 0.0
    %3094 = vmatprep.subr.mxu0 0.0
    %3095 = vmatpush2.msra.mxu0 0.0
    %3096 = vmatprep.subr.mxu0 0.0
    %3097 = vmatpush2.msra.mxu0 0.0
    %3098 = vmatprep.subr.mxu0 0.0
    %3099 = vmatpush2.msra.mxu0 0.0
    %3100 = vmatprep.mubr.f32.mxu0 0.0
    %3101 = vmatmul.mubr.f32.gmra.mxu0 %v3013
    %v3102 = vpop.f32.mrf.mxu0
    %v3103 = vadd.f32 0.0, %v3102
    %v3104 = vpop.f32.mrf.mxu0
    %3105 = vmatprep.mubr.f32.mxu0 0.0
    %3106 = vmatmul.mubr.f32.gmra.mxu0 %v3016
    %v3107 = vpop.f32.mrf.mxu0
    %v3108 = vadd.f32 0.0, %v3107
    %v3109 = vpop.f32.mrf.mxu0
    %3110 = vmatprep.mubr.f32.mxu0 0.0
    %3111 = vmatmul.mubr.f32.gmra.mxu0 %v3019
    %v3112 = vpop.f32.mrf.mxu0
    %v3113 = vadd.f32 0.0, %v3112
    %v3114 = vpop.f32.mrf.mxu0
    %3115 = vmatprep.mubr.f32.mxu0 0.0
    %3116 = vmatmul.mubr.f32.gmra.mxu0 %v3022
    %v3117 = vpop.f32.mrf.mxu0
    %v3118 = vadd.f32 0.0, %v3117
    %v3119 = vpop.f32.mrf.mxu0
    %3120 = vmatprep.mubr.f32.mxu0 0.0
    %3121 = vmatmul.mubr.f32.gmra.mxu0 %v3025
    %v3122 = vpop.f32.mrf.mxu0
    %v3123 = vadd.f32 0.0, %v3122
    %v3124 = vpop.f32.mrf.mxu0
    %3125 = vmatprep.mubr.f32.mxu0 0.0
    %3126 = vmatmul.mubr.f32.gmra.mxu0 %v3028
    %v3127 = vpop.f32.mrf.mxu0
    %v3128 = vadd.f32 0.0, %v3127
    %v3129 = vpop.f32.mrf.mxu0
    %3130 = vmatprep.mubr.f32.mxu0 0.0
    %3131 = vmatmul.mubr.f32.gmra.mxu0 %v3031
    %v3132 = vpop.f32.mrf.mxu0
    %v3133 = vadd.f32 0.0, %v3132
    %v3134 = vpop.f32.mrf.mxu0
    %3135 = vmatprep.mubr.f32.mxu0 0.0
    %3136 = vmatmul.mubr.f32.gmra.mxu0 %v3034
    %v3137 = vpop.f32.mrf.mxu0
    %v3138 = vadd.f32 0.0, %v3137
    %v3139 = vpop.f32.mrf.mxu0
    %3140 = vdwg.mxu0
    %v3141 = vsel %vm476, %v2977, 0.0
    %v3142 = vsel %vm476, %v2978, 0.0
    %v3143 = vadd.f32 %v3141, %v3142
    %v3144 = vsel %vm476, %v2979, 0.0
    %v3145 = vadd.f32 %v3143, %v3144
    %v3146 = vrot.slane %v3145, 4
    %v3147 = vadd.f32 %v3145, %v3146
    %v3148 = vrot.slane %v3147, 2
    %v3149 = vadd.f32 %v3147, %v3148
    %v3150 = vrot.slane %v3149, 1
    %v3151 = vadd.f32 %v3149, %v3150
    %v3153 = vsel %vm476, %v2977, 0
    %v3156 = vsel %vm476, %v2978, 0
    %v3159 = vsel %vm476, %v2979, 0
    %v3162 = vsel %vm476, %v2578, 0
    %v3165 = vsel %vm476, %v2579, 0
    %v3168 = vsel %vm476, %v2580, 0
    %v3171 = vsel %vm476, %v2581, 0
    %v3174 = vsel %vm476, %v2582, 0
    %v3177 = vsel %vm476, %v2583, 0
    %v3180 = vsel %vm476, %v2584, 0
    %v3183 = vsel %vm476, %v2585, 0
    %3185 = vmatprep.subr.mxu0 0.0
    %3186 = vmatpush1.xpose.msra.mxu0 0.0
    %3187 = vmatprep.subr.mxu0 0.0
    %3188 = vmatpush1.xpose.msra.mxu0 0.0
    %3189 = vmatprep.subr.mxu0 0.0
    %3190 = vmatpush1.xpose.msra.mxu0 0.0
    %3191 = vmatprep.subr.mxu0 0.0
    %3192 = vmatpush1.xpose.msra.mxu0 0.0
    %3193 = vmatprep.subr.mxu0 0.0
    %3194 = vmatpush1.xpose.msra.mxu0 0.0
    %3195 = vmatprep.subr.mxu0 0.0
    %3196 = vmatpush1.xpose.msra.mxu0 0.0
    %3197 = vmatprep.subr.mxu0 0.0
    %3198 = vmatpush1.xpose.msra.mxu0 0.0
    %3199 = vmatprep.subr.mxu0 0.0
    %3200 = vmatpush1.xpose.msra.mxu0 0.0
    %3201 = vmatprep.subr.mxu0 0.0
    %3202 = vmatpush1.xpose.msra.mxu0 %v3183
    %3203 = vmatprep.subr.mxu0 0.0
    %3204 = vmatpush1.xpose.msra.mxu0 %v3180
    %3205 = vmatprep.subr.mxu0 0.0
    %3206 = vmatpush1.xpose.msra.mxu0 %v3177
    %3207 = vmatprep.subr.mxu0 0.0
    %3208 = vmatpush1.xpose.msra.mxu0 %v3174
    %3209 = vmatprep.subr.mxu0 0.0
    %3210 = vmatpush1.xpose.msra.mxu0 %v3171
    %3211 = vmatprep.subr.mxu0 0.0
    %3212 = vmatpush1.xpose.msra.mxu0 %v3168
    %3213 = vmatprep.subr.mxu0 0.0
    %3214 = vmatpush1.xpose.msra.mxu0 %v3165
    %3215 = vmatprep.subr.mxu0 0.0
    %3216 = vmatpush1.xpose.msra.mxu0 %v3162
    %3217 = vmatprep.subr.mxu0 0.0
    %3218 = vmatpush2.xpose.msra.mxu0 0.0
    %3219 = vmatprep.subr.mxu0 0.0
    %3220 = vmatpush2.xpose.msra.mxu0 0.0
    %3221 = vmatprep.subr.mxu0 0.0
    %3222 = vmatpush2.xpose.msra.mxu0 0.0
    %3223 = vmatprep.subr.mxu0 0.0
    %3224 = vmatpush2.xpose.msra.mxu0 0.0
    %3225 = vmatprep.subr.mxu0 0.0
    %3226 = vmatpush2.xpose.msra.mxu0 0.0
    %3227 = vmatprep.subr.mxu0 0.0
    %3228 = vmatpush2.xpose.msra.mxu0 0.0
    %3229 = vmatprep.subr.mxu0 0.0
    %3230 = vmatpush2.xpose.msra.mxu0 0.0
    %3231 = vmatprep.subr.mxu0 0.0
    %3232 = vmatpush2.xpose.msra.mxu0 0.0
    %3233 = vmatprep.subr.mxu0 0.0
    %3234 = vmatpush2.xpose.msra.mxu0 0.0
    %3235 = vmatprep.subr.mxu0 0.0
    %3236 = vmatpush2.xpose.msra.mxu0 0.0
    %3237 = vmatprep.subr.mxu0 0.0
    %3238 = vmatpush2.xpose.msra.mxu0 0.0
    %3239 = vmatprep.subr.mxu0 0.0
    %3240 = vmatpush2.xpose.msra.mxu0 0.0
    %3241 = vmatprep.subr.mxu0 0.0
    %3242 = vmatpush2.xpose.msra.mxu0 0.0
    %3243 = vmatprep.subr.mxu0 0.0
    %3244 = vmatpush2.xpose.msra.mxu0 0.0
    %3245 = vmatprep.subr.mxu0 0.0
    %3246 = vmatpush2.xpose.msra.mxu0 0.0
    %3247 = vmatprep.subr.mxu0 0.0
    %3248 = vmatpush2.xpose.msra.mxu0 0.0
    %3249 = vmatprep.mubr.f32.mxu0 0.0
    %3250 = vmatmul.mubr.f32.gmra.mxu0 %v3153
    %v3251 = vpop.f32.mrf.mxu0
    %v3252 = vadd.f32 0.0, %v3251
    %v3253 = vpop.f32.mrf.mxu0
    %3254 = vmatprep.mubr.f32.mxu0 0.0
    %3255 = vmatmul.mubr.f32.gmra.mxu0 %v3156
    %v3256 = vpop.f32.mrf.mxu0
    %v3257 = vadd.f32 0.0, %v3256
    %v3258 = vpop.f32.mrf.mxu0
    %3259 = vmatprep.mubr.f32.mxu0 0.0
    %3260 = vmatmul.mubr.f32.gmra.mxu0 %v3159
    %v3261 = vpop.f32.mrf.mxu0
    %v3262 = vadd.f32 0.0, %v3261
    %v3263 = vpop.f32.mrf.mxu0
    %3264 = vdwg.mxu0
    %vm3265 = vcmp.gt.f32.partialorder %v2799, 0.0
    %vm3266 = vcmp.gt.f32.partialorder %v2804, 0.0
    %vm3267 = vcmp.gt.f32.partialorder %v2809, 0.0
    %v3268 = vsel %vm3265, %v3252, 0.0
    %v3269 = vsel %vm3266, %v3257, 0.0
    %v3270 = vsel %vm3267, %v3262, 0.0
    %3271 = vxpose.xlu0.b32.start [1/16] %v2714, 128
    %3272 = vxpose.xlu0.b32.cont [2/16] %v2715, 128
    %3273 = vxpose.xlu0.b32.cont [3/16] %v2716, 128
    %3274 = vxpose.xlu0.b32.cont [4/16] 0.0, 128
    %3275 = vxpose.xlu0.b32.cont [5/16] 0.0, 128
    %3276 = vxpose.xlu0.b32.cont [6/16] 0.0, 128
    %3277 = vxpose.xlu0.b32.cont [7/16] 0.0, 128
    %3278 = vxpose.xlu0.b32.cont [8/16] 0.0, 128
    %3279 = vxpose.xlu0.b32.cont [9/16] 0.0, 128
    %3280 = vxpose.xlu0.b32.cont [10/16] 0.0, 128
    %3281 = vxpose.xlu0.b32.cont [11/16] 0.0, 128
    %3282 = vxpose.xlu0.b32.cont [12/16] 0.0, 128
    %3283 = vxpose.xlu0.b32.cont [13/16] 0.0, 128
    %3284 = vxpose.xlu0.b32.cont [14/16] 0.0, 128
    %3285 = vxpose.xlu0.b32.cont [15/16] 0.0, 128
    %3286 = vxpose.xlu0.b32.end [16/16] 0.0, 128
    %v3287 = vpop.trf.xlu0
    %v3288 = vpop.trf.xlu0
    %v3289 = vpop.trf.xlu0
    %v3290 = vpop.trf.xlu0
    %v3291 = vpop.trf.xlu0
    %v3292 = vpop.trf.xlu0
    %v3293 = vpop.trf.xlu0
    %v3294 = vpop.trf.xlu0
    %v3295 = vpop.trf.xlu0
    %v3296 = vpop.trf.xlu0
    %v3297 = vpop.trf.xlu0
    %v3298 = vpop.trf.xlu0
    %v3299 = vpop.trf.xlu0
    %v3300 = vpop.trf.xlu0
    %v3301 = vpop.trf.xlu0
    %v3302 = vpop.trf.xlu0
    %v3304 = vsel %vm580, %v3287, 0
    %v3307 = vsel %vm580, %v3288, 0
    %v3310 = vsel %vm580, %v3289, 0
    %v3313 = vsel %vm580, %v3290, 0
    %v3316 = vsel %vm580, %v3291, 0
    %v3319 = vsel %vm580, %v3292, 0
    %v3322 = vsel %vm580, %v3293, 0
    %v3325 = vsel %vm580, %v3294, 0
    %3327 = vmatprep.subr.mxu0 0.0
    %3328 = vmatpush1.msra.mxu0 0.0
    %3329 = vmatprep.subr.mxu0 0.0
    %3330 = vmatpush1.msra.mxu0 0.0
    %3331 = vmatprep.subr.mxu0 0.0
    %3332 = vmatpush1.msra.mxu0 0.0
    %3333 = vmatprep.subr.mxu0 0.0
    %3334 = vmatpush1.msra.mxu0 0.0
    %3335 = vmatprep.subr.mxu0 0.0
    %3336 = vmatpush1.msra.mxu0 0.0
    %3337 = vmatprep.subr.mxu0 0.0
    %3338 = vmatpush1.msra.mxu0 0.0
    %3339 = vmatprep.subr.mxu0 0.0
    %3340 = vmatpush1.msra.mxu0 0.0
    %3341 = vmatprep.subr.mxu0 0.0
    %3342 = vmatpush1.msra.mxu0 0.0
    %3343 = vmatprep.subr.mxu0 0.0
    %3344 = vmatpush1.msra.mxu0 0.0
    %3345 = vmatprep.subr.mxu0 0.0
    %3346 = vmatpush1.msra.mxu0 0.0
    %3347 = vmatprep.subr.mxu0 0.0
    %3348 = vmatpush1.msra.mxu0 0.0
    %3349 = vmatprep.subr.mxu0 0.0
    %3350 = vmatpush1.msra.mxu0 0.0
    %3351 = vmatprep.subr.mxu0 0.0
    %3352 = vmatpush1.msra.mxu0 0.0
    %3353 = vmatprep.subr.mxu0 0.0
    %3354 = vmatpush1.msra.mxu0 %v3270
    %3355 = vmatprep.subr.mxu0 0.0
    %3356 = vmatpush1.msra.mxu0 %v3269
    %3357 = vmatprep.subr.mxu0 0.0
    %3358 = vmatpush1.msra.mxu0 %v3268
    %3359 = vmatprep.subr.mxu0 0.0
    %3360 = vmatpush2.msra.mxu0 0.0
    %3361 = vmatprep.subr.mxu0 0.0
    %3362 = vmatpush2.msra.mxu0 0.0
    %3363 = vmatprep.subr.mxu0 0.0
    %3364 = vmatpush2.msra.mxu0 0.0
    %3365 = vmatprep.subr.mxu0 0.0
    %3366 = vmatpush2.msra.mxu0 0.0
    %3367 = vmatprep.subr.mxu0 0.0
    %3368 = vmatpush2.msra.mxu0 0.0
    %3369 = vmatprep.subr.mxu0 0.0
    %3370 = vmatpush2.msra.mxu0 0.0
    %3371 = vmatprep.subr.mxu0 0.0
    %3372 = vmatpush2.msra.mxu0 0.0
    %3373 = vmatprep.subr.mxu0 0.0
    %3374 = vmatpush2.msra.mxu0 0.0
    %3375 = vmatprep.subr.mxu0 0.0
    %3376 = vmatpush2.msra.mxu0 0.0
    %3377 = vmatprep.subr.mxu0 0.0
    %3378 = vmatpush2.msra.mxu0 0.0
    %3379 = vmatprep.subr.mxu0 0.0
    %3380 = vmatpush2.msra.mxu0 0.0
    %3381 = vmatprep.subr.mxu0 0.0
    %3382 = vmatpush2.msra.mxu0 0.0
    %3383 = vmatprep.subr.mxu0 0.0
    %3384 = vmatpush2.msra.mxu0 0.0
    %3385 = vmatprep.subr.mxu0 0.0
    %3386 = vmatpush2.msra.mxu0 0.0
    %3387 = vmatprep.subr.mxu0 0.0
    %3388 = vmatpush2.msra.mxu0 0.0
    %3389 = vmatprep.subr.mxu0 0.0
    %3390 = vmatpush2.msra.mxu0 0.0
    %3391 = vmatprep.mubr.f32.mxu0 0.0
    %3392 = vmatmul.mubr.f32.gmra.mxu0 %v3304
    %v3393 = vpop.f32.mrf.mxu0
    %v3394 = vadd.f32 0.0, %v3393
    %v3395 = vpop.f32.mrf.mxu0
    %3396 = vmatprep.mubr.f32.mxu0 0.0
    %3397 = vmatmul.mubr.f32.gmra.mxu0 %v3307
    %v3398 = vpop.f32.mrf.mxu0
    %v3399 = vadd.f32 0.0, %v3398
    %v3400 = vpop.f32.mrf.mxu0
    %3401 = vmatprep.mubr.f32.mxu0 0.0
    %3402 = vmatmul.mubr.f32.gmra.mxu0 %v3310
    %v3403 = vpop.f32.mrf.mxu0
    %v3404 = vadd.f32 0.0, %v3403
    %v3405 = vpop.f32.mrf.mxu0
    %3406 = vmatprep.mubr.f32.mxu0 0.0
    %3407 = vmatmul.mubr.f32.gmra.mxu0 %v3313
    %v3408 = vpop.f32.mrf.mxu0
    %v3409 = vadd.f32 0.0, %v3408
    %v3410 = vpop.f32.mrf.mxu0
    %3411 = vmatprep.mubr.f32.mxu0 0.0
    %3412 = vmatmul.mubr.f32.gmra.mxu0 %v3316
    %v3413 = vpop.f32.mrf.mxu0
    %v3414 = vadd.f32 0.0, %v3413
    %v3415 = vpop.f32.mrf.mxu0
    %3416 = vmatprep.mubr.f32.mxu0 0.0
    %3417 = vmatmul.mubr.f32.gmra.mxu0 %v3319
    %v3418 = vpop.f32.mrf.mxu0
    %v3419 = vadd.f32 0.0, %v3418
    %v3420 = vpop.f32.mrf.mxu0
    %3421 = vmatprep.mubr.f32.mxu0 0.0
    %3422 = vmatmul.mubr.f32.gmra.mxu0 %v3322
    %v3423 = vpop.f32.mrf.mxu0
    %v3424 = vadd.f32 0.0, %v3423
    %v3425 = vpop.f32.mrf.mxu0
    %3426 = vmatprep.mubr.f32.mxu0 0.0
    %3427 = vmatmul.mubr.f32.gmra.mxu0 %v3325
    %v3428 = vpop.f32.mrf.mxu0
    %v3429 = vadd.f32 0.0, %v3428
    %v3430 = vpop.f32.mrf.mxu0
    %3431 = vdwg.mxu0
    %v3432 = vsel %vm285, %v3268, 0.0
    %v3433 = vsel %vm285, %v3269, 0.0
    %v3434 = vadd.f32 %v3432, %v3433
    %v3435 = vsel %vm285, %v3270, 0.0
    %v3436 = vadd.f32 %v3434, %v3435
    %v3437 = vrot.slane %v3436, 4
    %v3438 = vadd.f32 %v3436, %v3437
    %v3439 = vrot.slane %v3438, 2
    %v3440 = vadd.f32 %v3438, %v3439
    %v3441 = vrot.slane %v3440, 1
    %v3442 = vadd.f32 %v3440, %v3441
    %v3444 = vsel %vm285, %v3268, 0
    %v3447 = vsel %vm285, %v3269, 0
    %v3450 = vsel %vm285, %v3270, 0
    %v3453 = vsel %vm285, %v2542, 0
    %v3456 = vsel %vm285, %v2543, 0
    %v3459 = vsel %vm285, %v2544, 0
    %v3462 = vsel %vm285, %v2545, 0
    %v3465 = vsel %vm285, %v2546, 0
    %v3468 = vsel %vm285, %v2547, 0
    %v3471 = vsel %vm285, %v2548, 0
    %v3474 = vsel %vm285, %v2549, 0
    %3476 = vmatprep.subr.mxu0 0.0
    %3477 = vmatpush1.xpose.msra.mxu0 0.0
    %3478 = vmatprep.subr.mxu0 0.0
    %3479 = vmatpush1.xpose.msra.mxu0 0.0
    %3480 = vmatprep.subr.mxu0 0.0
    %3481 = vmatpush1.xpose.msra.mxu0 0.0
    %3482 = vmatprep.subr.mxu0 0.0
    %3483 = vmatpush1.xpose.msra.mxu0 0.0
    %3484 = vmatprep.subr.mxu0 0.0
    %3485 = vmatpush1.xpose.msra.mxu0 0.0
    %3486 = vmatprep.subr.mxu0 0.0
    %3487 = vmatpush1.xpose.msra.mxu0 0.0
    %3488 = vmatprep.subr.mxu0 0.0
    %3489 = vmatpush1.xpose.msra.mxu0 0.0
    %3490 = vmatprep.subr.mxu0 0.0
    %3491 = vmatpush1.xpose.msra.mxu0 0.0
    %3492 = vmatprep.subr.mxu0 0.0
    %3493 = vmatpush1.xpose.msra.mxu0 %v3474
    %3494 = vmatprep.subr.mxu0 0.0
    %3495 = vmatpush1.xpose.msra.mxu0 %v3471
    %3496 = vmatprep.subr.mxu0 0.0
    %3497 = vmatpush1.xpose.msra.mxu0 %v3468
    %3498 = vmatprep.subr.mxu0 0.0
    %3499 = vmatpush1.xpose.msra.mxu0 %v3465
    %3500 = vmatprep.subr.mxu0 0.0
    %3501 = vmatpush1.xpose.msra.mxu0 %v3462
    %3502 = vmatprep.subr.mxu0 0.0
    %3503 = vmatpush1.xpose.msra.mxu0 %v3459
    %3504 = vmatprep.subr.mxu0 0.0
    %3505 = vmatpush1.xpose.msra.mxu0 %v3456
    %3506 = vmatprep.subr.mxu0 0.0
    %3507 = vmatpush1.xpose.msra.mxu0 %v3453
    %3508 = vmatprep.subr.mxu0 0.0
    %3509 = vmatpush2.xpose.msra.mxu0 0.0
    %3510 = vmatprep.subr.mxu0 0.0
    %3511 = vmatpush2.xpose.msra.mxu0 0.0
    %3512 = vmatprep.subr.mxu0 0.0
    %3513 = vmatpush2.xpose.msra.mxu0 0.0
    %3514 = vmatprep.subr.mxu0 0.0
    %3515 = vmatpush2.xpose.msra.mxu0 0.0
    %3516 = vmatprep.subr.mxu0 0.0
    %3517 = vmatpush2.xpose.msra.mxu0 0.0
    %3518 = vmatprep.subr.mxu0 0.0
    %3519 = vmatpush2.xpose.msra.mxu0 0.0
    %3520 = vmatprep.subr.mxu0 0.0
    %3521 = vmatpush2.xpose.msra.mxu0 0.0
    %3522 = vmatprep.subr.mxu0 0.0
    %3523 = vmatpush2.xpose.msra.mxu0 0.0
    %3524 = vmatprep.subr.mxu0 0.0
    %3525 = vmatpush2.xpose.msra.mxu0 0.0
    %3526 = vmatprep.subr.mxu0 0.0
    %3527 = vmatpush2.xpose.msra.mxu0 0.0
    %3528 = vmatprep.subr.mxu0 0.0
    %3529 = vmatpush2.xpose.msra.mxu0 0.0
    %3530 = vmatprep.subr.mxu0 0.0
    %3531 = vmatpush2.xpose.msra.mxu0 0.0
    %3532 = vmatprep.subr.mxu0 0.0
    %3533 = vmatpush2.xpose.msra.mxu0 0.0
    %3534 = vmatprep.subr.mxu0 0.0
    %3535 = vmatpush2.xpose.msra.mxu0 0.0
    %3536 = vmatprep.subr.mxu0 0.0
    %3537 = vmatpush2.xpose.msra.mxu0 0.0
    %3538 = vmatprep.subr.mxu0 0.0
    %3539 = vmatpush2.xpose.msra.mxu0 0.0
    %3540 = vmatprep.mubr.f32.mxu0 0.0
    %3541 = vmatmul.mubr.f32.gmra.mxu0 %v3444
    %v3542 = vpop.f32.mrf.mxu0
    %v3543 = vadd.f32 0.0, %v3542
    %v3544 = vpop.f32.mrf.mxu0
    %3545 = vmatprep.mubr.f32.mxu0 0.0
    %3546 = vmatmul.mubr.f32.gmra.mxu0 %v3447
    %v3547 = vpop.f32.mrf.mxu0
    %v3548 = vadd.f32 0.0, %v3547
    %v3549 = vpop.f32.mrf.mxu0
    %3550 = vmatprep.mubr.f32.mxu0 0.0
    %3551 = vmatmul.mubr.f32.gmra.mxu0 %v3450
    %v3552 = vpop.f32.mrf.mxu0
    %v3553 = vadd.f32 0.0, %v3552
    %v3554 = vpop.f32.mrf.mxu0
    %3555 = vdwg.mxu0
    %vm3556 = vcmp.gt.f32.partialorder %v2701, 0.0
    %vm3557 = vcmp.gt.f32.partialorder %v2706, 0.0
    %vm3558 = vcmp.gt.f32.partialorder %v2711, 0.0
    %v3559 = vsel %vm3556, %v3543, 0.0
    %v3560 = vsel %vm3557, %v3548, 0.0
    %v3561 = vsel %vm3558, %v3553, 0.0
    %3562 = vxpose.xlu0.b32.start [1/16] %v2591, 128
    %3563 = vxpose.xlu0.b32.cont [2/16] %v2592, 128
    %3564 = vxpose.xlu0.b32.cont [3/16] %v2593, 128
    %3565 = vxpose.xlu0.b32.cont [4/16] 0.0, 128
    %3566 = vxpose.xlu0.b32.cont [5/16] 0.0, 128
    %3567 = vxpose.xlu0.b32.cont [6/16] 0.0, 128
    %3568 = vxpose.xlu0.b32.cont [7/16] 0.0, 128
    %3569 = vxpose.xlu0.b32.cont [8/16] 0.0, 128
    %3570 = vxpose.xlu0.b32.cont [9/16] 0.0, 128
    %3571 = vxpose.xlu0.b32.cont [10/16] 0.0, 128
    %3572 = vxpose.xlu0.b32.cont [11/16] 0.0, 128
    %3573 = vxpose.xlu0.b32.cont [12/16] 0.0, 128
    %3574 = vxpose.xlu0.b32.cont [13/16] 0.0, 128
    %3575 = vxpose.xlu0.b32.cont [14/16] 0.0, 128
    %3576 = vxpose.xlu0.b32.cont [15/16] 0.0, 128
    %3577 = vxpose.xlu0.b32.end [16/16] 0.0, 128
    %v3578 = vpop.trf.xlu0
    %v3579 = vpop.trf.xlu0
    %v3580 = vpop.trf.xlu0
    %v3581 = vpop.trf.xlu0
    %v3582 = vpop.trf.xlu0
    %v3583 = vpop.trf.xlu0
    %v3584 = vpop.trf.xlu0
    %v3585 = vpop.trf.xlu0
    %v3586 = vpop.trf.xlu0
    %v3587 = vpop.trf.xlu0
    %v3588 = vpop.trf.xlu0
    %v3589 = vpop.trf.xlu0
    %v3590 = vpop.trf.xlu0
    %v3591 = vpop.trf.xlu0
    %v3592 = vpop.trf.xlu0
    %v3593 = vpop.trf.xlu0
    %v3595 = vsel %vm580, %v3578, 0
    %v3598 = vsel %vm580, %v3579, 0
    %v3601 = vsel %vm580, %v3580, 0
    %v3604 = vsel %vm580, %v3581, 0
    %3606 = vmatprep.subr.mxu0 0.0
    %3607 = vmatpush1.msra.mxu0 0.0
    %3608 = vmatprep.subr.mxu0 0.0
    %3609 = vmatpush1.msra.mxu0 0.0
    %3610 = vmatprep.subr.mxu0 0.0
    %3611 = vmatpush1.msra.mxu0 0.0
    %3612 = vmatprep.subr.mxu0 0.0
    %3613 = vmatpush1.msra.mxu0 0.0
    %3614 = vmatprep.subr.mxu0 0.0
    %3615 = vmatpush1.msra.mxu0 0.0
    %3616 = vmatprep.subr.mxu0 0.0
    %3617 = vmatpush1.msra.mxu0 0.0
    %3618 = vmatprep.subr.mxu0 0.0
    %3619 = vmatpush1.msra.mxu0 0.0
    %3620 = vmatprep.subr.mxu0 0.0
    %3621 = vmatpush1.msra.mxu0 0.0
    %3622 = vmatprep.subr.mxu0 0.0
    %3623 = vmatpush1.msra.mxu0 0.0
    %3624 = vmatprep.subr.mxu0 0.0
    %3625 = vmatpush1.msra.mxu0 0.0
    %3626 = vmatprep.subr.mxu0 0.0
    %3627 = vmatpush1.msra.mxu0 0.0
    %3628 = vmatprep.subr.mxu0 0.0
    %3629 = vmatpush1.msra.mxu0 0.0
    %3630 = vmatprep.subr.mxu0 0.0
    %3631 = vmatpush1.msra.mxu0 0.0
    %3632 = vmatprep.subr.mxu0 0.0
    %3633 = vmatpush1.msra.mxu0 %v3561
    %3634 = vmatprep.subr.mxu0 0.0
    %3635 = vmatpush1.msra.mxu0 %v3560
    %3636 = vmatprep.subr.mxu0 0.0
    %3637 = vmatpush1.msra.mxu0 %v3559
    %3638 = vmatprep.subr.mxu0 0.0
    %3639 = vmatpush2.msra.mxu0 0.0
    %3640 = vmatprep.subr.mxu0 0.0
    %3641 = vmatpush2.msra.mxu0 0.0
    %3642 = vmatprep.subr.mxu0 0.0
    %3643 = vmatpush2.msra.mxu0 0.0
    %3644 = vmatprep.subr.mxu0 0.0
    %3645 = vmatpush2.msra.mxu0 0.0
    %3646 = vmatprep.subr.mxu0 0.0
    %3647 = vmatpush2.msra.mxu0 0.0
    %3648 = vmatprep.subr.mxu0 0.0
    %3649 = vmatpush2.msra.mxu0 0.0
    %3650 = vmatprep.subr.mxu0 0.0
    %3651 = vmatpush2.msra.mxu0 0.0
    %3652 = vmatprep.subr.mxu0 0.0
    %3653 = vmatpush2.msra.mxu0 0.0
    %3654 = vmatprep.subr.mxu0 0.0
    %3655 = vmatpush2.msra.mxu0 0.0
    %3656 = vmatprep.subr.mxu0 0.0
    %3657 = vmatpush2.msra.mxu0 0.0
    %3658 = vmatprep.subr.mxu0 0.0
    %3659 = vmatpush2.msra.mxu0 0.0
    %3660 = vmatprep.subr.mxu0 0.0
    %3661 = vmatpush2.msra.mxu0 0.0
    %3662 = vmatprep.subr.mxu0 0.0
    %3663 = vmatpush2.msra.mxu0 0.0
    %3664 = vmatprep.subr.mxu0 0.0
    %3665 = vmatpush2.msra.mxu0 0.0
    %3666 = vmatprep.subr.mxu0 0.0
    %3667 = vmatpush2.msra.mxu0 0.0
    %3668 = vmatprep.subr.mxu0 0.0
    %3669 = vmatpush2.msra.mxu0 0.0
    %3670 = vmatprep.mubr.f32.mxu0 0.0
    %3671 = vmatmul.mubr.f32.gmra.mxu0 %v3595
    %v3672 = vpop.f32.mrf.mxu0
    %v3673 = vadd.f32 0.0, %v3672
    %v3674 = vpop.f32.mrf.mxu0
    %3675 = vmatprep.mubr.f32.mxu0 0.0
    %3676 = vmatmul.mubr.f32.gmra.mxu0 %v3598
    %v3677 = vpop.f32.mrf.mxu0
    %v3678 = vadd.f32 0.0, %v3677
    %v3679 = vpop.f32.mrf.mxu0
    %3680 = vmatprep.mubr.f32.mxu0 0.0
    %3681 = vmatmul.mubr.f32.gmra.mxu0 %v3601
    %v3682 = vpop.f32.mrf.mxu0
    %v3683 = vadd.f32 0.0, %v3682
    %v3684 = vpop.f32.mrf.mxu0
    %3685 = vmatprep.mubr.f32.mxu0 0.0
    %3686 = vmatmul.mubr.f32.gmra.mxu0 %v3604
    %v3687 = vpop.f32.mrf.mxu0
    %v3688 = vadd.f32 0.0, %v3687
    %v3689 = vpop.f32.mrf.mxu0
    %3690 = vdwg.mxu0
    %v3691 = vsel %vm285, %v3559, 0.0
    %v3692 = vsel %vm285, %v3560, 0.0
    %v3693 = vadd.f32 %v3691, %v3692
    %v3694 = vsel %vm285, %v3561, 0.0
    %v3695 = vadd.f32 %v3693, %v3694
    %v3696 = vrot.slane %v3695, 4
    %v3697 = vadd.f32 %v3695, %v3696
    %v3698 = vrot.slane %v3697, 2
    %v3699 = vadd.f32 %v3697, %v3698
    %v3700 = vrot.slane %v3699, 1
    %v3701 = vadd.f32 %v3699, %v3700
    %vm3702 = vcmp.ne.f32.partialorder %v3673, %v3673
    %vm3703 = vcmp.ne.f32.partialorder %v3678, %v3678
    %vm3704 = vcmp.ne.f32.partialorder %v3683, %v3683
    %vm3705 = vcmp.ne.f32.partialorder %v3688, %v3688
    %v3706 = vsel %vm3702, 0.0, %v3673
    %v3707 = vsel %vm3703, 0.0, %v3678
    %v3708 = vsel %vm3704, 0.0, %v3683
    %v3709 = vsel %vm3705, 0.0, %v3688
    %v3710 = vmul.f32 %v3706, %v1279
    %v3711 = vmul.f32 %v3707, %v1280
    %v3712 = vmul.f32 %v3708, %v1281
    %v3713 = vmul.f32 %v3709, %v1282
    %v3714 = vsub.f32 %v2510, %v3710
    %v3715 = vsub.f32 %v2511, %v3711
    %v3716 = vsub.f32 %v2512, %v3712
    %v3717 = vsub.f32 %v2513, %v3713
    %vm3718 = vcmp.ne.f32.partialorder %v3701, %v3701
    %v3719 = vsel %vm3718, 0.0, %v3701
    %v3720 = vmul.f32 %v3719, %v1293
    %v3721 = vsub.f32 %v2517, %v3720
    %vm3722 = vcmp.ne.f32.partialorder %v3394, %v3394
    %vm3723 = vcmp.ne.f32.partialorder %v3399, %v3399
    %vm3724 = vcmp.ne.f32.partialorder %v3404, %v3404
    %vm3725 = vcmp.ne.f32.partialorder %v3409, %v3409
    %vm3726 = vcmp.ne.f32.partialorder %v3414, %v3414
    %vm3727 = vcmp.ne.f32.partialorder %v3419, %v3419
    %vm3728 = vcmp.ne.f32.partialorder %v3424, %v3424
    %vm3729 = vcmp.ne.f32.partialorder %v3429, %v3429
    %v3730 = vsel %vm3722, 0.0, %v3394
    %v3731 = vsel %vm3723, 0.0, %v3399
    %v3732 = vsel %vm3724, 0.0, %v3404
    %v3733 = vsel %vm3725, 0.0, %v3409
    %v3734 = vsel %vm3726, 0.0, %v3414
    %v3735 = vsel %vm3727, 0.0, %v3419
    %v3736 = vsel %vm3728, 0.0, %v3424
    %v3737 = vsel %vm3729, 0.0, %v3429
    %v3738 = vmul.f32 %v3730, %v1312
    %v3739 = vmul.f32 %v3731, %v1313
    %v3740 = vmul.f32 %v3732, %v1314
    %v3741 = vmul.f32 %v3733, %v1315
    %v3742 = vmul.f32 %v3734, %v1316
    %v3743 = vmul.f32 %v3735, %v1317
    %v3744 = vmul.f32 %v3736, %v1318
    %v3745 = vmul.f32 %v3737, %v1319
    %v3746 = vsub.f32 %v2542, %v3738
    %v3747 = vsub.f32 %v2543, %v3739
    %v3748 = vsub.f32 %v2544, %v3740
    %v3749 = vsub.f32 %v2545, %v3741
    %v3750 = vsub.f32 %v2546, %v3742
    %v3751 = vsub.f32 %v2547, %v3743
    %v3752 = vsub.f32 %v2548, %v3744
    %v3753 = vsub.f32 %v2549, %v3745
    %vm3754 = vcmp.ne.f32.partialorder %v3442, %v3442
    %v3755 = vsel %vm3754, 0.0, %v3442
    %v3756 = vmul.f32 %v3755, %v1338
    %v3757 = vsub.f32 %v2553, %v3756
    %vm3758 = vcmp.ne.f32.partialorder %v3103, %v3103
    %vm3759 = vcmp.ne.f32.partialorder %v3108, %v3108
    %vm3760 = vcmp.ne.f32.partialorder %v3113, %v3113
    %vm3761 = vcmp.ne.f32.partialorder %v3118, %v3118
    %vm3762 = vcmp.ne.f32.partialorder %v3123, %v3123
    %vm3763 = vcmp.ne.f32.partialorder %v3128, %v3128
    %vm3764 = vcmp.ne.f32.partialorder %v3133, %v3133
    %vm3765 = vcmp.ne.f32.partialorder %v3138, %v3138
    %v3766 = vsel %vm3758, 0.0, %v3103
    %v3767 = vsel %vm3759, 0.0, %v3108
    %v3768 = vsel %vm3760, 0.0, %v3113
    %v3769 = vsel %vm3761, 0.0, %v3118
    %v3770 = vsel %vm3762, 0.0, %v3123
    %v3771 = vsel %vm3763, 0.0, %v3128
    %v3772 = vsel %vm3764, 0.0, %v3133
    %v3773 = vsel %vm3765, 0.0, %v3138
    %v3774 = vmul.f32 %v3766, %v1357
    %v3775 = vmul.f32 %v3767, %v1358
    %v3776 = vmul.f32 %v3768, %v1359
    %v3777 = vmul.f32 %v3769, %v1360
    %v3778 = vmul.f32 %v3770, %v1361
    %v3779 = vmul.f32 %v3771, %v1362
    %v3780 = vmul.f32 %v3772, %v1363
    %v3781 = vmul.f32 %v3773, %v1364
    %v3782 = vsub.f32 %v2578, %v3774
    %v3783 = vsub.f32 %v2579, %v3775
    %v3784 = vsub.f32 %v2580, %v3776
    %v3785 = vsub.f32 %v2581, %v3777
    %v3786 = vsub.f32 %v2582, %v3778
    %v3787 = vsub.f32 %v2583, %v3779
    %v3788 = vsub.f32 %v2584, %v3780
    %v3789 = vsub.f32 %v2585, %v3781
    %vm3790 = vcmp.ne.f32.partialorder %v3151, %v3151
    %v3791 = vsel %vm3790, 0.0, %v3151
    %v3792 = vmul.f32 %v3791, %v1383
    %v3793 = vsub.f32 %v2589, %v3792
    %s3794 = scalar_lea.vmem %s2, 72
    %v3795 = vld [vmem:[%s3794] sm:$0xff]
    %v3796 = vld [vmem:[%s3794 + $0x8] sm:$0xff]
    %v3797 = vld [vmem:[%s3794 + $0x10] sm:$0xff]
    %s3798 = scalar_lea.vmem %s3, 72
    %v3799 = vld [vmem:[%s3798] sm:$0xff]
    %v3800 = vld [vmem:[%s3798 + $0x8] sm:$0xff]
    %v3801 = vld [vmem:[%s3798 + $0x10] sm:$0xff]
    %v3802 = vcvt.f32.s32.to.zero.pseudo %v3799
    %v3803 = vcvt.f32.s32.to.zero.pseudo %v3800
    %v3804 = vcvt.f32.s32.to.zero.pseudo %v3801
    %3805 = vset.pattern.permute.xlu0 1
    %3806 = vperm.xlu0 %3805, %v3802
    %v3807 = vpop.permute.xlu0 %3806
    %3808 = vset.pattern.permute.xlu0 1
    %3809 = vperm.xlu0 %3808, %v3803
    %v3810 = vpop.permute.xlu0 %3809
    %3811 = vset.pattern.permute.xlu0 1
    %3812 = vperm.xlu0 %3811, %v3804
    %v3813 = vpop.permute.xlu0 %3812
    %vm3814 = vcmp.eq.s32.totalorder %v129, %v3807
    %vm3815 = vcmp.eq.s32.totalorder %v129, %v3810
    %vm3816 = vcmp.eq.s32.totalorder %v129, %v3813
    %v3817 = vsel %vm3814, 1, 0
    %v3818 = vsel %vm3815, 1, 0
    %v3819 = vsel %vm3816, 1, 0
    %v3820 = vcvt.s32.f32 %v3817
    %v3821 = vcvt.s32.f32 %v3818
    %v3822 = vcvt.s32.f32 %v3819
    %v3824 = vlaneseq
    %v3825 = vshrl.u32 %v3824, 7
    %v3826 = vsub.s32 0, %v3825
    %v3827 = vrot.slane %v3721, %v3826
    %v3830 = vsel %vm186, %v3795, 0
    %v3833 = vsel %vm186, %v3796, 0
    %v3836 = vsel %vm186, %v3797, 0
    %3838 = vmatprep.subr.mxu0 0.0
    %3839 = vmatpush1.msra.mxu0 0.0
    %3840 = vmatprep.subr.mxu0 0.0
    %3841 = vmatpush1.msra.mxu0 0.0
    %3842 = vmatprep.subr.mxu0 0.0
    %3843 = vmatpush1.msra.mxu0 0.0
    %3844 = vmatprep.subr.mxu0 0.0
    %3845 = vmatpush1.msra.mxu0 0.0
    %3846 = vmatprep.subr.mxu0 0.0
    %3847 = vmatpush1.msra.mxu0 0.0
    %3848 = vmatprep.subr.mxu0 0.0
    %3849 = vmatpush1.msra.mxu0 0.0
    %3850 = vmatprep.subr.mxu0 0.0
    %3851 = vmatpush1.msra.mxu0 0.0
    %3852 = vmatprep.subr.mxu0 0.0
    %3853 = vmatpush1.msra.mxu0 0.0
    %3854 = vmatprep.subr.mxu0 0.0
    %3855 = vmatpush1.msra.mxu0 0.0
    %3856 = vmatprep.subr.mxu0 0.0
    %3857 = vmatpush1.msra.mxu0 0.0
    %3858 = vmatprep.subr.mxu0 0.0
    %3859 = vmatpush1.msra.mxu0 0.0
    %3860 = vmatprep.subr.mxu0 0.0
    %3861 = vmatpush1.msra.mxu0 0.0
    %3862 = vmatprep.subr.mxu0 0.0
    %3863 = vmatpush1.msra.mxu0 %v3717
    %3864 = vmatprep.subr.mxu0 0.0
    %3865 = vmatpush1.msra.mxu0 %v3716
    %3866 = vmatprep.subr.mxu0 0.0
    %3867 = vmatpush1.msra.mxu0 %v3715
    %3868 = vmatprep.subr.mxu0 0.0
    %3869 = vmatpush1.msra.mxu0 %v3714
    %3870 = vmatprep.subr.mxu0 0.0
    %3871 = vmatpush2.msra.mxu0 0.0
    %3872 = vmatprep.subr.mxu0 0.0
    %3873 = vmatpush2.msra.mxu0 0.0
    %3874 = vmatprep.subr.mxu0 0.0
    %3875 = vmatpush2.msra.mxu0 0.0
    %3876 = vmatprep.subr.mxu0 0.0
    %3877 = vmatpush2.msra.mxu0 0.0
    %3878 = vmatprep.subr.mxu0 0.0
    %3879 = vmatpush2.msra.mxu0 0.0
    %3880 = vmatprep.subr.mxu0 0.0
    %3881 = vmatpush2.msra.mxu0 0.0
    %3882 = vmatprep.subr.mxu0 0.0
    %3883 = vmatpush2.msra.mxu0 0.0
    %3884 = vmatprep.subr.mxu0 0.0
    %3885 = vmatpush2.msra.mxu0 0.0
    %3886 = vmatprep.subr.mxu0 0.0
    %3887 = vmatpush2.msra.mxu0 0.0
    %3888 = vmatprep.subr.mxu0 0.0
    %3889 = vmatpush2.msra.mxu0 0.0
    %3890 = vmatprep.subr.mxu0 0.0
    %3891 = vmatpush2.msra.mxu0 0.0
    %3892 = vmatprep.subr.mxu0 0.0
    %3893 = vmatpush2.msra.mxu0 0.0
    %3894 = vmatprep.subr.mxu0 0.0
    %3895 = vmatpush2.msra.mxu0 0.0
    %3896 = vmatprep.subr.mxu0 0.0
    %3897 = vmatpush2.msra.mxu0 0.0
    %3898 = vmatprep.subr.mxu0 0.0
    %3899 = vmatpush2.msra.mxu0 0.0
    %3900 = vmatprep.subr.mxu0 0.0
    %3901 = vmatpush2.msra.mxu0 0.0
    %3902 = vmatprep.mubr.f32.mxu0 0.0
    %3903 = vmatmul.mubr.f32.gmra.mxu0 %v3830
    %v3904 = vpop.f32.mrf.mxu0
    %v3905 = vadd.f32 %v3827, %v3904
    %v3906 = vpop.f32.mrf.mxu0
    %3907 = vmatprep.mubr.f32.mxu0 0.0
    %3908 = vmatmul.mubr.f32.gmra.mxu0 %v3833
    %v3909 = vpop.f32.mrf.mxu0
    %v3910 = vadd.f32 %v3827, %v3909
    %v3911 = vpop.f32.mrf.mxu0
    %3912 = vmatprep.mubr.f32.mxu0 0.0
    %3913 = vmatmul.mubr.f32.gmra.mxu0 %v3836
    %v3914 = vpop.f32.mrf.mxu0
    %v3915 = vadd.f32 %v3827, %v3914
    %v3916 = vpop.f32.mrf.mxu0
    %3917 = vdwg.mxu0
    %v3918 = vmax.f32 %v3905, 0.0
    %v3919 = vmax.f32 %v3910, 0.0
    %v3920 = vmax.f32 %v3915, 0.0
    %v3922 = vlaneseq
    %v3923 = vshrl.u32 %v3922, 7
    %v3924 = vsub.s32 0, %v3923
    %v3925 = vrot.slane %v3757, %v3924
    %v3928 = vsel %vm285, %v3918, 0
    %v3931 = vsel %vm285, %v3919, 0
    %v3934 = vsel %vm285, %v3920, 0
    %3936 = vmatprep.subr.mxu0 0.0
    %3937 = vmatpush1.msra.mxu0 0.0
    %3938 = vmatprep.subr.mxu0 0.0
    %3939 = vmatpush1.msra.mxu0 0.0
    %3940 = vmatprep.subr.mxu0 0.0
    %3941 = vmatpush1.msra.mxu0 0.0
    %3942 = vmatprep.subr.mxu0 0.0
    %3943 = vmatpush1.msra.mxu0 0.0
    %3944 = vmatprep.subr.mxu0 0.0
    %3945 = vmatpush1.msra.mxu0 0.0
    %3946 = vmatprep.subr.mxu0 0.0
    %3947 = vmatpush1.msra.mxu0 0.0
    %3948 = vmatprep.subr.mxu0 0.0
    %3949 = vmatpush1.msra.mxu0 0.0
    %3950 = vmatprep.subr.mxu0 0.0
    %3951 = vmatpush1.msra.mxu0 0.0
    %3952 = vmatprep.subr.mxu0 0.0
    %3953 = vmatpush1.msra.mxu0 %v3753
    %3954 = vmatprep.subr.mxu0 0.0
    %3955 = vmatpush1.msra.mxu0 %v3752
    %3956 = vmatprep.subr.mxu0 0.0
    %3957 = vmatpush1.msra.mxu0 %v3751
    %3958 = vmatprep.subr.mxu0 0.0
    %3959 = vmatpush1.msra.mxu0 %v3750
    %3960 = vmatprep.subr.mxu0 0.0
    %3961 = vmatpush1.msra.mxu0 %v3749
    %3962 = vmatprep.subr.mxu0 0.0
    %3963 = vmatpush1.msra.mxu0 %v3748
    %3964 = vmatprep.subr.mxu0 0.0
    %3965 = vmatpush1.msra.mxu0 %v3747
    %3966 = vmatprep.subr.mxu0 0.0
    %3967 = vmatpush1.msra.mxu0 %v3746
    %3968 = vmatprep.subr.mxu0 0.0
    %3969 = vmatpush2.msra.mxu0 0.0
    %3970 = vmatprep.subr.mxu0 0.0
    %3971 = vmatpush2.msra.mxu0 0.0
    %3972 = vmatprep.subr.mxu0 0.0
    %3973 = vmatpush2.msra.mxu0 0.0
    %3974 = vmatprep.subr.mxu0 0.0
    %3975 = vmatpush2.msra.mxu0 0.0
    %3976 = vmatprep.subr.mxu0 0.0
    %3977 = vmatpush2.msra.mxu0 0.0
    %3978 = vmatprep.subr.mxu0 0.0
    %3979 = vmatpush2.msra.mxu0 0.0
    %3980 = vmatprep.subr.mxu0 0.0
    %3981 = vmatpush2.msra.mxu0 0.0
    %3982 = vmatprep.subr.mxu0 0.0
    %3983 = vmatpush2.msra.mxu0 0.0
    %3984 = vmatprep.subr.mxu0 0.0
    %3985 = vmatpush2.msra.mxu0 0.0
    %3986 = vmatprep.subr.mxu0 0.0
    %3987 = vmatpush2.msra.mxu0 0.0
    %3988 = vmatprep.subr.mxu0 0.0
    %3989 = vmatpush2.msra.mxu0 0.0
    %3990 = vmatprep.subr.mxu0 0.0
    %3991 = vmatpush2.msra.mxu0 0.0
    %3992 = vmatprep.subr.mxu0 0.0
    %3993 = vmatpush2.msra.mxu0 0.0
    %3994 = vmatprep.subr.mxu0 0.0
    %3995 = vmatpush2.msra.mxu0 0.0
    %3996 = vmatprep.subr.mxu0 0.0
    %3997 = vmatpush2.msra.mxu0 0.0
    %3998 = vmatprep.subr.mxu0 0.0
    %3999 = vmatpush2.msra.mxu0 0.0
    %4000 = vmatprep.mubr.f32.mxu0 0.0
    %4001 = vmatmul.mubr.f32.gmra.mxu0 %v3928
    %v4002 = vpop.f32.mrf.mxu0
    %v4003 = vadd.f32 %v3925, %v4002
    %v4004 = vpop.f32.mrf.mxu0
    %4005 = vmatprep.mubr.f32.mxu0 0.0
    %4006 = vmatmul.mubr.f32.gmra.mxu0 %v3931
    %v4007 = vpop.f32.mrf.mxu0
    %v4008 = vadd.f32 %v3925, %v4007
    %v4009 = vpop.f32.mrf.mxu0
    %4010 = vmatprep.mubr.f32.mxu0 0.0
    %4011 = vmatmul.mubr.f32.gmra.mxu0 %v3934
    %v4012 = vpop.f32.mrf.mxu0
    %v4013 = vadd.f32 %v3925, %v4012
    %v4014 = vpop.f32.mrf.mxu0
    %4015 = vdwg.mxu0
    %v4016 = vmax.f32 %v4003, 0.0
    %v4017 = vmax.f32 %v4008, 0.0
    %v4018 = vmax.f32 %v4013, 0.0
    %v4020 = vlaneseq
    %v4021 = vshrl.u32 %v4020, 7
    %v4022 = vsub.s32 0, %v4021
    %v4023 = vrot.slane %v3793, %v4022
    %v4026 = vsel %vm285, %v4016, 0
    %v4029 = vsel %vm285, %v4017, 0
    %v4032 = vsel %vm285, %v4018, 0
    %4034 = vmatprep.subr.mxu0 0.0
    %4035 = vmatpush1.msra.mxu0 0.0
    %4036 = vmatprep.subr.mxu0 0.0
    %4037 = vmatpush1.msra.mxu0 0.0
    %4038 = vmatprep.subr.mxu0 0.0
    %4039 = vmatpush1.msra.mxu0 0.0
    %4040 = vmatprep.subr.mxu0 0.0
    %4041 = vmatpush1.msra.mxu0 0.0
    %4042 = vmatprep.subr.mxu0 0.0
    %4043 = vmatpush1.msra.mxu0 0.0
    %4044 = vmatprep.subr.mxu0 0.0
    %4045 = vmatpush1.msra.mxu0 0.0
    %4046 = vmatprep.subr.mxu0 0.0
    %4047 = vmatpush1.msra.mxu0 0.0
    %4048 = vmatprep.subr.mxu0 0.0
    %4049 = vmatpush1.msra.mxu0 0.0
    %4050 = vmatprep.subr.mxu0 0.0
    %4051 = vmatpush1.msra.mxu0 %v3789
    %4052 = vmatprep.subr.mxu0 0.0
    %4053 = vmatpush1.msra.mxu0 %v3788
    %4054 = vmatprep.subr.mxu0 0.0
    %4055 = vmatpush1.msra.mxu0 %v3787
    %4056 = vmatprep.subr.mxu0 0.0
    %4057 = vmatpush1.msra.mxu0 %v3786
    %4058 = vmatprep.subr.mxu0 0.0
    %4059 = vmatpush1.msra.mxu0 %v3785
    %4060 = vmatprep.subr.mxu0 0.0
    %4061 = vmatpush1.msra.mxu0 %v3784
    %4062 = vmatprep.subr.mxu0 0.0
    %4063 = vmatpush1.msra.mxu0 %v3783
    %4064 = vmatprep.subr.mxu0 0.0
    %4065 = vmatpush1.msra.mxu0 %v3782
    %4066 = vmatprep.subr.mxu0 0.0
    %4067 = vmatpush2.msra.mxu0 0.0
    %4068 = vmatprep.subr.mxu0 0.0
    %4069 = vmatpush2.msra.mxu0 0.0
    %4070 = vmatprep.subr.mxu0 0.0
    %4071 = vmatpush2.msra.mxu0 0.0
    %4072 = vmatprep.subr.mxu0 0.0
    %4073 = vmatpush2.msra.mxu0 0.0
    %4074 = vmatprep.subr.mxu0 0.0
    %4075 = vmatpush2.msra.mxu0 0.0
    %4076 = vmatprep.subr.mxu0 0.0
    %4077 = vmatpush2.msra.mxu0 0.0
    %4078 = vmatprep.subr.mxu0 0.0
    %4079 = vmatpush2.msra.mxu0 0.0
    %4080 = vmatprep.subr.mxu0 0.0
    %4081 = vmatpush2.msra.mxu0 0.0
    %4082 = vmatprep.subr.mxu0 0.0
    %4083 = vmatpush2.msra.mxu0 0.0
    %4084 = vmatprep.subr.mxu0 0.0
    %4085 = vmatpush2.msra.mxu0 0.0
    %4086 = vmatprep.subr.mxu0 0.0
    %4087 = vmatpush2.msra.mxu0 0.0
    %4088 = vmatprep.subr.mxu0 0.0
    %4089 = vmatpush2.msra.mxu0 0.0
    %4090 = vmatprep.subr.mxu0 0.0
    %4091 = vmatpush2.msra.mxu0 0.0
    %4092 = vmatprep.subr.mxu0 0.0
    %4093 = vmatpush2.msra.mxu0 0.0
    %4094 = vmatprep.subr.mxu0 0.0
    %4095 = vmatpush2.msra.mxu0 0.0
    %4096 = vmatprep.subr.mxu0 0.0
    %4097 = vmatpush2.msra.mxu0 0.0
    %4098 = vmatprep.mubr.f32.mxu0 0.0
    %4099 = vmatmul.mubr.f32.gmra.mxu0 %v4026
    %v4100 = vpop.f32.mrf.mxu0
    %v4101 = vadd.f32 %v4023, %v4100
    %v4102 = vpop.f32.mrf.mxu0
    %4103 = vmatprep.mubr.f32.mxu0 0.0
    %4104 = vmatmul.mubr.f32.gmra.mxu0 %v4029
    %v4105 = vpop.f32.mrf.mxu0
    %v4106 = vadd.f32 %v4023, %v4105
    %v4107 = vpop.f32.mrf.mxu0
    %4108 = vmatprep.mubr.f32.mxu0 0.0
    %4109 = vmatmul.mubr.f32.gmra.mxu0 %v4032
    %v4110 = vpop.f32.mrf.mxu0
    %v4111 = vadd.f32 %v4023, %v4110
    %v4112 = vpop.f32.mrf.mxu0
    %4113 = vdwg.mxu0
    %v4114 = vmul.f32 %v4101, %v3820
    %v4115 = vmul.f32 %v4106, %v3821
    %v4116 = vmul.f32 %v4111, %v3822
    %v4117 = vsel %vm476, %v4114, 0.0
    %4118 = vadd.xlane.f32.xlu0 %v4117
    %v4119 = vpop.xlane.xlu0 %4118
    %v4120 = vsel %vm476, %v4115, 0.0
    %4121 = vadd.xlane.f32.xlu0 %v4120
    %v4122 = vpop.xlane.xlu0 %4121
    %v4123 = vsel %vm476, %v4116, 0.0
    %4124 = vadd.xlane.f32.xlu0 %v4123
    %v4125 = vpop.xlane.xlu0 %4124
    %v4126 = vsub.f32 %v4119, %v3799
    %v4127 = vsub.f32 %v4122, %v3800
    %v4128 = vsub.f32 %v4125, %v3801
    %s4129 = sld [smem:[#allocation2 + $0x3]]
    %v4130 = vstv %s4129
    %vm4131 = vcmp.lt.s32.totalorder %v125, %v4130
    %vm4132 = vcmp.lt.s32.totalorder %v126, %v4130
    %vm4133 = vcmp.lt.s32.totalorder %v127, %v4130
    %v4134 = vsel %vm4131, %v4126, 0.0
    %v4135 = vsel %vm4132, %v4127, 0.0
    %v4136 = vsel %vm4133, %v4128, 0.0
    %v4137 = vmul.f32 %v4134, %v4134
    %v4138 = vmul.f32 %v4135, %v4135
    %v4139 = vmul.f32 %v4136, %v4136
    %v4140 = vsel %vm500, %v4137, 0.0
    %v4141 = vsel %vm500, %v4138, 0.0
    %v4142 = vadd.f32 %v4140, %v4141
    %v4143 = vsel %vm500, %v4139, 0.0
    %v4144 = vadd.f32 %v4142, %v4143
    %4145 = vadd.xlane.f32.xlu0 %v4144
    %v4146 = vpop.xlane.xlu0 %4145
    %v4147 = vrot.slane %v4146, 4
    %v4148 = vadd.f32 %v4146, %v4147
    %v4149 = vrot.slane %v4148, 2
    %v4150 = vadd.f32 %v4148, %v4149
    %v4151 = vrot.slane %v4150, 1
    %v4152 = vadd.f32 %v4150, %v4151
    %s4153 = vtos %v4152
    %v4154 = vstv %s4153
    %s4155 = sld [smem:[#allocation6 + $0x3]]
    %v4156 = vstv %s4155
    %v4157 = vmul.f32 %v4154, %v4156
    %vm4158 = vcmp.eq.s32.totalorder %v129, 3
    %v4159 = vsel %vm4158, %v4157, %v2955
    %v4160 = vsel %vm521, %v4126, 0.0
    %v4161 = vsel %vm522, %v4127, 0.0
    %v4162 = vsel %vm523, %v4128, 0.0
    %v4163 = vmul.f32 %v4160, 0.25
    %v4164 = vmul.f32 %v4161, 0.25
    %v4165 = vmul.f32 %v4162, 0.25
    %4167 = vset.pattern.permute.xlu0 0
    %4168 = vperm.xlu0 %4167, %v4163
    %v4169 = vpop.permute.xlu0 %4168
    %4172 = vset.pattern.permute.xlu0 0
    %4173 = vperm.xlu0 %4172, %v4164
    %v4174 = vpop.permute.xlu0 %4173
    %4177 = vset.pattern.permute.xlu0 0
    %4178 = vperm.xlu0 %4177, %v4165
    %v4179 = vpop.permute.xlu0 %4178
    %v4181 = vmul.f32 %v4169, %v3820
    %v4182 = vmul.f32 %v4174, %v3821
    %v4183 = vmul.f32 %v4179, %v3822
    %4184 = vxpose.xlu0.b32.start [1/16] %v4016, 128
    %4185 = vxpose.xlu0.b32.cont [2/16] %v4017, 128
    %4186 = vxpose.xlu0.b32.cont [3/16] %v4018, 128
    %4187 = vxpose.xlu0.b32.cont [4/16] 0.0, 128
    %4188 = vxpose.xlu0.b32.cont [5/16] 0.0, 128
    %4189 = vxpose.xlu0.b32.cont [6/16] 0.0, 128
    %4190 = vxpose.xlu0.b32.cont [7/16] 0.0, 128
    %4191 = vxpose.xlu0.b32.cont [8/16] 0.0, 128
    %4192 = vxpose.xlu0.b32.cont [9/16] 0.0, 128
    %4193 = vxpose.xlu0.b32.cont [10/16] 0.0, 128
    %4194 = vxpose.xlu0.b32.cont [11/16] 0.0, 128
    %4195 = vxpose.xlu0.b32.cont [12/16] 0.0, 128
    %4196 = vxpose.xlu0.b32.cont [13/16] 0.0, 128
    %4197 = vxpose.xlu0.b32.cont [14/16] 0.0, 128
    %4198 = vxpose.xlu0.b32.cont [15/16] 0.0, 128
    %4199 = vxpose.xlu0.b32.end [16/16] 0.0, 128
    %v4200 = vpop.trf.xlu0
    %v4201 = vpop.trf.xlu0
    %v4202 = vpop.trf.xlu0
    %v4203 = vpop.trf.xlu0
    %v4204 = vpop.trf.xlu0
    %v4205 = vpop.trf.xlu0
    %v4206 = vpop.trf.xlu0
    %v4207 = vpop.trf.xlu0
    %v4208 = vpop.trf.xlu0
    %v4209 = vpop.trf.xlu0
    %v4210 = vpop.trf.xlu0
    %v4211 = vpop.trf.xlu0
    %v4212 = vpop.trf.xlu0
    %v4213 = vpop.trf.xlu0
    %v4214 = vpop.trf.xlu0
    %v4215 = vpop.trf.xlu0
    %v4217 = vsel %vm580, %v4200, 0
    %v4220 = vsel %vm580, %v4201, 0
    %v4223 = vsel %vm580, %v4202, 0
    %v4226 = vsel %vm580, %v4203, 0
    %v4229 = vsel %vm580, %v4204, 0
    %v4232 = vsel %vm580, %v4205, 0
    %v4235 = vsel %vm580, %v4206, 0
    %v4238 = vsel %vm580, %v4207, 0
    %4240 = vmatprep.subr.mxu0 0.0
    %4241 = vmatpush1.msra.mxu0 0.0
    %4242 = vmatprep.subr.mxu0 0.0
    %4243 = vmatpush1.msra.mxu0 0.0
    %4244 = vmatprep.subr.mxu0 0.0
    %4245 = vmatpush1.msra.mxu0 0.0
    %4246 = vmatprep.subr.mxu0 0.0
    %4247 = vmatpush1.msra.mxu0 0.0
    %4248 = vmatprep.subr.mxu0 0.0
    %4249 = vmatpush1.msra.mxu0 0.0
    %4250 = vmatprep.subr.mxu0 0.0
    %4251 = vmatpush1.msra.mxu0 0.0
    %4252 = vmatprep.subr.mxu0 0.0
    %4253 = vmatpush1.msra.mxu0 0.0
    %4254 = vmatprep.subr.mxu0 0.0
    %4255 = vmatpush1.msra.mxu0 0.0
    %4256 = vmatprep.subr.mxu0 0.0
    %4257 = vmatpush1.msra.mxu0 0.0
    %4258 = vmatprep.subr.mxu0 0.0
    %4259 = vmatpush1.msra.mxu0 0.0
    %4260 = vmatprep.subr.mxu0 0.0
    %4261 = vmatpush1.msra.mxu0 0.0
    %4262 = vmatprep.subr.mxu0 0.0
    %4263 = vmatpush1.msra.mxu0 0.0
    %4264 = vmatprep.subr.mxu0 0.0
    %4265 = vmatpush1.msra.mxu0 0.0
    %4266 = vmatprep.subr.mxu0 0.0
    %4267 = vmatpush1.msra.mxu0 %v4183
    %4268 = vmatprep.subr.mxu0 0.0
    %4269 = vmatpush1.msra.mxu0 %v4182
    %4270 = vmatprep.subr.mxu0 0.0
    %4271 = vmatpush1.msra.mxu0 %v4181
    %4272 = vmatprep.subr.mxu0 0.0
    %4273 = vmatpush2.msra.mxu0 0.0
    %4274 = vmatprep.subr.mxu0 0.0
    %4275 = vmatpush2.msra.mxu0 0.0
    %4276 = vmatprep.subr.mxu0 0.0
    %4277 = vmatpush2.msra.mxu0 0.0
    %4278 = vmatprep.subr.mxu0 0.0
    %4279 = vmatpush2.msra.mxu0 0.0
    %4280 = vmatprep.subr.mxu0 0.0
    %4281 = vmatpush2.msra.mxu0 0.0
    %4282 = vmatprep.subr.mxu0 0.0
    %4283 = vmatpush2.msra.mxu0 0.0
    %4284 = vmatprep.subr.mxu0 0.0
    %4285 = vmatpush2.msra.mxu0 0.0
    %4286 = vmatprep.subr.mxu0 0.0
    %4287 = vmatpush2.msra.mxu0 0.0
    %4288 = vmatprep.subr.mxu0 0.0
    %4289 = vmatpush2.msra.mxu0 0.0
    %4290 = vmatprep.subr.mxu0 0.0
    %4291 = vmatpush2.msra.mxu0 0.0
    %4292 = vmatprep.subr.mxu0 0.0
    %4293 = vmatpush2.msra.mxu0 0.0
    %4294 = vmatprep.subr.mxu0 0.0
    %4295 = vmatpush2.msra.mxu0 0.0
    %4296 = vmatprep.subr.mxu0 0.0
    %4297 = vmatpush2.msra.mxu0 0.0
    %4298 = vmatprep.subr.mxu0 0.0
    %4299 = vmatpush2.msra.mxu0 0.0
    %4300 = vmatprep.subr.mxu0 0.0
    %4301 = vmatpush2.msra.mxu0 0.0
    %4302 = vmatprep.subr.mxu0 0.0
    %4303 = vmatpush2.msra.mxu0 0.0
    %4304 = vmatprep.mubr.f32.mxu0 0.0
    %4305 = vmatmul.mubr.f32.gmra.mxu0 %v4217
    %v4306 = vpop.f32.mrf.mxu0
    %v4307 = vadd.f32 0.0, %v4306
    %v4308 = vpop.f32.mrf.mxu0
    %4309 = vmatprep.mubr.f32.mxu0 0.0
    %4310 = vmatmul.mubr.f32.gmra.mxu0 %v4220
    %v4311 = vpop.f32.mrf.mxu0
    %v4312 = vadd.f32 0.0, %v4311
    %v4313 = vpop.f32.mrf.mxu0
    %4314 = vmatprep.mubr.f32.mxu0 0.0
    %4315 = vmatmul.mubr.f32.gmra.mxu0 %v4223
    %v4316 = vpop.f32.mrf.mxu0
    %v4317 = vadd.f32 0.0, %v4316
    %v4318 = vpop.f32.mrf.mxu0
    %4319 = vmatprep.mubr.f32.mxu0 0.0
    %4320 = vmatmul.mubr.f32.gmra.mxu0 %v4226
    %v4321 = vpop.f32.mrf.mxu0
    %v4322 = vadd.f32 0.0, %v4321
    %v4323 = vpop.f32.mrf.mxu0
    %4324 = vmatprep.mubr.f32.mxu0 0.0
    %4325 = vmatmul.mubr.f32.gmra.mxu0 %v4229
    %v4326 = vpop.f32.mrf.mxu0
    %v4327 = vadd.f32 0.0, %v4326
    %v4328 = vpop.f32.mrf.mxu0
    %4329 = vmatprep.mubr.f32.mxu0 0.0
    %4330 = vmatmul.mubr.f32.gmra.mxu0 %v4232
    %v4331 = vpop.f32.mrf.mxu0
    %v4332 = vadd.f32 0.0, %v4331
    %v4333 = vpop.f32.mrf.mxu0
    %4334 = vmatprep.mubr.f32.mxu0 0.0
    %4335 = vmatmul.mubr.f32.gmra.mxu0 %v4235
    %v4336 = vpop.f32.mrf.mxu0
    %v4337 = vadd.f32 0.0, %v4336
    %v4338 = vpop.f32.mrf.mxu0
    %4339 = vmatprep.mubr.f32.mxu0 0.0
    %4340 = vmatmul.mubr.f32.gmra.mxu0 %v4238
    %v4341 = vpop.f32.mrf.mxu0
    %v4342 = vadd.f32 0.0, %v4341
    %v4343 = vpop.f32.mrf.mxu0
    %4344 = vdwg.mxu0
    %v4345 = vsel %vm476, %v4181, 0.0
    %v4346 = vsel %vm476, %v4182, 0.0
    %v4347 = vadd.f32 %v4345, %v4346
    %v4348 = vsel %vm476, %v4183, 0.0
    %v4349 = vadd.f32 %v4347, %v4348
    %v4350 = vrot.slane %v4349, 4
    %v4351 = vadd.f32 %v4349, %v4350
    %v4352 = vrot.slane %v4351, 2
    %v4353 = vadd.f32 %v4351, %v4352
    %v4354 = vrot.slane %v4353, 1
    %v4355 = vadd.f32 %v4353, %v4354
    %v4357 = vsel %vm476, %v4181, 0
    %v4360 = vsel %vm476, %v4182, 0
    %v4363 = vsel %vm476, %v4183, 0
    %v4366 = vsel %vm476, %v3782, 0
    %v4369 = vsel %vm476, %v3783, 0
    %v4372 = vsel %vm476, %v3784, 0
    %v4375 = vsel %vm476, %v3785, 0
    %v4378 = vsel %vm476, %v3786, 0
    %v4381 = vsel %vm476, %v3787, 0
    %v4384 = vsel %vm476, %v3788, 0
    %v4387 = vsel %vm476, %v3789, 0
    %4389 = vmatprep.subr.mxu0 0.0
    %4390 = vmatpush1.xpose.msra.mxu0 0.0
    %4391 = vmatprep.subr.mxu0 0.0
    %4392 = vmatpush1.xpose.msra.mxu0 0.0
    %4393 = vmatprep.subr.mxu0 0.0
    %4394 = vmatpush1.xpose.msra.mxu0 0.0
    %4395 = vmatprep.subr.mxu0 0.0
    %4396 = vmatpush1.xpose.msra.mxu0 0.0
    %4397 = vmatprep.subr.mxu0 0.0
    %4398 = vmatpush1.xpose.msra.mxu0 0.0
    %4399 = vmatprep.subr.mxu0 0.0
    %4400 = vmatpush1.xpose.msra.mxu0 0.0
    %4401 = vmatprep.subr.mxu0 0.0
    %4402 = vmatpush1.xpose.msra.mxu0 0.0
    %4403 = vmatprep.subr.mxu0 0.0
    %4404 = vmatpush1.xpose.msra.mxu0 0.0
    %4405 = vmatprep.subr.mxu0 0.0
    %4406 = vmatpush1.xpose.msra.mxu0 %v4387
    %4407 = vmatprep.subr.mxu0 0.0
    %4408 = vmatpush1.xpose.msra.mxu0 %v4384
    %4409 = vmatprep.subr.mxu0 0.0
    %4410 = vmatpush1.xpose.msra.mxu0 %v4381
    %4411 = vmatprep.subr.mxu0 0.0
    %4412 = vmatpush1.xpose.msra.mxu0 %v4378
    %4413 = vmatprep.subr.mxu0 0.0
    %4414 = vmatpush1.xpose.msra.mxu0 %v4375
    %4415 = vmatprep.subr.mxu0 0.0
    %4416 = vmatpush1.xpose.msra.mxu0 %v4372
    %4417 = vmatprep.subr.mxu0 0.0
    %4418 = vmatpush1.xpose.msra.mxu0 %v4369
    %4419 = vmatprep.subr.mxu0 0.0
    %4420 = vmatpush1.xpose.msra.mxu0 %v4366
    %4421 = vmatprep.subr.mxu0 0.0
    %4422 = vmatpush2.xpose.msra.mxu0 0.0
    %4423 = vmatprep.subr.mxu0 0.0
    %4424 = vmatpush2.xpose.msra.mxu0 0.0
    %4425 = vmatprep.subr.mxu0 0.0
    %4426 = vmatpush2.xpose.msra.mxu0 0.0
    %4427 = vmatprep.subr.mxu0 0.0
    %4428 = vmatpush2.xpose.msra.mxu0 0.0
    %4429 = vmatprep.subr.mxu0 0.0
    %4430 = vmatpush2.xpose.msra.mxu0 0.0
    %4431 = vmatprep.subr.mxu0 0.0
    %4432 = vmatpush2.xpose.msra.mxu0 0.0
    %4433 = vmatprep.subr.mxu0 0.0
    %4434 = vmatpush2.xpose.msra.mxu0 0.0
    %4435 = vmatprep.subr.mxu0 0.0
    %4436 = vmatpush2.xpose.msra.mxu0 0.0
    %4437 = vmatprep.subr.mxu0 0.0
    %4438 = vmatpush2.xpose.msra.mxu0 0.0
    %4439 = vmatprep.subr.mxu0 0.0
    %4440 = vmatpush2.xpose.msra.mxu0 0.0
    %4441 = vmatprep.subr.mxu0 0.0
    %4442 = vmatpush2.xpose.msra.mxu0 0.0
    %4443 = vmatprep.subr.mxu0 0.0
    %4444 = vmatpush2.xpose.msra.mxu0 0.0
    %4445 = vmatprep.subr.mxu0 0.0
    %4446 = vmatpush2.xpose.msra.mxu0 0.0
    %4447 = vmatprep.subr.mxu0 0.0
    %4448 = vmatpush2.xpose.msra.mxu0 0.0
    %4449 = vmatprep.subr.mxu0 0.0
    %4450 = vmatpush2.xpose.msra.mxu0 0.0
    %4451 = vmatprep.subr.mxu0 0.0
    %4452 = vmatpush2.xpose.msra.mxu0 0.0
    %4453 = vmatprep.mubr.f32.mxu0 0.0
    %4454 = vmatmul.mubr.f32.gmra.mxu0 %v4357
    %v4455 = vpop.f32.mrf.mxu0
    %v4456 = vadd.f32 0.0, %v4455
    %v4457 = vpop.f32.mrf.mxu0
    %4458 = vmatprep.mubr.f32.mxu0 0.0
    %4459 = vmatmul.mubr.f32.gmra.mxu0 %v4360
    %v4460 = vpop.f32.mrf.mxu0
    %v4461 = vadd.f32 0.0, %v4460
    %v4462 = vpop.f32.mrf.mxu0
    %4463 = vmatprep.mubr.f32.mxu0 0.0
    %4464 = vmatmul.mubr.f32.gmra.mxu0 %v4363
    %v4465 = vpop.f32.mrf.mxu0
    %v4466 = vadd.f32 0.0, %v4465
    %v4467 = vpop.f32.mrf.mxu0
    %4468 = vdwg.mxu0
    %vm4469 = vcmp.gt.f32.partialorder %v4003, 0.0
    %vm4470 = vcmp.gt.f32.partialorder %v4008, 0.0
    %vm4471 = vcmp.gt.f32.partialorder %v4013, 0.0
    %v4472 = vsel %vm4469, %v4456, 0.0
    %v4473 = vsel %vm4470, %v4461, 0.0
    %v4474 = vsel %vm4471, %v4466, 0.0
    %4475 = vxpose.xlu0.b32.start [1/16] %v3918, 128
    %4476 = vxpose.xlu0.b32.cont [2/16] %v3919, 128
    %4477 = vxpose.xlu0.b32.cont [3/16] %v3920, 128
    %4478 = vxpose.xlu0.b32.cont [4/16] 0.0, 128
    %4479 = vxpose.xlu0.b32.cont [5/16] 0.0, 128
    %4480 = vxpose.xlu0.b32.cont [6/16] 0.0, 128
    %4481 = vxpose.xlu0.b32.cont [7/16] 0.0, 128
    %4482 = vxpose.xlu0.b32.cont [8/16] 0.0, 128
    %4483 = vxpose.xlu0.b32.cont [9/16] 0.0, 128
    %4484 = vxpose.xlu0.b32.cont [10/16] 0.0, 128
    %4485 = vxpose.xlu0.b32.cont [11/16] 0.0, 128
    %4486 = vxpose.xlu0.b32.cont [12/16] 0.0, 128
    %4487 = vxpose.xlu0.b32.cont [13/16] 0.0, 128
    %4488 = vxpose.xlu0.b32.cont [14/16] 0.0, 128
    %4489 = vxpose.xlu0.b32.cont [15/16] 0.0, 128
    %4490 = vxpose.xlu0.b32.end [16/16] 0.0, 128
    %v4491 = vpop.trf.xlu0
    %v4492 = vpop.trf.xlu0
    %v4493 = vpop.trf.xlu0
    %v4494 = vpop.trf.xlu0
    %v4495 = vpop.trf.xlu0
    %v4496 = vpop.trf.xlu0
    %v4497 = vpop.trf.xlu0
    %v4498 = vpop.trf.xlu0
    %v4499 = vpop.trf.xlu0
    %v4500 = vpop.trf.xlu0
    %v4501 = vpop.trf.xlu0
    %v4502 = vpop.trf.xlu0
    %v4503 = vpop.trf.xlu0
    %v4504 = vpop.trf.xlu0
    %v4505 = vpop.trf.xlu0
    %v4506 = vpop.trf.xlu0
    %v4508 = vsel %vm580, %v4491, 0
    %v4511 = vsel %vm580, %v4492, 0
    %v4514 = vsel %vm580, %v4493, 0
    %v4517 = vsel %vm580, %v4494, 0
    %v4520 = vsel %vm580, %v4495, 0
    %v4523 = vsel %vm580, %v4496, 0
    %v4526 = vsel %vm580, %v4497, 0
    %v4529 = vsel %vm580, %v4498, 0
    %4531 = vmatprep.subr.mxu0 0.0
    %4532 = vmatpush1.msra.mxu0 0.0
    %4533 = vmatprep.subr.mxu0 0.0
    %4534 = vmatpush1.msra.mxu0 0.0
    %4535 = vmatprep.subr.mxu0 0.0
    %4536 = vmatpush1.msra.mxu0 0.0
    %4537 = vmatprep.subr.mxu0 0.0
    %4538 = vmatpush1.msra.mxu0 0.0
    %4539 = vmatprep.subr.mxu0 0.0
    %4540 = vmatpush1.msra.mxu0 0.0
    %4541 = vmatprep.subr.mxu0 0.0
    %4542 = vmatpush1.msra.mxu0 0.0
    %4543 = vmatprep.subr.mxu0 0.0
    %4544 = vmatpush1.msra.mxu0 0.0
    %4545 = vmatprep.subr.mxu0 0.0
    %4546 = vmatpush1.msra.mxu0 0.0
    %4547 = vmatprep.subr.mxu0 0.0
    %4548 = vmatpush1.msra.mxu0 0.0
    %4549 = vmatprep.subr.mxu0 0.0
    %4550 = vmatpush1.msra.mxu0 0.0
    %4551 = vmatprep.subr.mxu0 0.0
    %4552 = vmatpush1.msra.mxu0 0.0
    %4553 = vmatprep.subr.mxu0 0.0
    %4554 = vmatpush1.msra.mxu0 0.0
    %4555 = vmatprep.subr.mxu0 0.0
    %4556 = vmatpush1.msra.mxu0 0.0
    %4557 = vmatprep.subr.mxu0 0.0
    %4558 = vmatpush1.msra.mxu0 %v4474
    %4559 = vmatprep.subr.mxu0 0.0
    %4560 = vmatpush1.msra.mxu0 %v4473
    %4561 = vmatprep.subr.mxu0 0.0
    %4562 = vmatpush1.msra.mxu0 %v4472
    %4563 = vmatprep.subr.mxu0 0.0
    %4564 = vmatpush2.msra.mxu0 0.0
    %4565 = vmatprep.subr.mxu0 0.0
    %4566 = vmatpush2.msra.mxu0 0.0
    %4567 = vmatprep.subr.mxu0 0.0
    %4568 = vmatpush2.msra.mxu0 0.0
    %4569 = vmatprep.subr.mxu0 0.0
    %4570 = vmatpush2.msra.mxu0 0.0
    %4571 = vmatprep.subr.mxu0 0.0
    %4572 = vmatpush2.msra.mxu0 0.0
    %4573 = vmatprep.subr.mxu0 0.0
    %4574 = vmatpush2.msra.mxu0 0.0
    %4575 = vmatprep.subr.mxu0 0.0
    %4576 = vmatpush2.msra.mxu0 0.0
    %4577 = vmatprep.subr.mxu0 0.0
    %4578 = vmatpush2.msra.mxu0 0.0
    %4579 = vmatprep.subr.mxu0 0.0
    %4580 = vmatpush2.msra.mxu0 0.0
    %4581 = vmatprep.subr.mxu0 0.0
    %4582 = vmatpush2.msra.mxu0 0.0
    %4583 = vmatprep.subr.mxu0 0.0
    %4584 = vmatpush2.msra.mxu0 0.0
    %4585 = vmatprep.subr.mxu0 0.0
    %4586 = vmatpush2.msra.mxu0 0.0
    %4587 = vmatprep.subr.mxu0 0.0
    %4588 = vmatpush2.msra.mxu0 0.0
    %4589 = vmatprep.subr.mxu0 0.0
    %4590 = vmatpush2.msra.mxu0 0.0
    %4591 = vmatprep.subr.mxu0 0.0
    %4592 = vmatpush2.msra.mxu0 0.0
    %4593 = vmatprep.subr.mxu0 0.0
    %4594 = vmatpush2.msra.mxu0 0.0
    %4595 = vmatprep.mubr.f32.mxu0 0.0
    %4596 = vmatmul.mubr.f32.gmra.mxu0 %v4508
    %v4597 = vpop.f32.mrf.mxu0
    %v4598 = vadd.f32 0.0, %v4597
    %v4599 = vpop.f32.mrf.mxu0
    %4600 = vmatprep.mubr.f32.mxu0 0.0
    %4601 = vmatmul.mubr.f32.gmra.mxu0 %v4511
    %v4602 = vpop.f32.mrf.mxu0
    %v4603 = vadd.f32 0.0, %v4602
    %v4604 = vpop.f32.mrf.mxu0
    %4605 = vmatprep.mubr.f32.mxu0 0.0
    %4606 = vmatmul.mubr.f32.gmra.mxu0 %v4514
    %v4607 = vpop.f32.mrf.mxu0
    %v4608 = vadd.f32 0.0, %v4607
    %v4609 = vpop.f32.mrf.mxu0
    %4610 = vmatprep.mubr.f32.mxu0 0.0
    %4611 = vmatmul.mubr.f32.gmra.mxu0 %v4517
    %v4612 = vpop.f32.mrf.mxu0
    %v4613 = vadd.f32 0.0, %v4612
    %v4614 = vpop.f32.mrf.mxu0
    %4615 = vmatprep.mubr.f32.mxu0 0.0
    %4616 = vmatmul.mubr.f32.gmra.mxu0 %v4520
    %v4617 = vpop.f32.mrf.mxu0
    %v4618 = vadd.f32 0.0, %v4617
    %v4619 = vpop.f32.mrf.mxu0
    %4620 = vmatprep.mubr.f32.mxu0 0.0
    %4621 = vmatmul.mubr.f32.gmra.mxu0 %v4523
    %v4622 = vpop.f32.mrf.mxu0
    %v4623 = vadd.f32 0.0, %v4622
    %v4624 = vpop.f32.mrf.mxu0
    %4625 = vmatprep.mubr.f32.mxu0 0.0
    %4626 = vmatmul.mubr.f32.gmra.mxu0 %v4526
    %v4627 = vpop.f32.mrf.mxu0
    %v4628 = vadd.f32 0.0, %v4627
    %v4629 = vpop.f32.mrf.mxu0
    %4630 = vmatprep.mubr.f32.mxu0 0.0
    %4631 = vmatmul.mubr.f32.gmra.mxu0 %v4529
    %v4632 = vpop.f32.mrf.mxu0
    %v4633 = vadd.f32 0.0, %v4632
    %v4634 = vpop.f32.mrf.mxu0
    %4635 = vdwg.mxu0
    %v4636 = vsel %vm285, %v4472, 0.0
    %v4637 = vsel %vm285, %v4473, 0.0
    %v4638 = vadd.f32 %v4636, %v4637
    %v4639 = vsel %vm285, %v4474, 0.0
    %v4640 = vadd.f32 %v4638, %v4639
    %v4641 = vrot.slane %v4640, 4
    %v4642 = vadd.f32 %v4640, %v4641
    %v4643 = vrot.slane %v4642, 2
    %v4644 = vadd.f32 %v4642, %v4643
    %v4645 = vrot.slane %v4644, 1
    %v4646 = vadd.f32 %v4644, %v4645
    %v4648 = vsel %vm285, %v4472, 0
    %v4651 = vsel %vm285, %v4473, 0
    %v4654 = vsel %vm285, %v4474, 0
    %v4657 = vsel %vm285, %v3746, 0
    %v4660 = vsel %vm285, %v3747, 0
    %v4663 = vsel %vm285, %v3748, 0
    %v4666 = vsel %vm285, %v3749, 0
    %v4669 = vsel %vm285, %v3750, 0
    %v4672 = vsel %vm285, %v3751, 0
    %v4675 = vsel %vm285, %v3752, 0
    %v4678 = vsel %vm285, %v3753, 0
    %4680 = vmatprep.subr.mxu0 0.0
    %4681 = vmatpush1.xpose.msra.mxu0 0.0
    %4682 = vmatprep.subr.mxu0 0.0
    %4683 = vmatpush1.xpose.msra.mxu0 0.0
    %4684 = vmatprep.subr.mxu0 0.0
    %4685 = vmatpush1.xpose.msra.mxu0 0.0
    %4686 = vmatprep.subr.mxu0 0.0
    %4687 = vmatpush1.xpose.msra.mxu0 0.0
    %4688 = vmatprep.subr.mxu0 0.0
    %4689 = vmatpush1.xpose.msra.mxu0 0.0
    %4690 = vmatprep.subr.mxu0 0.0
    %4691 = vmatpush1.xpose.msra.mxu0 0.0
    %4692 = vmatprep.subr.mxu0 0.0
    %4693 = vmatpush1.xpose.msra.mxu0 0.0
    %4694 = vmatprep.subr.mxu0 0.0
    %4695 = vmatpush1.xpose.msra.mxu0 0.0
    %4696 = vmatprep.subr.mxu0 0.0
    %4697 = vmatpush1.xpose.msra.mxu0 %v4678
    %4698 = vmatprep.subr.mxu0 0.0
    %4699 = vmatpush1.xpose.msra.mxu0 %v4675
    %4700 = vmatprep.subr.mxu0 0.0
    %4701 = vmatpush1.xpose.msra.mxu0 %v4672
    %4702 = vmatprep.subr.mxu0 0.0
    %4703 = vmatpush1.xpose.msra.mxu0 %v4669
    %4704 = vmatprep.subr.mxu0 0.0
    %4705 = vmatpush1.xpose.msra.mxu0 %v4666
    %4706 = vmatprep.subr.mxu0 0.0
    %4707 = vmatpush1.xpose.msra.mxu0 %v4663
    %4708 = vmatprep.subr.mxu0 0.0
    %4709 = vmatpush1.xpose.msra.mxu0 %v4660
    %4710 = vmatprep.subr.mxu0 0.0
    %4711 = vmatpush1.xpose.msra.mxu0 %v4657
    %4712 = vmatprep.subr.mxu0 0.0
    %4713 = vmatpush2.xpose.msra.mxu0 0.0
    %4714 = vmatprep.subr.mxu0 0.0
    %4715 = vmatpush2.xpose.msra.mxu0 0.0
    %4716 = vmatprep.subr.mxu0 0.0
    %4717 = vmatpush2.xpose.msra.mxu0 0.0
    %4718 = vmatprep.subr.mxu0 0.0
    %4719 = vmatpush2.xpose.msra.mxu0 0.0
    %4720 = vmatprep.subr.mxu0 0.0
    %4721 = vmatpush2.xpose.msra.mxu0 0.0
    %4722 = vmatprep.subr.mxu0 0.0
    %4723 = vmatpush2.xpose.msra.mxu0 0.0
    %4724 = vmatprep.subr.mxu0 0.0
    %4725 = vmatpush2.xpose.msra.mxu0 0.0
    %4726 = vmatprep.subr.mxu0 0.0
    %4727 = vmatpush2.xpose.msra.mxu0 0.0
    %4728 = vmatprep.subr.mxu0 0.0
    %4729 = vmatpush2.xpose.msra.mxu0 0.0
    %4730 = vmatprep.subr.mxu0 0.0
    %4731 = vmatpush2.xpose.msra.mxu0 0.0
    %4732 = vmatprep.subr.mxu0 0.0
    %4733 = vmatpush2.xpose.msra.mxu0 0.0
    %4734 = vmatprep.subr.mxu0 0.0
    %4735 = vmatpush2.xpose.msra.mxu0 0.0
    %4736 = vmatprep.subr.mxu0 0.0
    %4737 = vmatpush2.xpose.msra.mxu0 0.0
    %4738 = vmatprep.subr.mxu0 0.0
    %4739 = vmatpush2.xpose.msra.mxu0 0.0
    %4740 = vmatprep.subr.mxu0 0.0
    %4741 = vmatpush2.xpose.msra.mxu0 0.0
    %4742 = vmatprep.subr.mxu0 0.0
    %4743 = vmatpush2.xpose.msra.mxu0 0.0
    %4744 = vmatprep.mubr.f32.mxu0 0.0
    %4745 = vmatmul.mubr.f32.gmra.mxu0 %v4648
    %v4746 = vpop.f32.mrf.mxu0
    %v4747 = vadd.f32 0.0, %v4746
    %v4748 = vpop.f32.mrf.mxu0
    %4749 = vmatprep.mubr.f32.mxu0 0.0
    %4750 = vmatmul.mubr.f32.gmra.mxu0 %v4651
    %v4751 = vpop.f32.mrf.mxu0
    %v4752 = vadd.f32 0.0, %v4751
    %v4753 = vpop.f32.mrf.mxu0
    %4754 = vmatprep.mubr.f32.mxu0 0.0
    %4755 = vmatmul.mubr.f32.gmra.mxu0 %v4654
    %v4756 = vpop.f32.mrf.mxu0
    %v4757 = vadd.f32 0.0, %v4756
    %v4758 = vpop.f32.mrf.mxu0
    %4759 = vdwg.mxu0
    %vm4760 = vcmp.gt.f32.partialorder %v3905, 0.0
    %vm4761 = vcmp.gt.f32.partialorder %v3910, 0.0
    %vm4762 = vcmp.gt.f32.partialorder %v3915, 0.0
    %v4763 = vsel %vm4760, %v4747, 0.0
    %v4764 = vsel %vm4761, %v4752, 0.0
    %v4765 = vsel %vm4762, %v4757, 0.0
    %4766 = vxpose.xlu0.b32.start [1/16] %v3795, 128
    %4767 = vxpose.xlu0.b32.cont [2/16] %v3796, 128
    %4768 = vxpose.xlu0.b32.cont [3/16] %v3797, 128
    %4769 = vxpose.xlu0.b32.cont [4/16] 0.0, 128
    %4770 = vxpose.xlu0.b32.cont [5/16] 0.0, 128
    %4771 = vxpose.xlu0.b32.cont [6/16] 0.0, 128
    %4772 = vxpose.xlu0.b32.cont [7/16] 0.0, 128
    %4773 = vxpose.xlu0.b32.cont [8/16] 0.0, 128
    %4774 = vxpose.xlu0.b32.cont [9/16] 0.0, 128
    %4775 = vxpose.xlu0.b32.cont [10/16] 0.0, 128
    %4776 = vxpose.xlu0.b32.cont [11/16] 0.0, 128
    %4777 = vxpose.xlu0.b32.cont [12/16] 0.0, 128
    %4778 = vxpose.xlu0.b32.cont [13/16] 0.0, 128
    %4779 = vxpose.xlu0.b32.cont [14/16] 0.0, 128
    %4780 = vxpose.xlu0.b32.cont [15/16] 0.0, 128
    %4781 = vxpose.xlu0.b32.end [16/16] 0.0, 128
    %v4782 = vpop.trf.xlu0
    %v4783 = vpop.trf.xlu0
    %v4784 = vpop.trf.xlu0
    %v4785 = vpop.trf.xlu0
    %v4786 = vpop.trf.xlu0
    %v4787 = vpop.trf.xlu0
    %v4788 = vpop.trf.xlu0
    %v4789 = vpop.trf.xlu0
    %v4790 = vpop.trf.xlu0
    %v4791 = vpop.trf.xlu0
    %v4792 = vpop.trf.xlu0
    %v4793 = vpop.trf.xlu0
    %v4794 = vpop.trf.xlu0
    %v4795 = vpop.trf.xlu0
    %v4796 = vpop.trf.xlu0
    %v4797 = vpop.trf.xlu0
    %v4799 = vsel %vm580, %v4782, 0
    %v4802 = vsel %vm580, %v4783, 0
    %v4805 = vsel %vm580, %v4784, 0
    %v4808 = vsel %vm580, %v4785, 0
    %4810 = vmatprep.subr.mxu0 0.0
    %4811 = vmatpush1.msra.mxu0 0.0
    %4812 = vmatprep.subr.mxu0 0.0
    %4813 = vmatpush1.msra.mxu0 0.0
    %4814 = vmatprep.subr.mxu0 0.0
    %4815 = vmatpush1.msra.mxu0 0.0
    %4816 = vmatprep.subr.mxu0 0.0
    %4817 = vmatpush1.msra.mxu0 0.0
    %4818 = vmatprep.subr.mxu0 0.0
    %4819 = vmatpush1.msra.mxu0 0.0
    %4820 = vmatprep.subr.mxu0 0.0
    %4821 = vmatpush1.msra.mxu0 0.0
    %4822 = vmatprep.subr.mxu0 0.0
    %4823 = vmatpush1.msra.mxu0 0.0
    %4824 = vmatprep.subr.mxu0 0.0
    %4825 = vmatpush1.msra.mxu0 0.0
    %4826 = vmatprep.subr.mxu0 0.0
    %4827 = vmatpush1.msra.mxu0 0.0
    %4828 = vmatprep.subr.mxu0 0.0
    %4829 = vmatpush1.msra.mxu0 0.0
    %4830 = vmatprep.subr.mxu0 0.0
    %4831 = vmatpush1.msra.mxu0 0.0
    %4832 = vmatprep.subr.mxu0 0.0
    %4833 = vmatpush1.msra.mxu0 0.0
    %4834 = vmatprep.subr.mxu0 0.0
    %4835 = vmatpush1.msra.mxu0 0.0
    %4836 = vmatprep.subr.mxu0 0.0
    %4837 = vmatpush1.msra.mxu0 %v4765
    %4838 = vmatprep.subr.mxu0 0.0
    %4839 = vmatpush1.msra.mxu0 %v4764
    %4840 = vmatprep.subr.mxu0 0.0
    %4841 = vmatpush1.msra.mxu0 %v4763
    %4842 = vmatprep.subr.mxu0 0.0
    %4843 = vmatpush2.msra.mxu0 0.0
    %4844 = vmatprep.subr.mxu0 0.0
    %4845 = vmatpush2.msra.mxu0 0.0
    %4846 = vmatprep.subr.mxu0 0.0
    %4847 = vmatpush2.msra.mxu0 0.0
    %4848 = vmatprep.subr.mxu0 0.0
    %4849 = vmatpush2.msra.mxu0 0.0
    %4850 = vmatprep.subr.mxu0 0.0
    %4851 = vmatpush2.msra.mxu0 0.0
    %4852 = vmatprep.subr.mxu0 0.0
    %4853 = vmatpush2.msra.mxu0 0.0
    %4854 = vmatprep.subr.mxu0 0.0
    %4855 = vmatpush2.msra.mxu0 0.0
    %4856 = vmatprep.subr.mxu0 0.0
    %4857 = vmatpush2.msra.mxu0 0.0
    %4858 = vmatprep.subr.mxu0 0.0
    %4859 = vmatpush2.msra.mxu0 0.0
    %4860 = vmatprep.subr.mxu0 0.0
    %4861 = vmatpush2.msra.mxu0 0.0
    %4862 = vmatprep.subr.mxu0 0.0
    %4863 = vmatpush2.msra.mxu0 0.0
    %4864 = vmatprep.subr.mxu0 0.0
    %4865 = vmatpush2.msra.mxu0 0.0
    %4866 = vmatprep.subr.mxu0 0.0
    %4867 = vmatpush2.msra.mxu0 0.0
    %4868 = vmatprep.subr.mxu0 0.0
    %4869 = vmatpush2.msra.mxu0 0.0
    %4870 = vmatprep.subr.mxu0 0.0
    %4871 = vmatpush2.msra.mxu0 0.0
    %4872 = vmatprep.subr.mxu0 0.0
    %4873 = vmatpush2.msra.mxu0 0.0
    %4874 = vmatprep.mubr.f32.mxu0 0.0
    %4875 = vmatmul.mubr.f32.gmra.mxu0 %v4799
    %v4876 = vpop.f32.mrf.mxu0
    %v4877 = vadd.f32 0.0, %v4876
    %v4878 = vpop.f32.mrf.mxu0
    %4879 = vmatprep.mubr.f32.mxu0 0.0
    %4880 = vmatmul.mubr.f32.gmra.mxu0 %v4802
    %v4881 = vpop.f32.mrf.mxu0
    %v4882 = vadd.f32 0.0, %v4881
    %v4883 = vpop.f32.mrf.mxu0
    %4884 = vmatprep.mubr.f32.mxu0 0.0
    %4885 = vmatmul.mubr.f32.gmra.mxu0 %v4805
    %v4886 = vpop.f32.mrf.mxu0
    %v4887 = vadd.f32 0.0, %v4886
    %v4888 = vpop.f32.mrf.mxu0
    %4889 = vmatprep.mubr.f32.mxu0 0.0
    %4890 = vmatmul.mubr.f32.gmra.mxu0 %v4808
    %v4891 = vpop.f32.mrf.mxu0
    %v4892 = vadd.f32 0.0, %v4891
    %v4893 = vpop.f32.mrf.mxu0
    %4894 = vdwg.mxu0
    %v4895 = vsel %vm285, %v4763, 0.0
    %v4896 = vsel %vm285, %v4764, 0.0
    %v4897 = vadd.f32 %v4895, %v4896
    %v4898 = vsel %vm285, %v4765, 0.0
    %v4899 = vadd.f32 %v4897, %v4898
    %v4900 = vrot.slane %v4899, 4
    %v4901 = vadd.f32 %v4899, %v4900
    %v4902 = vrot.slane %v4901, 2
    %v4903 = vadd.f32 %v4901, %v4902
    %v4904 = vrot.slane %v4903, 1
    %v4905 = vadd.f32 %v4903, %v4904
    %vm4906 = vcmp.ne.f32.partialorder %v4877, %v4877
    %vm4907 = vcmp.ne.f32.partialorder %v4882, %v4882
    %vm4908 = vcmp.ne.f32.partialorder %v4887, %v4887
    %vm4909 = vcmp.ne.f32.partialorder %v4892, %v4892
    %v4910 = vsel %vm4906, 0.0, %v4877
    %v4911 = vsel %vm4907, 0.0, %v4882
    %v4912 = vsel %vm4908, 0.0, %v4887
    %v4913 = vsel %vm4909, 0.0, %v4892
    %v4914 = vmul.f32 %v4910, %v1279
    %v4915 = vmul.f32 %v4911, %v1280
    %v4916 = vmul.f32 %v4912, %v1281
    %v4917 = vmul.f32 %v4913, %v1282
    %v4918 = vsub.f32 %v3714, %v4914
    %v4919 = vsub.f32 %v3715, %v4915
    %v4920 = vsub.f32 %v3716, %v4916
    %v4921 = vsub.f32 %v3717, %v4917
    %vm4922 = vcmp.ne.f32.partialorder %v4905, %v4905
    %v4923 = vsel %vm4922, 0.0, %v4905
    %v4924 = vmul.f32 %v4923, %v1293
    %v4925 = vsub.f32 %v3721, %v4924
    %vm4926 = vcmp.ne.f32.partialorder %v4598, %v4598
    %vm4927 = vcmp.ne.f32.partialorder %v4603, %v4603
    %vm4928 = vcmp.ne.f32.partialorder %v4608, %v4608
    %vm4929 = vcmp.ne.f32.partialorder %v4613, %v4613
    %vm4930 = vcmp.ne.f32.partialorder %v4618, %v4618
    %vm4931 = vcmp.ne.f32.partialorder %v4623, %v4623
    %vm4932 = vcmp.ne.f32.partialorder %v4628, %v4628
    %vm4933 = vcmp.ne.f32.partialorder %v4633, %v4633
    %v4934 = vsel %vm4926, 0.0, %v4598
    %v4935 = vsel %vm4927, 0.0, %v4603
    %v4936 = vsel %vm4928, 0.0, %v4608
    %v4937 = vsel %vm4929, 0.0, %v4613
    %v4938 = vsel %vm4930, 0.0, %v4618
    %v4939 = vsel %vm4931, 0.0, %v4623
    %v4940 = vsel %vm4932, 0.0, %v4628
    %v4941 = vsel %vm4933, 0.0, %v4633
    %v4942 = vmul.f32 %v4934, %v1312
    %v4943 = vmul.f32 %v4935, %v1313
    %v4944 = vmul.f32 %v4936, %v1314
    %v4945 = vmul.f32 %v4937, %v1315
    %v4946 = vmul.f32 %v4938, %v1316
    %v4947 = vmul.f32 %v4939, %v1317
    %v4948 = vmul.f32 %v4940, %v1318
    %v4949 = vmul.f32 %v4941, %v1319
    %v4950 = vsub.f32 %v3746, %v4942
    %v4951 = vsub.f32 %v3747, %v4943
    %v4952 = vsub.f32 %v3748, %v4944
    %v4953 = vsub.f32 %v3749, %v4945
    %v4954 = vsub.f32 %v3750, %v4946
    %v4955 = vsub.f32 %v3751, %v4947
    %v4956 = vsub.f32 %v3752, %v4948
    %v4957 = vsub.f32 %v3753, %v4949
    %vm4958 = vcmp.ne.f32.partialorder %v4646, %v4646
    %v4959 = vsel %vm4958, 0.0, %v4646
    %v4960 = vmul.f32 %v4959, %v1338
    %v4961 = vsub.f32 %v3757, %v4960
    %vm4962 = vcmp.ne.f32.partialorder %v4307, %v4307
    %vm4963 = vcmp.ne.f32.partialorder %v4312, %v4312
    %vm4964 = vcmp.ne.f32.partialorder %v4317, %v4317
    %vm4965 = vcmp.ne.f32.partialorder %v4322, %v4322
    %vm4966 = vcmp.ne.f32.partialorder %v4327, %v4327
    %vm4967 = vcmp.ne.f32.partialorder %v4332, %v4332
    %vm4968 = vcmp.ne.f32.partialorder %v4337, %v4337
    %vm4969 = vcmp.ne.f32.partialorder %v4342, %v4342
    %v4970 = vsel %vm4962, 0.0, %v4307
    %v4971 = vsel %vm4963, 0.0, %v4312
    %v4972 = vsel %vm4964, 0.0, %v4317
    %v4973 = vsel %vm4965, 0.0, %v4322
    %v4974 = vsel %vm4966, 0.0, %v4327
    %v4975 = vsel %vm4967, 0.0, %v4332
    %v4976 = vsel %vm4968, 0.0, %v4337
    %v4977 = vsel %vm4969, 0.0, %v4342
    %v4978 = vmul.f32 %v4970, %v1357
    %v4979 = vmul.f32 %v4971, %v1358
    %v4980 = vmul.f32 %v4972, %v1359
    %v4981 = vmul.f32 %v4973, %v1360
    %v4982 = vmul.f32 %v4974, %v1361
    %v4983 = vmul.f32 %v4975, %v1362
    %v4984 = vmul.f32 %v4976, %v1363
    %v4985 = vmul.f32 %v4977, %v1364
    %v4986 = vsub.f32 %v3782, %v4978
    %v4987 = vsub.f32 %v3783, %v4979
    %v4988 = vsub.f32 %v3784, %v4980
    %v4989 = vsub.f32 %v3785, %v4981
    %v4990 = vsub.f32 %v3786, %v4982
    %v4991 = vsub.f32 %v3787, %v4983
    %v4992 = vsub.f32 %v3788, %v4984
    %v4993 = vsub.f32 %v3789, %v4985
    %vm4994 = vcmp.ne.f32.partialorder %v4355, %v4355
    %v4995 = vsel %vm4994, 0.0, %v4355
    %v4996 = vmul.f32 %v4995, %v1383
    %v4997 = vsub.f32 %v3793, %v4996
    %v4999 = vlaneseq
    %v5000 = vshrl.u32 %v4999, 7
    %v5001 = vsub.s32 0, %v5000
    %v5002 = vrot.slane %v4925, %v5001
    %5004 = vmatprep.subr.mxu0 0.0
    %5005 = vmatpush1.msra.mxu0 0.0
    %5006 = vmatprep.subr.mxu0 0.0
    %5007 = vmatpush1.msra.mxu0 0.0
    %5008 = vmatprep.subr.mxu0 0.0
    %5009 = vmatpush1.msra.mxu0 0.0
    %5010 = vmatprep.subr.mxu0 0.0
    %5011 = vmatpush1.msra.mxu0 0.0
    %5012 = vmatprep.subr.mxu0 0.0
    %5013 = vmatpush1.msra.mxu0 0.0
    %5014 = vmatprep.subr.mxu0 0.0
    %5015 = vmatpush1.msra.mxu0 0.0
    %5016 = vmatprep.subr.mxu0 0.0
    %5017 = vmatpush1.msra.mxu0 0.0
    %5018 = vmatprep.subr.mxu0 0.0
    %5019 = vmatpush1.msra.mxu0 0.0
    %5020 = vmatprep.subr.mxu0 0.0
    %5021 = vmatpush1.msra.mxu0 0.0
    %5022 = vmatprep.subr.mxu0 0.0
    %5023 = vmatpush1.msra.mxu0 0.0
    %5024 = vmatprep.subr.mxu0 0.0
    %5025 = vmatpush1.msra.mxu0 0.0
    %5026 = vmatprep.subr.mxu0 0.0
    %5027 = vmatpush1.msra.mxu0 0.0
    %5028 = vmatprep.subr.mxu0 0.0
    %5029 = vmatpush1.msra.mxu0 %v4921
    %5030 = vmatprep.subr.mxu0 0.0
    %5031 = vmatpush1.msra.mxu0 %v4920
    %5032 = vmatprep.subr.mxu0 0.0
    %5033 = vmatpush1.msra.mxu0 %v4919
    %5034 = vmatprep.subr.mxu0 0.0
    %5035 = vmatpush1.msra.mxu0 %v4918
    %5036 = vmatprep.subr.mxu0 0.0
    %5037 = vmatpush2.msra.mxu0 0.0
    %5038 = vmatprep.subr.mxu0 0.0
    %5039 = vmatpush2.msra.mxu0 0.0
    %5040 = vmatprep.subr.mxu0 0.0
    %5041 = vmatpush2.msra.mxu0 0.0
    %5042 = vmatprep.subr.mxu0 0.0
    %5043 = vmatpush2.msra.mxu0 0.0
    %5044 = vmatprep.subr.mxu0 0.0
    %5045 = vmatpush2.msra.mxu0 0.0
    %5046 = vmatprep.subr.mxu0 0.0
    %5047 = vmatpush2.msra.mxu0 0.0
    %5048 = vmatprep.subr.mxu0 0.0
    %5049 = vmatpush2.msra.mxu0 0.0
    %5050 = vmatprep.subr.mxu0 0.0
    %5051 = vmatpush2.msra.mxu0 0.0
    %5052 = vmatprep.subr.mxu0 0.0
    %5053 = vmatpush2.msra.mxu0 0.0
    %5054 = vmatprep.subr.mxu0 0.0
    %5055 = vmatpush2.msra.mxu0 0.0
    %5056 = vmatprep.subr.mxu0 0.0
    %5057 = vmatpush2.msra.mxu0 0.0
    %5058 = vmatprep.subr.mxu0 0.0
    %5059 = vmatpush2.msra.mxu0 0.0
    %5060 = vmatprep.subr.mxu0 0.0
    %5061 = vmatpush2.msra.mxu0 0.0
    %5062 = vmatprep.subr.mxu0 0.0
    %5063 = vmatpush2.msra.mxu0 0.0
    %5064 = vmatprep.subr.mxu0 0.0
    %5065 = vmatpush2.msra.mxu0 0.0
    %5066 = vmatprep.subr.mxu0 0.0
    %5067 = vmatpush2.msra.mxu0 0.0
    %5068 = vmatprep.mubr.f32.mxu0 0.0
    %5069 = vmatmul.mubr.f32.gmra.mxu0 %v188
    %v5070 = vpop.f32.mrf.mxu0
    %v5071 = vadd.f32 %v5002, %v5070
    %v5072 = vpop.f32.mrf.mxu0
    %5073 = vmatprep.mubr.f32.mxu0 0.0
    %5074 = vmatmul.mubr.f32.gmra.mxu0 %v191
    %v5075 = vpop.f32.mrf.mxu0
    %v5076 = vadd.f32 %v5002, %v5075
    %v5077 = vpop.f32.mrf.mxu0
    %5078 = vmatprep.mubr.f32.mxu0 0.0
    %5079 = vmatmul.mubr.f32.gmra.mxu0 %v194
    %v5080 = vpop.f32.mrf.mxu0
    %v5081 = vadd.f32 %v5002, %v5080
    %v5082 = vpop.f32.mrf.mxu0
    %5083 = vdwg.mxu0
    %v5084 = vmax.f32 %v5071, 0.0
    %v5085 = vmax.f32 %v5076, 0.0
    %v5086 = vmax.f32 %v5081, 0.0
    %v5088 = vlaneseq
    %v5089 = vshrl.u32 %v5088, 7
    %v5090 = vsub.s32 0, %v5089
    %v5091 = vrot.slane %v4961, %v5090
    %v5094 = vsel %vm285, %v5084, 0
    %v5097 = vsel %vm285, %v5085, 0
    %v5100 = vsel %vm285, %v5086, 0
    %5102 = vmatprep.subr.mxu0 0.0
    %5103 = vmatpush1.msra.mxu0 0.0
    %5104 = vmatprep.subr.mxu0 0.0
    %5105 = vmatpush1.msra.mxu0 0.0
    %5106 = vmatprep.subr.mxu0 0.0
    %5107 = vmatpush1.msra.mxu0 0.0
    %5108 = vmatprep.subr.mxu0 0.0
    %5109 = vmatpush1.msra.mxu0 0.0
    %5110 = vmatprep.subr.mxu0 0.0
    %5111 = vmatpush1.msra.mxu0 0.0
    %5112 = vmatprep.subr.mxu0 0.0
    %5113 = vmatpush1.msra.mxu0 0.0
    %5114 = vmatprep.subr.mxu0 0.0
    %5115 = vmatpush1.msra.mxu0 0.0
    %5116 = vmatprep.subr.mxu0 0.0
    %5117 = vmatpush1.msra.mxu0 0.0
    %5118 = vmatprep.subr.mxu0 0.0
    %5119 = vmatpush1.msra.mxu0 %v4957
    %5120 = vmatprep.subr.mxu0 0.0
    %5121 = vmatpush1.msra.mxu0 %v4956
    %5122 = vmatprep.subr.mxu0 0.0
    %5123 = vmatpush1.msra.mxu0 %v4955
    %5124 = vmatprep.subr.mxu0 0.0
    %5125 = vmatpush1.msra.mxu0 %v4954
    %5126 = vmatprep.subr.mxu0 0.0
    %5127 = vmatpush1.msra.mxu0 %v4953
    %5128 = vmatprep.subr.mxu0 0.0
    %5129 = vmatpush1.msra.mxu0 %v4952
    %5130 = vmatprep.subr.mxu0 0.0
    %5131 = vmatpush1.msra.mxu0 %v4951
    %5132 = vmatprep.subr.mxu0 0.0
    %5133 = vmatpush1.msra.mxu0 %v4950
    %5134 = vmatprep.subr.mxu0 0.0
    %5135 = vmatpush2.msra.mxu0 0.0
    %5136 = vmatprep.subr.mxu0 0.0
    %5137 = vmatpush2.msra.mxu0 0.0
    %5138 = vmatprep.subr.mxu0 0.0
    %5139 = vmatpush2.msra.mxu0 0.0
    %5140 = vmatprep.subr.mxu0 0.0
    %5141 = vmatpush2.msra.mxu0 0.0
    %5142 = vmatprep.subr.mxu0 0.0
    %5143 = vmatpush2.msra.mxu0 0.0
    %5144 = vmatprep.subr.mxu0 0.0
    %5145 = vmatpush2.msra.mxu0 0.0
    %5146 = vmatprep.subr.mxu0 0.0
    %5147 = vmatpush2.msra.mxu0 0.0
    %5148 = vmatprep.subr.mxu0 0.0
    %5149 = vmatpush2.msra.mxu0 0.0
    %5150 = vmatprep.subr.mxu0 0.0
    %5151 = vmatpush2.msra.mxu0 0.0
    %5152 = vmatprep.subr.mxu0 0.0
    %5153 = vmatpush2.msra.mxu0 0.0
    %5154 = vmatprep.subr.mxu0 0.0
    %5155 = vmatpush2.msra.mxu0 0.0
    %5156 = vmatprep.subr.mxu0 0.0
    %5157 = vmatpush2.msra.mxu0 0.0
    %5158 = vmatprep.subr.mxu0 0.0
    %5159 = vmatpush2.msra.mxu0 0.0
    %5160 = vmatprep.subr.mxu0 0.0
    %5161 = vmatpush2.msra.mxu0 0.0
    %5162 = vmatprep.subr.mxu0 0.0
    %5163 = vmatpush2.msra.mxu0 0.0
    %5164 = vmatprep.subr.mxu0 0.0
    %5165 = vmatpush2.msra.mxu0 0.0
    %5166 = vmatprep.mubr.f32.mxu0 0.0
    %5167 = vmatmul.mubr.f32.gmra.mxu0 %v5094
    %v5168 = vpop.f32.mrf.mxu0
    %v5169 = vadd.f32 %v5091, %v5168
    %v5170 = vpop.f32.mrf.mxu0
    %5171 = vmatprep.mubr.f32.mxu0 0.0
    %5172 = vmatmul.mubr.f32.gmra.mxu0 %v5097
    %v5173 = vpop.f32.mrf.mxu0
    %v5174 = vadd.f32 %v5091, %v5173
    %v5175 = vpop.f32.mrf.mxu0
    %5176 = vmatprep.mubr.f32.mxu0 0.0
    %5177 = vmatmul.mubr.f32.gmra.mxu0 %v5100
    %v5178 = vpop.f32.mrf.mxu0
    %v5179 = vadd.f32 %v5091, %v5178
    %v5180 = vpop.f32.mrf.mxu0
    %5181 = vdwg.mxu0
    %v5182 = vmax.f32 %v5169, 0.0
    %v5183 = vmax.f32 %v5174, 0.0
    %v5184 = vmax.f32 %v5179, 0.0
    %v5186 = vlaneseq
    %v5187 = vshrl.u32 %v5186, 7
    %v5188 = vsub.s32 0, %v5187
    %v5189 = vrot.slane %v4997, %v5188
    %v5192 = vsel %vm285, %v5182, 0
    %v5195 = vsel %vm285, %v5183, 0
    %v5198 = vsel %vm285, %v5184, 0
    %5200 = vmatprep.subr.mxu0 0.0
    %5201 = vmatpush1.msra.mxu0 0.0
    %5202 = vmatprep.subr.mxu0 0.0
    %5203 = vmatpush1.msra.mxu0 0.0
    %5204 = vmatprep.subr.mxu0 0.0
    %5205 = vmatpush1.msra.mxu0 0.0
    %5206 = vmatprep.subr.mxu0 0.0
    %5207 = vmatpush1.msra.mxu0 0.0
    %5208 = vmatprep.subr.mxu0 0.0
    %5209 = vmatpush1.msra.mxu0 0.0
    %5210 = vmatprep.subr.mxu0 0.0
    %5211 = vmatpush1.msra.mxu0 0.0
    %5212 = vmatprep.subr.mxu0 0.0
    %5213 = vmatpush1.msra.mxu0 0.0
    %5214 = vmatprep.subr.mxu0 0.0
    %5215 = vmatpush1.msra.mxu0 0.0
    %5216 = vmatprep.subr.mxu0 0.0
    %5217 = vmatpush1.msra.mxu0 %v4993
    %5218 = vmatprep.subr.mxu0 0.0
    %5219 = vmatpush1.msra.mxu0 %v4992
    %5220 = vmatprep.subr.mxu0 0.0
    %5221 = vmatpush1.msra.mxu0 %v4991
    %5222 = vmatprep.subr.mxu0 0.0
    %5223 = vmatpush1.msra.mxu0 %v4990
    %5224 = vmatprep.subr.mxu0 0.0
    %5225 = vmatpush1.msra.mxu0 %v4989
    %5226 = vmatprep.subr.mxu0 0.0
    %5227 = vmatpush1.msra.mxu0 %v4988
    %5228 = vmatprep.subr.mxu0 0.0
    %5229 = vmatpush1.msra.mxu0 %v4987
    %5230 = vmatprep.subr.mxu0 0.0
    %5231 = vmatpush1.msra.mxu0 %v4986
    %5232 = vmatprep.subr.mxu0 0.0
    %5233 = vmatpush2.msra.mxu0 0.0
    %5234 = vmatprep.subr.mxu0 0.0
    %5235 = vmatpush2.msra.mxu0 0.0
    %5236 = vmatprep.subr.mxu0 0.0
    %5237 = vmatpush2.msra.mxu0 0.0
    %5238 = vmatprep.subr.mxu0 0.0
    %5239 = vmatpush2.msra.mxu0 0.0
    %5240 = vmatprep.subr.mxu0 0.0
    %5241 = vmatpush2.msra.mxu0 0.0
    %5242 = vmatprep.subr.mxu0 0.0
    %5243 = vmatpush2.msra.mxu0 0.0
    %5244 = vmatprep.subr.mxu0 0.0
    %5245 = vmatpush2.msra.mxu0 0.0
    %5246 = vmatprep.subr.mxu0 0.0
    %5247 = vmatpush2.msra.mxu0 0.0
    %5248 = vmatprep.subr.mxu0 0.0
    %5249 = vmatpush2.msra.mxu0 0.0
    %5250 = vmatprep.subr.mxu0 0.0
    %5251 = vmatpush2.msra.mxu0 0.0
    %5252 = vmatprep.subr.mxu0 0.0
    %5253 = vmatpush2.msra.mxu0 0.0
    %5254 = vmatprep.subr.mxu0 0.0
    %5255 = vmatpush2.msra.mxu0 0.0
    %5256 = vmatprep.subr.mxu0 0.0
    %5257 = vmatpush2.msra.mxu0 0.0
    %5258 = vmatprep.subr.mxu0 0.0
    %5259 = vmatpush2.msra.mxu0 0.0
    %5260 = vmatprep.subr.mxu0 0.0
    %5261 = vmatpush2.msra.mxu0 0.0
    %5262 = vmatprep.subr.mxu0 0.0
    %5263 = vmatpush2.msra.mxu0 0.0
    %5264 = vmatprep.mubr.f32.mxu0 0.0
    %5265 = vmatmul.mubr.f32.gmra.mxu0 %v5192
    %v5266 = vpop.f32.mrf.mxu0
    %v5267 = vadd.f32 %v5189, %v5266
    %v5268 = vpop.f32.mrf.mxu0
    %5269 = vmatprep.mubr.f32.mxu0 0.0
    %5270 = vmatmul.mubr.f32.gmra.mxu0 %v5195
    %v5271 = vpop.f32.mrf.mxu0
    %v5272 = vadd.f32 %v5189, %v5271
    %v5273 = vpop.f32.mrf.mxu0
    %5274 = vmatprep.mubr.f32.mxu0 0.0
    %5275 = vmatmul.mubr.f32.gmra.mxu0 %v5198
    %v5276 = vpop.f32.mrf.mxu0
    %v5277 = vadd.f32 %v5189, %v5276
    %v5278 = vpop.f32.mrf.mxu0
    %5279 = vdwg.mxu0
    %v5280 = vmul.f32 %v5267, %v177
    %v5281 = vmul.f32 %v5272, %v178
    %v5282 = vmul.f32 %v5277, %v179
    %v5283 = vsel %vm476, %v5280, 0.0
    %5284 = vadd.xlane.f32.xlu0 %v5283
    %v5285 = vpop.xlane.xlu0 %5284
    %v5286 = vsel %vm476, %v5281, 0.0
    %5287 = vadd.xlane.f32.xlu0 %v5286
    %v5288 = vpop.xlane.xlu0 %5287
    %v5289 = vsel %vm476, %v5282, 0.0
    %5290 = vadd.xlane.f32.xlu0 %v5289
    %v5291 = vpop.xlane.xlu0 %5290
    %s5292 = sld [smem:[#allocation2 + $0x4]]
    %v5293 = vstv %s5292
    %vm5294 = vcmp.lt.s32.totalorder %v125, %v5293
    %vm5295 = vcmp.lt.s32.totalorder %v126, %v5293
    %vm5296 = vcmp.lt.s32.totalorder %v127, %v5293
    %v5297 = vsub.f32 %v5285, %v156
    %v5298 = vsub.f32 %v5288, %v157
    %v5299 = vsub.f32 %v5291, %v158
    %v5300 = vsel %vm5294, %v5297, 0.0
    %v5301 = vsel %vm5295, %v5298, 0.0
    %v5302 = vsel %vm5296, %v5299, 0.0
    %v5303 = vmul.f32 %v5300, %v5300
    %v5304 = vmul.f32 %v5301, %v5301
    %v5305 = vmul.f32 %v5302, %v5302
    %v5306 = vsel %vm500, %v5303, 0.0
    %v5307 = vsel %vm500, %v5304, 0.0
    %v5308 = vadd.f32 %v5306, %v5307
    %v5309 = vsel %vm500, %v5305, 0.0
    %v5310 = vadd.f32 %v5308, %v5309
    %5311 = vadd.xlane.f32.xlu0 %v5310
    %v5312 = vpop.xlane.xlu0 %5311
    %v5313 = vrot.slane %v5312, 4
    %v5314 = vadd.f32 %v5312, %v5313
    %v5315 = vrot.slane %v5314, 2
    %v5316 = vadd.f32 %v5314, %v5315
    %v5317 = vrot.slane %v5316, 1
    %v5318 = vadd.f32 %v5316, %v5317
    %s5319 = vtos %v5318
    %v5320 = vstv %s5319
    %s5321 = sld [smem:[#allocation6 + $0x4]]
    %v5322 = vstv %s5321
    %v5323 = vmul.f32 %v5320, %v5322
    %vm5324 = vcmp.eq.s32.totalorder %v129, 4
    %v5325 = vsel %vm5324, %v5323, %v4159
    %5326 = vst [vmem:[#allocation14] sm:$0x1] %v5325
    // Predicated region
    $region90: #{_pallas_maml_forward.1} parent=1 // pred_check
      _
    $region91: #{_pallas_maml_forward.1} parent=1 // pred_check_branch
      %5328 = sbr.rel (0) target = $region93
    $region92: #{_pallas_maml_forward.1} parent=1 // pred_region
      %s5330 = ssub.s32 16, 16
      %5331 = vsyncadd [#allocation4], %s5330
      %s5333 = sshll.u32 [#allocation14], 4
      %s5334 = int_to_ptr.vmem [resolvable:$true] %s5333
      %5336 = dma.vmem_to_hbm [thread:$0]  %s5334, 16, %s16, [#allocation4]
    $region93: #{_pallas_maml_forward.1} parent=1 // pred_fallthru
      _
    // Predicated region
    $region94: #{_pallas_maml_forward.1} parent=1 // pred_check
      _
    $region95: #{_pallas_maml_forward.1} parent=1 // pred_check_branch
      %5338 = sbr.rel (0) target = $region97
    $region96: #{_pallas_maml_forward.1} parent=1 // pred_region
      %5339 = dma.done [#allocation4], 16
    $region97: #{_pallas_maml_forward.1} parent=1 // pred_fallthru
      _
    %5340 = vsyncpa [#allocation3], 1
    %5341 = vsyncpa [#allocation10], 1
    %5342 = vsyncpa [#allocation13], 1
    %5343 = vsyncpa [#allocation4], 1
    %5344 = vsyncpa [#allocation5], 1
    %5345 = vsyncpa [#allocation7], 1

</llo_original>
